<compile_context>
chip_gen: v7x
topology: tpu7x:2x2x1
jax: 0.10.0
libtpu: 0.0.40
codegen_flags: <defaults>
</compile_context>

<pallas_src>
import functools

import jax
import jax.numpy as jnp
from jax.experimental import pallas as pl
from jax.experimental.pallas import tpu as pltpu


NEG_INF = -1e30


def _round_up(x, m):
    return (x + m - 1) // m * m


def _decoder_step_kernel(H, SOS,
                         enc_ref, h0_ref, emb_ref, smask_ref,
                         wa_ref, ba_ref, ua_ref, bu_ref, va_ref,
                         w0_ref, b0_ref, w1_ref, b1_ref,
                         wout_ref, bout_ref,
                         logp_ref, attn_ref, hfin_ref,
                         uk_ref, embc_ref, tok_ref):
    """One greedy decode step per grid iteration t (grid=(T,), 'arbitrary')."""
    t = pl.program_id(0)
    B, Sp, _ = enc_ref.shape
    f32 = jnp.float32

    # ------------- one-time init at t == 0 -------------
    #  * step-invariant key projection uk = keys @ Ua + bu   (hoisted out of the decode loop)
    #  * SOS-token embedding as the first LSTM input
    #  * hidden-state carry initialized from the encoder hidden (kept in the resident
    #    hfin output block, so the final value is written back to HBM exactly once).
    @pl.when(t == 0)
    def _init():
        keys0 = enc_ref[...]                                              # (B, Sp, H) f32
        ua = ua_ref[...].astype(f32)                                      # (H, H)
        uk = jnp.dot(keys0.reshape(B * Sp, H), ua, preferred_element_type=f32)
        uk_ref[...] = uk.reshape(B, Sp, H) + bu_ref[...][None]            # (B, Sp, H)
        sos = emb_ref[pl.ds(SOS, 1), :]                                   # (1, H)
        embc_ref[...] = jnp.broadcast_to(sos, (B, H))
        # TODO(synk): nn.Dropout(p=0.1) on the embedded token is omitted (eval/inference).
        hfin_ref[...] = h0_ref[...]

    keys = enc_ref[...]                                                   # (B, Sp, H)
    h_prev0 = hfin_ref[0]                                                 # (B, H)
    h_prev1 = hfin_ref[1]                                                 # (B, H)
    embedded = embc_ref[...]                                              # (B, H)

    # ------------- Bahdanau attention (query = last-layer hidden) -------------
    wq = jnp.dot(h_prev1, wa_ref[...].astype(f32),
                 preferred_element_type=f32) + ba_ref[...]                # (B, H)
    e = jnp.tanh(wq[:, None, :] + uk_ref[...])                            # (B, Sp, H)
    # TODO(synk): at production S/H route these reductions through the MXU
    #             (einsum 'bsh,h->bs' / 'bs,bsh->bh'); B*S is tiny here (latency-bound).
    scores = jnp.sum(e * va_ref[...][None], axis=-1) + smask_ref[...]     # (B, Sp), pads = -1e30
    m = jnp.max(scores, axis=-1, keepdims=True)
    ex = jnp.exp(scores - m)
    weights = ex / jnp.sum(ex, axis=-1, keepdims=True)                    # exact softmax
    context = jnp.sum(weights[:, :, None] * keys, axis=1)                 # (B, H)

    # ------------- 2-layer LSTM, forget gate dropped (cell re-zeroed each step) -------------
    x0 = jnp.concatenate([embedded, context, h_prev0], axis=-1)           # (B, 3H)
    g0 = jnp.dot(x0, w0_ref[...].astype(f32),
                 preferred_element_type=f32) + b0_ref[...]                # (B, 3H) = i,g,o
    i0 = jax.nn.sigmoid(g0[:, 0:H])
    gg0 = jnp.tanh(g0[:, H:2 * H])
    o0 = jax.nn.sigmoid(g0[:, 2 * H:3 * H])
    h0_new = o0 * jnp.tanh(i0 * gg0)                                      # c = f*0 + i*g

    x1 = jnp.concatenate([h0_new, h_prev1], axis=-1)                      # (B, 2H)
    g1 = jnp.dot(x1, w1_ref[...].astype(f32),
                 preferred_element_type=f32) + b1_ref[...]                # (B, 3H)
    i1 = jax.nn.sigmoid(g1[:, 0:H])
    gg1 = jnp.tanh(g1[:, H:2 * H])
    o1 = jax.nn.sigmoid(g1[:, 2 * H:3 * H])
    h1_new = o1 * jnp.tanh(i1 * gg1)
    # TODO(synk): with H not a multiple of 128 the concats / gate slices cost XLU relayouts;
    #             at production pad H (or use per-segment dots summed into one accumulator).

    # ------------- output projection + log_softmax (lane-dense Vp columns) -------------
    logits = jnp.dot(h1_new, wout_ref[...].astype(f32),
                     preferred_element_type=f32) + bout_ref[...]          # (B, Vp), pads = -1e30
    lmax = jnp.max(logits, axis=-1, keepdims=True)
    lse = lmax + jnp.log(jnp.sum(jnp.exp(logits - lmax), axis=-1, keepdims=True))
    logp_ref[0] = logits - lse                                            # streamed per step
    attn_ref[0] = weights
    hfin_ref[0] = h0_new                                                  # resident carry/output
    hfin_ref[1] = h1_new

    # ------------- greedy next token -> row gather from the embedding table -------------
    nxt = jnp.argmax(logits, axis=-1).astype(jnp.int32)                   # (B,) pads never win
    tok_ref[0, :] = nxt                                                   # scalarization buffer
    rows = []
    for b in range(B):                                                    # B is small & static
        idx = tok_ref[0, b]
        rows.append(emb_ref[pl.ds(idx, 1), :])                            # (1, H)
    embc_ref[...] = jnp.concatenate(rows, axis=0)                         # (B, H)
    # TODO(synk): at production V keep the embedding in HBM (memory_space=pl.ANY) and gather
    #             the argmax rows via SMEM-indexed make_async_copy instead of VMEM-resident reads.


def lstm_attn_decoder(params, encoder_outputs, encoder_hidden, *,
                      max_length=8, SOS_token=1):
    B, S, H = encoder_outputs.shape
    L = encoder_hidden.shape[0]
    assert L == 2, "kernel is specialized to num_layers=2"
    V = params["W_out"].shape[0]
    T = max_length
    Sp = _round_up(S, 128)          # lane-dense attention / attention-output width
    Vp = _round_up(V, 128)          # lane-dense logits / logp-output width

    f32, bf16 = jnp.float32, jnp.bfloat16

    # ---- fuse [W_ih ; W_hh] per layer and DROP the forget-gate rows (gates kept: i, g, o) ----
    def fuse_lstm(Wih, Whh, bih, bhh):
        W = jnp.concatenate([Wih, Whh], axis=1)                           # (4H, in)
        b = bih + bhh                                                     # (4H,)
        Wk = jnp.concatenate([W[0:H], W[2 * H:4 * H]], axis=0)            # (3H, in): i,g,o
        bk = jnp.concatenate([b[0:H], b[2 * H:4 * H]])                    # (3H,)
        return Wk.T.astype(bf16), bk.reshape(1, 3 * H).astype(f32)

    w0, b0 = fuse_lstm(params["W_ih_l0"], params["W_hh_l0"],
                       params["b_ih_l0"], params["b_hh_l0"])              # (3H,3H), (1,3H)
    w1, b1 = fuse_lstm(params["W_ih_l1"], params["W_hh_l1"],
                       params["b_ih_l1"], params["b_hh_l1"])              # (2H,3H), (1,3H)

    # output projection padded to Vp lanes; padded bias = -1e30 so softmax/argmax ignore pads
    wout = jnp.zeros((Vp, H), f32).at[:V].set(params["W_out"]).T.astype(bf16)   # (H, Vp)
    bout = jnp.full((1, Vp), NEG_INF, f32).at[0, :V].set(params["b_out"])

    wa = params["Wa"].T.astype(bf16)                                      # (H, H)
    ua = params["Ua"].T.astype(bf16)                                      # (H, H)
    ba = params["ba"].reshape(1, H).astype(f32)
    bu = params["bu"].reshape(1, H).astype(f32)
    va = params["Va"].reshape(1, H).astype(f32)
    # NOTE: the Va bias (bva) is a uniform shift of the attention scores -> no effect under
    # softmax; intentionally not passed to the kernel.
    emb = params["embedding"].astype(f32)                                 # (V, H) gather table
    # TODO(synk): production would keep the embedding bf16 in HBM and DMA-gather rows; kept f32
    #             VMEM-resident here so the dynamic row reads stay on the simple 32-bit path.

    # encoder outputs padded to Sp; padded positions masked to -1e30 in the scores
    enc = jnp.zeros((B, Sp, H), f32).at[:, :S, :].set(encoder_outputs.astype(f32))
    smask = jnp.full((1, Sp), NEG_INF, f32).at[0, :S].set(0.0)
    h0 = encoder_hidden.astype(f32)

    inputs = (enc, h0, emb, smask, wa, ba, ua, bu, va, w0, b0, w1, b1, wout, bout)

    def full_spec(a):
        return pl.BlockSpec(a.shape, lambda t, _nd=a.ndim: (0,) * _nd)

    in_specs = [full_spec(a) for a in inputs]
    out_specs = (
        pl.BlockSpec((1, B, Vp), lambda t: (t, 0, 0)),     # streamed per-step log-probs
        pl.BlockSpec((1, B, Sp), lambda t: (t, 0, 0)),     # streamed per-step attention
        pl.BlockSpec((L, B, H), lambda t: (0, 0, 0)),      # resident hidden carry / final hidden
    )
    out_shape = (
        jax.ShapeDtypeStruct((T, B, Vp), f32),
        jax.ShapeDtypeStruct((T, B, Sp), f32),
        jax.ShapeDtypeStruct((L, B, H), f32),
    )
    scratch_shapes = [
        pltpu.VMEM((B, Sp, H), f32),       # uk = keys @ Ua + bu (step-invariant, persists)
        pltpu.VMEM((B, H), f32),           # next-token embedding carry
        pltpu.VMEM((1, B), jnp.int32),     # greedy token indices (scalarization buffer)
    ]

    # explicit scoped-VMEM budget: resident inputs + scratch + double-buffered out blocks,
    # with generous headroom; kept <= 64 MiB so it is valid on v7x as well.
    resident = sum(int(a.size) * a.dtype.itemsize for a in inputs)
    resident += (B * Sp * H + B * H) * 4 + B * 4                 # scratch
    resident += 2 * (B * Vp + B * Sp) * 4 + L * B * H * 4        # output blocks (x2 buffers)
    vmem_limit = int(min(64 * 2**20, max(32 * 2**20, 4 * resident)))

    kernel = functools.partial(_decoder_step_kernel, H, SOS_token)

    # TODO(synk): on v7x, if B is large, add a leading size-2 'parallel' grid axis (or
    #             pl.core_map over a tensorcore mesh) and decode half the batch per core.
    # TODO(synk): at production V, move W_out/embedding to memory_space=pl.ANY and hide their
    #             HBM->VMEM DMA behind the uk precompute with manual make_async_copy.
    logp_p, attn_p, h_final = pl.pallas_call(
        kernel,
        out_shape=out_shape,
        grid_spec=pltpu.PrefetchScalarGridSpec(
            num_scalar_prefetch=0,
            grid=(T,),                                   # one decode step per grid iteration
            in_specs=in_specs,
            out_specs=out_specs,
            scratch_shapes=scratch_shapes,
        ),
        compiler_params=pltpu.CompilerParams(
            dimension_semantics=("arbitrary",),          # sequential, stateful decode
            vmem_limit_bytes=vmem_limit,
        ),
    )(*inputs)

    # back to torch layout: (B, T, V), (L, B, H), (B, T, S) -- strip lane padding
    logp = logp_p[:, :, :V].transpose(1, 0, 2)
    attn = attn_p[:, :, :S].transpose(1, 0, 2)
    return logp, h_final, attn


def init_params(key, H, V):
    ks = jax.random.split(key, 17)
    u = lambda k, shape: 0.1 * jax.random.uniform(k, shape, jnp.float32, -1.0, 1.0)
    return dict(
        embedding=u(ks[0], (V, H)),
        Wa=u(ks[1], (H, H)), ba=u(ks[2], (H,)),
        Ua=u(ks[3], (H, H)), bu=u(ks[4], (H,)),
        Va=u(ks[5], (1, H)), bva=u(ks[6], (1,)),
        W_ih_l0=u(ks[7], (4 * H, 2 * H)), W_hh_l0=u(ks[8], (4 * H, H)),
        b_ih_l0=u(ks[9], (4 * H,)), b_hh_l0=u(ks[10], (4 * H,)),
        W_ih_l1=u(ks[11], (4 * H, H)), W_hh_l1=u(ks[12], (4 * H, H)),
        b_ih_l1=u(ks[13], (4 * H,)), b_hh_l1=u(ks[14], (4 * H,)),
        W_out=u(ks[15], (V, H)), b_out=u(ks[16], (V,)),
    )


def reference(params, enc, h0, max_length, SOS):
    """Pure-JAX reference mirroring the PyTorch forward (eval mode, greedy decode)."""
    B, S, H = enc.shape
    emb = params["embedding"]
    h = h0
    inp = jnp.full((B,), SOS, jnp.int32)
    outs, attns = [], []

    def cell(x, hh, Wih, Whh, bih, bhh):
        g = x @ Wih.T + hh @ Whh.T + bih + bhh
        i, f, gg, o = jnp.split(g, 4, axis=-1)
        c = jax.nn.sigmoid(i) * jnp.tanh(gg)          # cell state starts at 0 every step
        return jax.nn.sigmoid(o) * jnp.tanh(c)

    for _ in range(max_length):
        x = emb[inp]                                  # (B, H)
        q = h[-1]
        wq = q @ params["Wa"].T + params["ba"]
        uk = enc @ params["Ua"].T + params["bu"]
        e = jnp.tanh(wq[:, None, :] + uk)
        sc = jnp.squeeze(e @ params["Va"].T, -1) + params["bva"][0]
        w = jax.nn.softmax(sc, axis=-1)
        ctx = jnp.einsum("bs,bsh->bh", w, enc)
        x0 = jnp.concatenate([x, ctx], axis=-1)
        h0n = cell(x0, h[0], params["W_ih_l0"], params["W_hh_l0"],
                   params["b_ih_l0"], params["b_hh_l0"])
        h1n = cell(h0n, h[1], params["W_ih_l1"], params["W_hh_l1"],
                   params["b_ih_l1"], params["b_hh_l1"])
        h = jnp.stack([h0n, h1n])
        logits = h1n @ params["W_out"].T + params["b_out"]
        outs.append(logits)
        attns.append(w)
        inp = jnp.argmax(logits, axis=-1)
    logp = jax.nn.log_softmax(jnp.stack(outs, 1), axis=-1)
    return logp, h, jnp.stack(attns, 1)


if __name__ == "__main__":
    B, S, H, V, L, T = 2, 8, 32, 64, 2, 8
    SOS = 1
    key = jax.random.PRNGKey(0)
    kp, ke, kh = jax.random.split(key, 3)

    params = init_params(kp, H, V)
    # The kernel stores its matmul weights in bf16; round-trip the params here so the f32
    # reference uses the identical (bf16-representable) weight values -> tight comparison.
    params = jax.tree_util.tree_map(
        lambda x: x.astype(jnp.bfloat16).astype(jnp.float32), params)

    encoder_outputs = jax.random.normal(ke, (B, S, H), jnp.float32)
    encoder_hidden = jax.random.normal(kh, (L, B, H), jnp.float32)

    logp, h_final, attn = lstm_attn_decoder(params, encoder_outputs, encoder_hidden,
                                            max_length=T, SOS_token=SOS)
    jax.block_until_ready((logp, h_final, attn))

    ref_logp, ref_h, ref_attn = reference(params, encoder_outputs, encoder_hidden, T, SOS)
    assert logp.shape == (B, T, V) and attn.shape == (B, T, S) and h_final.shape == (L, B, H)
    assert jnp.allclose(logp, ref_logp, atol=1e-3), "log-prob mismatch"
    assert jnp.allclose(h_final, ref_h, atol=1e-3), "hidden mismatch"
    assert jnp.allclose(attn, ref_attn, atol=1e-3), "attention mismatch"

    print("KERNEL_OK")
</pallas_src>

<mosaic_0001>
module attributes {stable_mosaic.version = 11 : i64} {
  func.func @_decoder_step_kernel(%arg0: i32, %arg1: memref<2x128x32xf32, #tpu.memory_space<vmem>>, %arg2: memref<2x2x32xf32, #tpu.memory_space<vmem>>, %arg3: memref<64x32xf32, #tpu.memory_space<vmem>>, %arg4: memref<1x128xf32, #tpu.memory_space<vmem>>, %arg5: memref<32x32xbf16, #tpu.memory_space<vmem>>, %arg6: memref<1x32xf32, #tpu.memory_space<vmem>>, %arg7: memref<32x32xbf16, #tpu.memory_space<vmem>>, %arg8: memref<1x32xf32, #tpu.memory_space<vmem>>, %arg9: memref<1x32xf32, #tpu.memory_space<vmem>>, %arg10: memref<96x96xbf16, #tpu.memory_space<vmem>>, %arg11: memref<1x96xf32, #tpu.memory_space<vmem>>, %arg12: memref<64x96xbf16, #tpu.memory_space<vmem>>, %arg13: memref<1x96xf32, #tpu.memory_space<vmem>>, %arg14: memref<32x128xbf16, #tpu.memory_space<vmem>>, %arg15: memref<1x128xf32, #tpu.memory_space<vmem>>, %arg16: memref<1x2x128xf32, #tpu.memory_space<vmem>>, %arg17: memref<1x2x128xf32, #tpu.memory_space<vmem>>, %arg18: memref<2x2x32xf32, #tpu.memory_space<vmem>>, %arg19: memref<2x128x32xf32, #tpu.memory_space<vmem>>, %arg20: memref<2x32xf32, #tpu.memory_space<vmem>>, %arg21: memref<1x2xi32, #tpu.memory_space<vmem>>) attributes {dimension_semantics = [#tpu.dimension_semantics<arbitrary>], iteration_bounds = array<i64: 8>, scalar_prefetch = 0 : i64, scratch_operands = 3 : i64, tpu.core_type = #tpu.core_type<tc>, window_params = [{pipeline_mode = #tpu.pipeline_mode<synchronous>, transform_indices = @transform_0, window_bounds = array<i64: 2, 128, 32>}, {pipeline_mode = #tpu.pipeline_mode<synchronous>, transform_indices = @transform_1, window_bounds = array<i64: 2, 2, 32>}, {pipeline_mode = #tpu.pipeline_mode<synchronous>, transform_indices = @transform_2, window_bounds = array<i64: 64, 32>}, {pipeline_mode = #tpu.pipeline_mode<synchronous>, transform_indices = @transform_3, window_bounds = array<i64: 1, 128>}, {pipeline_mode = #tpu.pipeline_mode<synchronous>, transform_indices = @transform_4, window_bounds = array<i64: 32, 32>}, {pipeline_mode = #tpu.pipeline_mode<synchronous>, transform_indices = @transform_5, window_bounds = array<i64: 1, 32>}, {pipeline_mode = #tpu.pipeline_mode<synchronous>, transform_indices = @transform_6, window_bounds = array<i64: 32, 32>}, {pipeline_mode = #tpu.pipeline_mode<synchronous>, transform_indices = @transform_7, window_bounds = array<i64: 1, 32>}, {pipeline_mode = #tpu.pipeline_mode<synchronous>, transform_indices = @transform_8, window_bounds = array<i64: 1, 32>}, {pipeline_mode = #tpu.pipeline_mode<synchronous>, transform_indices = @transform_9, window_bounds = array<i64: 96, 96>}, {pipeline_mode = #tpu.pipeline_mode<synchronous>, transform_indices = @transform_10, window_bounds = array<i64: 1, 96>}, {pipeline_mode = #tpu.pipeline_mode<synchronous>, transform_indices = @transform_11, window_bounds = array<i64: 64, 96>}, {pipeline_mode = #tpu.pipeline_mode<synchronous>, transform_indices = @transform_12, window_bounds = array<i64: 1, 96>}, {pipeline_mode = #tpu.pipeline_mode<synchronous>, transform_indices = @transform_13, window_bounds = array<i64: 32, 128>}, {pipeline_mode = #tpu.pipeline_mode<synchronous>, transform_indices = @transform_14, window_bounds = array<i64: 1, 128>}, {transform_indices = @transform_15, window_bounds = array<i64: 1, 2, 128>}, {transform_indices = @transform_16, window_bounds = array<i64: 1, 2, 128>}, {pipeline_mode = #tpu.pipeline_mode<synchronous>, transform_indices = @transform_17, window_bounds = array<i64: 2, 2, 32>}]} {
    %c0_i32 = arith.constant 0 : i32
    %0 = arith.cmpi eq, %arg0, %c0_i32 : i32
    %1 = arith.extui %0 : i1 to i32
    %c0_i32_0 = arith.constant 0 : i32
    %2 = arith.cmpi ne, %1, %c0_i32_0 : i32
    scf.if %2 {
      %c0_68 = arith.constant 0 : index
      %c0_69 = arith.constant 0 : index
      %c0_70 = arith.constant 0 : index
      %132 = vector.load %arg1[%c0_68, %c0_69, %c0_70] : memref<2x128x32xf32, #tpu.memory_space<vmem>>, vector<2x128x32xf32>
      %c0_71 = arith.constant 0 : index
      %c0_72 = arith.constant 0 : index
      %133 = vector.load %arg7[%c0_71, %c0_72] : memref<32x32xbf16, #tpu.memory_space<vmem>>, vector<32x32xbf16>
      %134 = arith.extf %133 : vector<32x32xbf16> to vector<32x32xf32>
      %135 = vector.shape_cast %132 : vector<2x128x32xf32> to vector<256x32xf32>
      %cst_73 = arith.constant dense<0.000000e+00> : vector<256x32xf32>
      %136 = tpu.matmul %135, %134, %cst_73 {dimension_numbers = #tpu.dot_dimension_numbers<[1], [0], [0], [1], [0, 0, 1, 1], [], []>} : vector<256x32xf32>, vector<32x32xf32>, vector<256x32xf32> -> vector<256x32xf32>
      %137 = vector.shape_cast %136 : vector<256x32xf32> to vector<2x128x32xf32>
      %c0_74 = arith.constant 0 : index
      %c0_75 = arith.constant 0 : index
      %138 = vector.load %arg8[%c0_74, %c0_75] : memref<1x32xf32, #tpu.memory_space<vmem>>, vector<1x32xf32>
      %139 = vector.shape_cast %138 : vector<1x32xf32> to vector<1x1x32xf32>
      %140 = vector.broadcast %139 : vector<1x1x32xf32> to vector<2x128x32xf32>
      %141 = arith.addf %137, %140 : vector<2x128x32xf32>
      %c0_76 = arith.constant 0 : index
      %c0_77 = arith.constant 0 : index
      %c0_78 = arith.constant 0 : index
      %142 = vector.load %arg19[%c0_76, %c0_77, %c0_78] : memref<2x128x32xf32, #tpu.memory_space<vmem>>, vector<2x128x32xf32>
      tpu.vector_store %arg19[%c0_76, %c0_77, %c0_78], %141 {strides = array<i32>} : memref<2x128x32xf32, #tpu.memory_space<vmem>>, vector<2x128x32xf32>,
      %c1_79 = arith.constant 1 : index
      %c0_80 = arith.constant 0 : index
      %143 = vector.load %arg3[%c1_79, %c0_80] : memref<64x32xf32, #tpu.memory_space<vmem>>, vector<1x32xf32>
      %144 = vector.shape_cast %143 : vector<1x32xf32> to vector<1x32xf32>
      %145 = vector.broadcast %144 : vector<1x32xf32> to vector<2x32xf32>
      %c0_81 = arith.constant 0 : index
      %c0_82 = arith.constant 0 : index
      %146 = vector.load %arg20[%c0_81, %c0_82] : memref<2x32xf32, #tpu.memory_space<vmem>>, vector<2x32xf32>
      tpu.vector_store %arg20[%c0_81, %c0_82], %145 {strides = array<i32>} : memref<2x32xf32, #tpu.memory_space<vmem>>, vector<2x32xf32>,
      %c0_83 = arith.constant 0 : index
      %c0_84 = arith.constant 0 : index
      %c0_85 = arith.constant 0 : index
      %147 = vector.load %arg2[%c0_83, %c0_84, %c0_85] : memref<2x2x32xf32, #tpu.memory_space<vmem>>, vector<2x2x32xf32>
      %c0_86 = arith.constant 0 : index
      %c0_87 = arith.constant 0 : index
      %c0_88 = arith.constant 0 : index
      %148 = vector.load %arg18[%c0_86, %c0_87, %c0_88] : memref<2x2x32xf32, #tpu.memory_space<vmem>>, vector<2x2x32xf32>
      tpu.vector_store %arg18[%c0_86, %c0_87, %c0_88], %147 {strides = array<i32>} : memref<2x2x32xf32, #tpu.memory_space<vmem>>, vector<2x2x32xf32>,
    } else {
    }
    %c0 = arith.constant 0 : index
    %c0_1 = arith.constant 0 : index
    %c0_2 = arith.constant 0 : index
    %3 = vector.load %arg1[%c0, %c0_1, %c0_2] : memref<2x128x32xf32, #tpu.memory_space<vmem>>, vector<2x128x32xf32>
    %c0_3 = arith.constant 0 : index
    %c0_4 = arith.constant 0 : index
    %c0_5 = arith.constant 0 : index
    %4 = vector.load %arg18[%c0_3, %c0_4, %c0_5] : memref<2x2x32xf32, #tpu.memory_space<vmem>>, vector<1x2x32xf32>
    %5 = vector.shape_cast %4 : vector<1x2x32xf32> to vector<2x32xf32>
    %c1 = arith.constant 1 : index
    %c0_6 = arith.constant 0 : index
    %c0_7 = arith.constant 0 : index
    %6 = vector.load %arg18[%c1, %c0_6, %c0_7] : memref<2x2x32xf32, #tpu.memory_space<vmem>>, vector<1x2x32xf32>
    %7 = vector.shape_cast %6 : vector<1x2x32xf32> to vector<2x32xf32>
    %c0_8 = arith.constant 0 : index
    %c0_9 = arith.constant 0 : index
    %8 = vector.load %arg20[%c0_8, %c0_9] : memref<2x32xf32, #tpu.memory_space<vmem>>, vector<2x32xf32>
    %c0_10 = arith.constant 0 : index
    %c0_11 = arith.constant 0 : index
    %9 = vector.load %arg5[%c0_10, %c0_11] : memref<32x32xbf16, #tpu.memory_space<vmem>>, vector<32x32xbf16>
    %10 = arith.extf %9 : vector<32x32xbf16> to vector<32x32xf32>
    %cst = arith.constant dense<0.000000e+00> : vector<2x32xf32>
    %11 = tpu.matmul %7, %10, %cst {dimension_numbers = #tpu.dot_dimension_numbers<[1], [0], [0], [1], [0, 0, 1, 1], [], []>} : vector<2x32xf32>, vector<32x32xf32>, vector<2x32xf32> -> vector<2x32xf32>
    %c0_12 = arith.constant 0 : index
    %c0_13 = arith.constant 0 : index
    %12 = vector.load %arg6[%c0_12, %c0_13] : memref<1x32xf32, #tpu.memory_space<vmem>>, vector<1x32xf32>
    %13 = vector.broadcast %12 : vector<1x32xf32> to vector<2x32xf32>
    %14 = arith.addf %11, %13 : vector<2x32xf32>
    %15 = vector.shape_cast %14 : vector<2x32xf32> to vector<2x1x32xf32>
    %c0_14 = arith.constant 0 : index
    %c0_15 = arith.constant 0 : index
    %c0_16 = arith.constant 0 : index
    %16 = vector.load %arg19[%c0_14, %c0_15, %c0_16] : memref<2x128x32xf32, #tpu.memory_space<vmem>>, vector<2x128x32xf32>
    %17 = vector.broadcast %15 : vector<2x1x32xf32> to vector<2x128x32xf32>
    %18 = arith.addf %17, %16 : vector<2x128x32xf32>
    %19 = math.tanh %18 : vector<2x128x32xf32>
    %c0_17 = arith.constant 0 : index
    %c0_18 = arith.constant 0 : index
    %20 = vector.load %arg9[%c0_17, %c0_18] : memref<1x32xf32, #tpu.memory_space<vmem>>, vector<1x32xf32>
    %21 = vector.shape_cast %20 : vector<1x32xf32> to vector<1x1x32xf32>
    %22 = vector.broadcast %21 : vector<1x1x32xf32> to vector<2x128x32xf32>
    %23 = arith.mulf %19, %22 : vector<2x128x32xf32>
    %cst_19 = arith.constant dense<0.000000e+00> : vector<2x128xf32>
    %24 = vector.multi_reduction <add>, %23, %cst_19 [2] : vector<2x128x32xf32> to vector<2x128xf32>
    %c0_20 = arith.constant 0 : index
    %c0_21 = arith.constant 0 : index
    %25 = vector.load %arg4[%c0_20, %c0_21] : memref<1x128xf32, #tpu.memory_space<vmem>>, vector<1x128xf32>
    %26 = vector.broadcast %25 : vector<1x128xf32> to vector<2x128xf32>
    %27 = arith.addf %24, %26 : vector<2x128xf32>
    %cst_22 = arith.constant dense<0xFF800000> : vector<2xf32>
    %28 = vector.multi_reduction <maximumf>, %27, %cst_22 [1] : vector<2x128xf32> to vector<2xf32>
    %29 = vector.shape_cast %28 : vector<2xf32> to vector<2x1xf32>
    %30 = vector.broadcast %29 : vector<2x1xf32> to vector<2x128xf32>
    %31 = arith.subf %27, %30 : vector<2x128xf32>
    %32 = math.exp %31 : vector<2x128xf32>
    %cst_23 = arith.constant dense<0.000000e+00> : vector<2xf32>
    %33 = vector.multi_reduction <add>, %32, %cst_23 [1] : vector<2x128xf32> to vector<2xf32>
    %34 = vector.shape_cast %33 : vector<2xf32> to vector<2x1xf32>
    %35 = vector.broadcast %34 : vector<2x1xf32> to vector<2x128xf32>
    %36 = arith.divf %32, %35 : vector<2x128xf32>
    %37 = vector.shape_cast %36 : vector<2x128xf32> to vector<2x128x1xf32>
    %38 = vector.broadcast %37 : vector<2x128x1xf32> to vector<2x128x32xf32>
    %39 = arith.mulf %38, %3 : vector<2x128x32xf32>
    %cst_24 = arith.constant dense<0.000000e+00> : vector<2x32xf32>
    %40 = vector.multi_reduction <add>, %39, %cst_24 [1] : vector<2x128x32xf32> to vector<2x32xf32>
    %41 = tpu.concatenate %8, %40, %5 in 1 : vector<2x32xf32>, vector<2x32xf32>, vector<2x32xf32> -> vector<2x96xf32>
    %c0_25 = arith.constant 0 : index
    %c0_26 = arith.constant 0 : index
    %42 = vector.load %arg10[%c0_25, %c0_26] : memref<96x96xbf16, #tpu.memory_space<vmem>>, vector<96x96xbf16>
    %43 = arith.extf %42 : vector<96x96xbf16> to vector<96x96xf32>
    %cst_27 = arith.constant dense<0.000000e+00> : vector<2x96xf32>
    %44 = tpu.matmul %41, %43, %cst_27 {dimension_numbers = #tpu.dot_dimension_numbers<[1], [0], [0], [1], [0, 0, 1, 1], [], []>} : vector<2x96xf32>, vector<96x96xf32>, vector<2x96xf32> -> vector<2x96xf32>
    %c0_28 = arith.constant 0 : index
    %c0_29 = arith.constant 0 : index
    %45 = vector.load %arg11[%c0_28, %c0_29] : memref<1x96xf32, #tpu.memory_space<vmem>>, vector<1x96xf32>
    %46 = vector.broadcast %45 : vector<1x96xf32> to vector<2x96xf32>
    %47 = arith.addf %44, %46 : vector<2x96xf32>
    %48 = vector.extract_strided_slice %47 {offsets = [0, 0], sizes = [2, 32], strides = [1, 1]} : vector<2x96xf32> to vector<2x32xf32>
    %49 = arith.negf %48 : vector<2x32xf32>
    %50 = math.exp %49 : vector<2x32xf32>
    %cst_30 = arith.constant 1.000000e+00 : f32
    %51 = vector.broadcast %cst_30 : f32 to vector<2x32xf32>
    %52 = arith.addf %51, %50 : vector<2x32xf32>
    %53 = arith.divf %51, %52 : vector<2x32xf32>
    %54 = vector.extract_strided_slice %47 {offsets = [0, 32], sizes = [2, 32], strides = [1, 1]} : vector<2x96xf32> to vector<2x32xf32>
    %55 = math.tanh %54 : vector<2x32xf32>
    %56 = vector.extract_strided_slice %47 {offsets = [0, 64], sizes = [2, 32], strides = [1, 1]} : vector<2x96xf32> to vector<2x32xf32>
    %57 = arith.negf %56 : vector<2x32xf32>
    %58 = math.exp %57 : vector<2x32xf32>
    %cst_31 = arith.constant 1.000000e+00 : f32
    %59 = vector.broadcast %cst_31 : f32 to vector<2x32xf32>
    %60 = arith.addf %59, %58 : vector<2x32xf32>
    %61 = arith.divf %59, %60 : vector<2x32xf32>
    %62 = arith.mulf %53, %55 : vector<2x32xf32>
    %63 = math.tanh %62 : vector<2x32xf32>
    %64 = arith.mulf %61, %63 : vector<2x32xf32>
    %65 = tpu.concatenate %64, %7 in 1 : vector<2x32xf32>, vector<2x32xf32> -> vector<2x64xf32>
    %c0_32 = arith.constant 0 : index
    %c0_33 = arith.constant 0 : index
    %66 = vector.load %arg12[%c0_32, %c0_33] : memref<64x96xbf16, #tpu.memory_space<vmem>>, vector<64x96xbf16>
    %67 = arith.extf %66 : vector<64x96xbf16> to vector<64x96xf32>
    %cst_34 = arith.constant dense<0.000000e+00> : vector<2x96xf32>
    %68 = tpu.matmul %65, %67, %cst_34 {dimension_numbers = #tpu.dot_dimension_numbers<[1], [0], [0], [1], [0, 0, 1, 1], [], []>} : vector<2x64xf32>, vector<64x96xf32>, vector<2x96xf32> -> vector<2x96xf32>
    %c0_35 = arith.constant 0 : index
    %c0_36 = arith.constant 0 : index
    %69 = vector.load %arg13[%c0_35, %c0_36] : memref<1x96xf32, #tpu.memory_space<vmem>>, vector<1x96xf32>
    %70 = vector.broadcast %69 : vector<1x96xf32> to vector<2x96xf32>
    %71 = arith.addf %68, %70 : vector<2x96xf32>
    %72 = vector.extract_strided_slice %71 {offsets = [0, 0], sizes = [2, 32], strides = [1, 1]} : vector<2x96xf32> to vector<2x32xf32>
    %73 = arith.negf %72 : vector<2x32xf32>
    %74 = math.exp %73 : vector<2x32xf32>
    %cst_37 = arith.constant 1.000000e+00 : f32
    %75 = vector.broadcast %cst_37 : f32 to vector<2x32xf32>
    %76 = arith.addf %75, %74 : vector<2x32xf32>
    %77 = arith.divf %75, %76 : vector<2x32xf32>
    %78 = vector.extract_strided_slice %71 {offsets = [0, 32], sizes = [2, 32], strides = [1, 1]} : vector<2x96xf32> to vector<2x32xf32>
    %79 = math.tanh %78 : vector<2x32xf32>
    %80 = vector.extract_strided_slice %71 {offsets = [0, 64], sizes = [2, 32], strides = [1, 1]} : vector<2x96xf32> to vector<2x32xf32>
    %81 = arith.negf %80 : vector<2x32xf32>
    %82 = math.exp %81 : vector<2x32xf32>
    %cst_38 = arith.constant 1.000000e+00 : f32
    %83 = vector.broadcast %cst_38 : f32 to vector<2x32xf32>
    %84 = arith.addf %83, %82 : vector<2x32xf32>
    %85 = arith.divf %83, %84 : vector<2x32xf32>
    %86 = arith.mulf %77, %79 : vector<2x32xf32>
    %87 = math.tanh %86 : vector<2x32xf32>
    %88 = arith.mulf %85, %87 : vector<2x32xf32>
    %c0_39 = arith.constant 0 : index
    %c0_40 = arith.constant 0 : index
    %89 = vector.load %arg14[%c0_39, %c0_40] : memref<32x128xbf16, #tpu.memory_space<vmem>>, vector<32x128xbf16>
    %90 = arith.extf %89 : vector<32x128xbf16> to vector<32x128xf32>
    %cst_41 = arith.constant dense<0.000000e+00> : vector<2x128xf32>
    %91 = tpu.matmul %88, %90, %cst_41 {dimension_numbers = #tpu.dot_dimension_numbers<[1], [0], [0], [1], [0, 0, 1, 1], [], []>} : vector<2x32xf32>, vector<32x128xf32>, vector<2x128xf32> -> vector<2x128xf32>
    %c0_42 = arith.constant 0 : index
    %c0_43 = arith.constant 0 : index
    %92 = vector.load %arg15[%c0_42, %c0_43] : memref<1x128xf32, #tpu.memory_space<vmem>>, vector<1x128xf32>
    %93 = vector.broadcast %92 : vector<1x128xf32> to vector<2x128xf32>
    %94 = arith.addf %91, %93 : vector<2x128xf32>
    %cst_44 = arith.constant dense<0xFF800000> : vector<2xf32>
    %95 = vector.multi_reduction <maximumf>, %94, %cst_44 [1] : vector<2x128xf32> to vector<2xf32>
    %96 = vector.shape_cast %95 : vector<2xf32> to vector<2x1xf32>
    %97 = vector.broadcast %96 : vector<2x1xf32> to vector<2x128xf32>
    %98 = arith.subf %94, %97 : vector<2x128xf32>
    %99 = math.exp %98 : vector<2x128xf32>
    %cst_45 = arith.constant dense<0.000000e+00> : vector<2xf32>
    %100 = vector.multi_reduction <add>, %99, %cst_45 [1] : vector<2x128xf32> to vector<2xf32>
    %101 = vector.shape_cast %100 : vector<2xf32> to vector<2x1xf32>
    %102 = math.log %101 : vector<2x1xf32>
    %103 = arith.addf %96, %102 : vector<2x1xf32>
    %104 = vector.broadcast %103 : vector<2x1xf32> to vector<2x128xf32>
    %105 = arith.subf %94, %104 : vector<2x128xf32>
    %c0_46 = arith.constant 0 : index
    %c0_47 = arith.constant 0 : index
    %c0_48 = arith.constant 0 : index
    %106 = vector.load %arg16[%c0_46, %c0_47, %c0_48] : memref<1x2x128xf32, #tpu.memory_space<vmem>>, vector<1x2x128xf32>
    %107 = vector.shape_cast %106 : vector<1x2x128xf32> to vector<2x128xf32>
    %108 = vector.shape_cast %105 : vector<2x128xf32> to vector<1x2x128xf32>
    tpu.vector_store %arg16[%c0_46, %c0_47, %c0_48], %108 {strides = array<i32>} : memref<1x2x128xf32, #tpu.memory_space<vmem>>, vector<1x2x128xf32>,
    %c0_49 = arith.constant 0 : index
    %c0_50 = arith.constant 0 : index
    %c0_51 = arith.constant 0 : index
    %109 = vector.load %arg17[%c0_49, %c0_50, %c0_51] : memref<1x2x128xf32, #tpu.memory_space<vmem>>, vector<1x2x128xf32>
    %110 = vector.shape_cast %109 : vector<1x2x128xf32> to vector<2x128xf32>
    %111 = vector.shape_cast %36 : vector<2x128xf32> to vector<1x2x128xf32>
    tpu.vector_store %arg17[%c0_49, %c0_50, %c0_51], %111 {strides = array<i32>} : memref<1x2x128xf32, #tpu.memory_space<vmem>>, vector<1x2x128xf32>,
    %c0_52 = arith.constant 0 : index
    %c0_53 = arith.constant 0 : index
    %c0_54 = arith.constant 0 : index
    %112 = vector.load %arg18[%c0_52, %c0_53, %c0_54] : memref<2x2x32xf32, #tpu.memory_space<vmem>>, vector<1x2x32xf32>
    %113 = vector.shape_cast %112 : vector<1x2x32xf32> to vector<2x32xf32>
    %114 = vector.shape_cast %64 : vector<2x32xf32> to vector<1x2x32xf32>
    tpu.vector_store %arg18[%c0_52, %c0_53, %c0_54], %114 {strides = array<i32>} : memref<2x2x32xf32, #tpu.memory_space<vmem>>, vector<1x2x32xf32>,
    %c1_55 = arith.constant 1 : index
    %c0_56 = arith.constant 0 : index
    %c0_57 = arith.constant 0 : index
    %115 = vector.load %arg18[%c1_55, %c0_56, %c0_57] : memref<2x2x32xf32, #tpu.memory_space<vmem>>, vector<1x2x32xf32>
    %116 = vector.shape_cast %115 : vector<1x2x32xf32> to vector<2x32xf32>
    %117 = vector.shape_cast %88 : vector<2x32xf32> to vector<1x2x32xf32>
    tpu.vector_store %arg18[%c1_55, %c0_56, %c0_57], %117 {strides = array<i32>} : memref<2x2x32xf32, #tpu.memory_space<vmem>>, vector<1x2x32xf32>,
    %118 = tpu.reduce_index %94 {axis = 1 : i32, kind = #tpu.reduction_kind<arg_max>} : vector<2x128xf32> -> vector<2xi32>
    %c0_58 = arith.constant 0 : index
    %c0_59 = arith.constant 0 : index
    %119 = vector.load %arg21[%c0_58, %c0_59] : memref<1x2xi32, #tpu.memory_space<vmem>>, vector<1x2xi32>
    %120 = vector.shape_cast %119 : vector<1x2xi32> to vector<2xi32>
    %121 = vector.shape_cast %118 : vector<2xi32> to vector<1x2xi32>
    tpu.vector_store %arg21[%c0_58, %c0_59], %121 {strides = array<i32>} : memref<1x2xi32, #tpu.memory_space<vmem>>, vector<1x2xi32>,
    %c0_60 = arith.constant 0 : index
    %c0_61 = arith.constant 0 : index
    %122 = vector.load %arg21[%c0_60, %c0_61] : memref<1x2xi32, #tpu.memory_space<vmem>>, vector<1x1xi32>
    %123 = vector.extract %122[0, 0] : i32 from vector<1x1xi32>
    %124 = arith.index_cast %123 : i32 to index
    %c0_62 = arith.constant 0 : index
    %125 = vector.load %arg3[%124, %c0_62] : memref<64x32xf32, #tpu.memory_space<vmem>>, vector<1x32xf32>
    %c0_63 = arith.constant 0 : index
    %c1_64 = arith.constant 1 : index
    %126 = vector.load %arg21[%c0_63, %c1_64] : memref<1x2xi32, #tpu.memory_space<vmem>>, vector<1x1xi32>
    %127 = vector.extract %126[0, 0] : i32 from vector<1x1xi32>
    %128 = arith.index_cast %127 : i32 to index
    %c0_65 = arith.constant 0 : index
    %129 = vector.load %arg3[%128, %c0_65] : memref<64x32xf32, #tpu.memory_space<vmem>>, vector<1x32xf32>
    %130 = tpu.concatenate %125, %129 in 0 : vector<1x32xf32>, vector<1x32xf32> -> vector<2x32xf32>
    %c0_66 = arith.constant 0 : index
    %c0_67 = arith.constant 0 : index
    %131 = vector.load %arg20[%c0_66, %c0_67] : memref<2x32xf32, #tpu.memory_space<vmem>>, vector<2x32xf32>
    tpu.vector_store %arg20[%c0_66, %c0_67], %130 {strides = array<i32>} : memref<2x32xf32, #tpu.memory_space<vmem>>, vector<2x32xf32>,
    return
  }
  func.func @transform_0(%arg0: i32) -> (i32, i32, i32) {
    %c0_i32 = arith.constant 0 : i32
    %c0_i32_0 = arith.constant 0 : i32
    %c0_i32_1 = arith.constant 0 : i32
    %c0_i32_2 = arith.constant 0 : i32
    return %c0_i32, %c0_i32_0, %c0_i32_1 : i32, i32, i32
  }
  func.func @transform_1(%arg0: i32) -> (i32, i32, i32) {
    %c0_i32 = arith.constant 0 : i32
    %c0_i32_0 = arith.constant 0 : i32
    %c0_i32_1 = arith.constant 0 : i32
    %c0_i32_2 = arith.constant 0 : i32
    return %c0_i32, %c0_i32_0, %c0_i32_1 : i32, i32, i32
  }
  func.func @transform_2(%arg0: i32) -> (i32, i32) {
    %c0_i32 = arith.constant 0 : i32
    %c0_i32_0 = arith.constant 0 : i32
    %c0_i32_1 = arith.constant 0 : i32
    return %c0_i32, %c0_i32_0 : i32, i32
  }
  func.func @transform_3(%arg0: i32) -> (i32, i32) {
    %c0_i32 = arith.constant 0 : i32
    %c0_i32_0 = arith.constant 0 : i32
    %c0_i32_1 = arith.constant 0 : i32
    return %c0_i32, %c0_i32_0 : i32, i32
  }
  func.func @transform_4(%arg0: i32) -> (i32, i32) {
    %c0_i32 = arith.constant 0 : i32
    %c0_i32_0 = arith.constant 0 : i32
    %c0_i32_1 = arith.constant 0 : i32
    return %c0_i32, %c0_i32_0 : i32, i32
  }
  func.func @transform_5(%arg0: i32) -> (i32, i32) {
    %c0_i32 = arith.constant 0 : i32
    %c0_i32_0 = arith.constant 0 : i32
    %c0_i32_1 = arith.constant 0 : i32
    return %c0_i32, %c0_i32_0 : i32, i32
  }
  func.func @transform_6(%arg0: i32) -> (i32, i32) {
    %c0_i32 = arith.constant 0 : i32
    %c0_i32_0 = arith.constant 0 : i32
    %c0_i32_1 = arith.constant 0 : i32
    return %c0_i32, %c0_i32_0 : i32, i32
  }
  func.func @transform_7(%arg0: i32) -> (i32, i32) {
    %c0_i32 = arith.constant 0 : i32
    %c0_i32_0 = arith.constant 0 : i32
    %c0_i32_1 = arith.constant 0 : i32
    return %c0_i32, %c0_i32_0 : i32, i32
  }
  func.func @transform_8(%arg0: i32) -> (i32, i32) {
    %c0_i32 = arith.constant 0 : i32
    %c0_i32_0 = arith.constant 0 : i32
    %c0_i32_1 = arith.constant 0 : i32
    return %c0_i32, %c0_i32_0 : i32, i32
  }
  func.func @transform_9(%arg0: i32) -> (i32, i32) {
    %c0_i32 = arith.constant 0 : i32
    %c0_i32_0 = arith.constant 0 : i32
    %c0_i32_1 = arith.constant 0 : i32
    return %c0_i32, %c0_i32_0 : i32, i32
  }
  func.func @transform_10(%arg0: i32) -> (i32, i32) {
    %c0_i32 = arith.constant 0 : i32
    %c0_i32_0 = arith.constant 0 : i32
    %c0_i32_1 = arith.constant 0 : i32
    return %c0_i32, %c0_i32_0 : i32, i32
  }
  func.func @transform_11(%arg0: i32) -> (i32, i32) {
    %c0_i32 = arith.constant 0 : i32
    %c0_i32_0 = arith.constant 0 : i32
    %c0_i32_1 = arith.constant 0 : i32
    return %c0_i32, %c0_i32_0 : i32, i32
  }
  func.func @transform_12(%arg0: i32) -> (i32, i32) {
    %c0_i32 = arith.constant 0 : i32
    %c0_i32_0 = arith.constant 0 : i32
    %c0_i32_1 = arith.constant 0 : i32
    return %c0_i32, %c0_i32_0 : i32, i32
  }
  func.func @transform_13(%arg0: i32) -> (i32, i32) {
    %c0_i32 = arith.constant 0 : i32
    %c0_i32_0 = arith.constant 0 : i32
    %c0_i32_1 = arith.constant 0 : i32
    return %c0_i32, %c0_i32_0 : i32, i32
  }
  func.func @transform_14(%arg0: i32) -> (i32, i32) {
    %c0_i32 = arith.constant 0 : i32
    %c0_i32_0 = arith.constant 0 : i32
    %c0_i32_1 = arith.constant 0 : i32
    return %c0_i32, %c0_i32_0 : i32, i32
  }
  func.func @transform_15(%arg0: i32) -> (i32, i32, i32) {
    %c0_i32 = arith.constant 0 : i32
    %c0_i32_0 = arith.constant 0 : i32
    %c0_i32_1 = arith.constant 0 : i32
    return %arg0, %c0_i32, %c0_i32_0 : i32, i32, i32
  }
  func.func @transform_16(%arg0: i32) -> (i32, i32, i32) {
    %c0_i32 = arith.constant 0 : i32
    %c0_i32_0 = arith.constant 0 : i32
    %c0_i32_1 = arith.constant 0 : i32
    return %arg0, %c0_i32, %c0_i32_0 : i32, i32, i32
  }
  func.func @transform_17(%arg0: i32) -> (i32, i32, i32) {
    %c0_i32 = arith.constant 0 : i32
    %c0_i32_0 = arith.constant 0 : i32
    %c0_i32_1 = arith.constant 0 : i32
    %c0_i32_2 = arith.constant 0 : i32
    return %c0_i32, %c0_i32_0, %c0_i32_1 : i32, i32, i32
  }
}

</mosaic_0001>

<llo_original>
// kernel: tpu_custom_call.1
$region0: #{tpu_custom_call.1}
  #allocation0 [shape = 'u32[]', space=smem, size = 0x4, offset = 0x4, fixed_abs, tag = 'smem constant byte address 0x4 - core index']
  #allocation1 [shape = 'u32[144,128]{1,0:T(1,128)}', space=vmem, size = 0x12000, scoped, tag = 'internal scratch']
  #allocation2 [shape = 'f32[2,128,32]{2,1,0:T(8,128)}', space=vmem, size = 0x20000, scoped, tag = 'scratch operand']
  #allocation3 [shape = 'f32[2,32]{1,0:T(2,128)}', space=vmem, size = 0x400, scoped, tag = 'scratch operand']
  #allocation4 [shape = 's32[1,2]{1,0:T(1,128)}', space=vmem, size = 0x200, scoped, tag = 'scratch operand']
  %s0 = inlined_call_operand.vmem [shape: f32[2,128,32], index: 0, kind: input, shape index: {}]
  %s1 = inlined_call_operand.vmem [shape: f32[2,2,32], index: 1, kind: input, shape index: {}]
  %s2 = inlined_call_operand.vmem [shape: f32[64,32], index: 2, kind: input, shape index: {}]
  %s3 = inlined_call_operand.vmem [shape: f32[1,128], index: 3, kind: input, shape index: {}]
  %s4 = inlined_call_operand.vmem [shape: bf16[32,32], index: 4, kind: input, shape index: {}]
  %s5 = inlined_call_operand.vmem [shape: f32[1,32], index: 5, kind: input, shape index: {}]
  %s6 = inlined_call_operand.vmem [shape: bf16[32,32], index: 6, kind: input, shape index: {}]
  %s7 = inlined_call_operand.vmem [shape: f32[1,32], index: 7, kind: input, shape index: {}]
  %s8 = inlined_call_operand.vmem [shape: f32[1,32], index: 8, kind: input, shape index: {}]
  %s9 = inlined_call_operand.vmem [shape: bf16[96,96], index: 9, kind: input, shape index: {}]
  %s10 = inlined_call_operand.vmem [shape: f32[1,96], index: 10, kind: input, shape index: {}]
  %s11 = inlined_call_operand.vmem [shape: bf16[64,96], index: 11, kind: input, shape index: {}]
  %s12 = inlined_call_operand.vmem [shape: f32[1,96], index: 12, kind: input, shape index: {}]
  %s13 = inlined_call_operand.vmem [shape: bf16[32,128], index: 13, kind: input, shape index: {}]
  %s14 = inlined_call_operand.vmem [shape: f32[1,128], index: 14, kind: input, shape index: {}]
  %s15 = inlined_call_operand.hbm [shape: f32[8,2,128], index: 15, kind: output, shape index: {0}]
  %s16 = inlined_call_operand.hbm [shape: f32[8,2,128], index: 16, kind: output, shape index: {1}]
  %s17 = inlined_call_operand.hbm [shape: f32[2,2,32], index: 17, kind: output, shape index: {2}]
  %18 = xla_tuple %s15, %s16, %s17
  %s19 = sld [smem:[#allocation0]]
  $region113: #{tpu_custom_call.1} parent=0
    _
  %s21 = ssub.s32 1, %s19
  %s22 = scalar_select 0, %s21, %s19
  $region1: #{tpu_custom_call.1} parent=0
    #allocation5 [shape = 'u8[2048]{0}', space=vmem, size = 0x800, scoped, tag = 'output window, operand 0']
    #allocation6 [shape = 's32[2]{0}', space=sflag, size = 0x8, scoped, tag = 'scoped memory for tpu_custom_call.1']
    #allocation7 [shape = 'u8[2048]{0}', space=vmem, size = 0x800, scoped, tag = 'output window, operand 1']
    #allocation8 [shape = 's32[2]{0}', space=sflag, size = 0x8, scoped, tag = 'scoped memory for tpu_custom_call.1']
    #allocation9 [shape = 'u8[2048]{0}', space=vmem, size = 0x800, scoped, tag = 'output window, operand 2, single buffered']
    %23 = vsyncpa [#allocation6], 0
    %s24 = scalar_lea.sflag [#allocation6], 1
    %25 = vsyncpa %s24, 0
    %26 = vsyncpa [#allocation8], 0
    %s27 = scalar_lea.sflag [#allocation8], 1
    %28 = vsyncpa %s27, 0
    loop: start=0, step=1, limit=10
    $region2: #{tpu_custom_call.1} parent=1 // loop_pre_header
      _
    $region3: #{tpu_custom_call.1} parent=1 // loop_header
      %s30 = sphi 0, %s34
      %p31 = scmp.ge.s32.totalorder %s30, 10
      %s38 = sphi 0, %s38
      %s40 = sphi 0, %s38
      %s41 = sphi 0, %s40
      %s55 = sphi 0, %s41
      %s59 = sphi 0, %s59
      %s61 = sphi 0, %s59
      %s62 = sphi 0, %s61
      %s76 = sphi 0, %s62
      %s80 = sphi 0, %s80
      %s82 = sphi 0, %s80
      %s83 = sphi 0, %s82
      %s97 = sphi 0, %s83
      %s101 = sphi 0, %s101
      %s103 = sphi 0, %s101
      %s104 = sphi 0, %s103
      %s118 = sphi 0, %s104
      %s122 = sphi 0, %s122
      %s124 = sphi 0, %s122
      %s125 = sphi 0, %s124
      %s139 = sphi 0, %s125
      %s143 = sphi 0, %s143
      %s145 = sphi 0, %s143
      %s146 = sphi 0, %s145
      %s160 = sphi 0, %s146
      %s164 = sphi 0, %s164
      %s166 = sphi 0, %s164
      %s167 = sphi 0, %s166
      %s181 = sphi 0, %s167
      %s185 = sphi 0, %s185
      %s187 = sphi 0, %s185
      %s188 = sphi 0, %s187
      %s202 = sphi 0, %s188
      %s206 = sphi 0, %s206
      %s208 = sphi 0, %s206
      %s209 = sphi 0, %s208
      %s223 = sphi 0, %s209
      %s227 = sphi 0, %s227
      %s229 = sphi 0, %s227
      %s230 = sphi 0, %s229
      %s244 = sphi 0, %s230
      %s248 = sphi 0, %s248
      %s250 = sphi 0, %s248
      %s251 = sphi 0, %s250
      %s265 = sphi 0, %s251
      %s269 = sphi 0, %s269
      %s271 = sphi 0, %s269
      %s272 = sphi 0, %s271
      %s286 = sphi 0, %s272
      %s290 = sphi 0, %s290
      %s292 = sphi 0, %s290
      %s293 = sphi 0, %s292
      %s307 = sphi 0, %s293
      %s311 = sphi 0, %s311
      %s313 = sphi 0, %s311
      %s314 = sphi 0, %s313
      %s328 = sphi 0, %s314
      %s332 = sphi 0, %s332
      %s334 = sphi 0, %s332
      %s335 = sphi 0, %s334
      %s349 = sphi 0, %s335
      %s355 = sphi 0, %s357
      %s358 = sphi 0, %s355
      %s359 = sphi 0, %s358
      %s375 = sphi 0, %s359
      %s381 = sphi 0, %s383
      %s384 = sphi 0, %s381
      %s385 = sphi 0, %s384
      %s401 = sphi 0, %s385
      %s405 = sphi 0, %s405
      %s407 = sphi 0, %s405
      %s408 = sphi 0, %s407
      %s422 = sphi 0, %s408
    $region4: #{tpu_custom_call.1} parent=1 // loop_header_branch
      %33 = sbr.rel (%p31) target = $region8
    $region5: #{tpu_custom_call.1} parent=1 // loop_body
      %s35 = ssub.s32 %s30, 1
      %s36 = ssub.s32 %s30, 2
      %s37 = sadd.s32 %s30, 1
      %s39 = sadd.s32 %s38, 1
      %p42 = scmp.eq.s32.totalorder %s30, 7
      %p43 = scmp.ne.s32.totalorder %s38, %s40
      %p44 = scmp.eq.s32.totalorder %s30, 0
      %p45 = por %p43, %p44
      %p46 = scmp.ne.s32.totalorder %s38, %s40
      %p47 = scmp.eq.s32.totalorder %s35, 7
      %p48 = por %p46, %p47
      %p49 = scmp.ne.s32.totalorder %s40, %s41
      %p50 = scmp.eq.s32.totalorder %s35, 0
      %p51 = por %p49, %p50
      %p52 = scmp.ne.s32.totalorder %s40, %s41
      %p53 = scmp.eq.s32.totalorder %s36, 7
      %p54 = por %p52, %p53
      %p56 = scmp.ne.s32.totalorder %s41, %s55
      %p57 = scmp.eq.s32.totalorder %s36, 0
      %p58 = por %p56, %p57
      %s60 = sadd.s32 %s59, 1
      %p63 = scmp.eq.s32.totalorder %s30, 7
      %p64 = scmp.ne.s32.totalorder %s59, %s61
      %p65 = scmp.eq.s32.totalorder %s30, 0
      %p66 = por %p64, %p65
      %p67 = scmp.ne.s32.totalorder %s59, %s61
      %p68 = scmp.eq.s32.totalorder %s35, 7
      %p69 = por %p67, %p68
      %p70 = scmp.ne.s32.totalorder %s61, %s62
      %p71 = scmp.eq.s32.totalorder %s35, 0
      %p72 = por %p70, %p71
      %p73 = scmp.ne.s32.totalorder %s61, %s62
      %p74 = scmp.eq.s32.totalorder %s36, 7
      %p75 = por %p73, %p74
      %p77 = scmp.ne.s32.totalorder %s62, %s76
      %p78 = scmp.eq.s32.totalorder %s36, 0
      %p79 = por %p77, %p78
      %s81 = sadd.s32 %s80, 1
      %p84 = scmp.eq.s32.totalorder %s30, 7
      %p85 = scmp.ne.s32.totalorder %s80, %s82
      %p86 = scmp.eq.s32.totalorder %s30, 0
      %p87 = por %p85, %p86
      %p88 = scmp.ne.s32.totalorder %s80, %s82
      %p89 = scmp.eq.s32.totalorder %s35, 7
      %p90 = por %p88, %p89
      %p91 = scmp.ne.s32.totalorder %s82, %s83
      %p92 = scmp.eq.s32.totalorder %s35, 0
      %p93 = por %p91, %p92
      %p94 = scmp.ne.s32.totalorder %s82, %s83
      %p95 = scmp.eq.s32.totalorder %s36, 7
      %p96 = por %p94, %p95
      %p98 = scmp.ne.s32.totalorder %s83, %s97
      %p99 = scmp.eq.s32.totalorder %s36, 0
      %p100 = por %p98, %p99
      %s102 = sadd.s32 %s101, 1
      %p105 = scmp.eq.s32.totalorder %s30, 7
      %p106 = scmp.ne.s32.totalorder %s101, %s103
      %p107 = scmp.eq.s32.totalorder %s30, 0
      %p108 = por %p106, %p107
      %p109 = scmp.ne.s32.totalorder %s101, %s103
      %p110 = scmp.eq.s32.totalorder %s35, 7
      %p111 = por %p109, %p110
      %p112 = scmp.ne.s32.totalorder %s103, %s104
      %p113 = scmp.eq.s32.totalorder %s35, 0
      %p114 = por %p112, %p113
      %p115 = scmp.ne.s32.totalorder %s103, %s104
      %p116 = scmp.eq.s32.totalorder %s36, 7
      %p117 = por %p115, %p116
      %p119 = scmp.ne.s32.totalorder %s104, %s118
      %p120 = scmp.eq.s32.totalorder %s36, 0
      %p121 = por %p119, %p120
      %s123 = sadd.s32 %s122, 1
      %p126 = scmp.eq.s32.totalorder %s30, 7
      %p127 = scmp.ne.s32.totalorder %s122, %s124
      %p128 = scmp.eq.s32.totalorder %s30, 0
      %p129 = por %p127, %p128
      %p130 = scmp.ne.s32.totalorder %s122, %s124
      %p131 = scmp.eq.s32.totalorder %s35, 7
      %p132 = por %p130, %p131
      %p133 = scmp.ne.s32.totalorder %s124, %s125
      %p134 = scmp.eq.s32.totalorder %s35, 0
      %p135 = por %p133, %p134
      %p136 = scmp.ne.s32.totalorder %s124, %s125
      %p137 = scmp.eq.s32.totalorder %s36, 7
      %p138 = por %p136, %p137
      %p140 = scmp.ne.s32.totalorder %s125, %s139
      %p141 = scmp.eq.s32.totalorder %s36, 0
      %p142 = por %p140, %p141
      %s144 = sadd.s32 %s143, 1
      %p147 = scmp.eq.s32.totalorder %s30, 7
      %p148 = scmp.ne.s32.totalorder %s143, %s145
      %p149 = scmp.eq.s32.totalorder %s30, 0
      %p150 = por %p148, %p149
      %p151 = scmp.ne.s32.totalorder %s143, %s145
      %p152 = scmp.eq.s32.totalorder %s35, 7
      %p153 = por %p151, %p152
      %p154 = scmp.ne.s32.totalorder %s145, %s146
      %p155 = scmp.eq.s32.totalorder %s35, 0
      %p156 = por %p154, %p155
      %p157 = scmp.ne.s32.totalorder %s145, %s146
      %p158 = scmp.eq.s32.totalorder %s36, 7
      %p159 = por %p157, %p158
      %p161 = scmp.ne.s32.totalorder %s146, %s160
      %p162 = scmp.eq.s32.totalorder %s36, 0
      %p163 = por %p161, %p162
      %s165 = sadd.s32 %s164, 1
      %p168 = scmp.eq.s32.totalorder %s30, 7
      %p169 = scmp.ne.s32.totalorder %s164, %s166
      %p170 = scmp.eq.s32.totalorder %s30, 0
      %p171 = por %p169, %p170
      %p172 = scmp.ne.s32.totalorder %s164, %s166
      %p173 = scmp.eq.s32.totalorder %s35, 7
      %p174 = por %p172, %p173
      %p175 = scmp.ne.s32.totalorder %s166, %s167
      %p176 = scmp.eq.s32.totalorder %s35, 0
      %p177 = por %p175, %p176
      %p178 = scmp.ne.s32.totalorder %s166, %s167
      %p179 = scmp.eq.s32.totalorder %s36, 7
      %p180 = por %p178, %p179
      %p182 = scmp.ne.s32.totalorder %s167, %s181
      %p183 = scmp.eq.s32.totalorder %s36, 0
      %p184 = por %p182, %p183
      %s186 = sadd.s32 %s185, 1
      %p189 = scmp.eq.s32.totalorder %s30, 7
      %p190 = scmp.ne.s32.totalorder %s185, %s187
      %p191 = scmp.eq.s32.totalorder %s30, 0
      %p192 = por %p190, %p191
      %p193 = scmp.ne.s32.totalorder %s185, %s187
      %p194 = scmp.eq.s32.totalorder %s35, 7
      %p195 = por %p193, %p194
      %p196 = scmp.ne.s32.totalorder %s187, %s188
      %p197 = scmp.eq.s32.totalorder %s35, 0
      %p198 = por %p196, %p197
      %p199 = scmp.ne.s32.totalorder %s187, %s188
      %p200 = scmp.eq.s32.totalorder %s36, 7
      %p201 = por %p199, %p200
      %p203 = scmp.ne.s32.totalorder %s188, %s202
      %p204 = scmp.eq.s32.totalorder %s36, 0
      %p205 = por %p203, %p204
      %s207 = sadd.s32 %s206, 1
      %p210 = scmp.eq.s32.totalorder %s30, 7
      %p211 = scmp.ne.s32.totalorder %s206, %s208
      %p212 = scmp.eq.s32.totalorder %s30, 0
      %p213 = por %p211, %p212
      %p214 = scmp.ne.s32.totalorder %s206, %s208
      %p215 = scmp.eq.s32.totalorder %s35, 7
      %p216 = por %p214, %p215
      %p217 = scmp.ne.s32.totalorder %s208, %s209
      %p218 = scmp.eq.s32.totalorder %s35, 0
      %p219 = por %p217, %p218
      %p220 = scmp.ne.s32.totalorder %s208, %s209
      %p221 = scmp.eq.s32.totalorder %s36, 7
      %p222 = por %p220, %p221
      %p224 = scmp.ne.s32.totalorder %s209, %s223
      %p225 = scmp.eq.s32.totalorder %s36, 0
      %p226 = por %p224, %p225
      %s228 = sadd.s32 %s227, 1
      %p231 = scmp.eq.s32.totalorder %s30, 7
      %p232 = scmp.ne.s32.totalorder %s227, %s229
      %p233 = scmp.eq.s32.totalorder %s30, 0
      %p234 = por %p232, %p233
      %p235 = scmp.ne.s32.totalorder %s227, %s229
      %p236 = scmp.eq.s32.totalorder %s35, 7
      %p237 = por %p235, %p236
      %p238 = scmp.ne.s32.totalorder %s229, %s230
      %p239 = scmp.eq.s32.totalorder %s35, 0
      %p240 = por %p238, %p239
      %p241 = scmp.ne.s32.totalorder %s229, %s230
      %p242 = scmp.eq.s32.totalorder %s36, 7
      %p243 = por %p241, %p242
      %p245 = scmp.ne.s32.totalorder %s230, %s244
      %p246 = scmp.eq.s32.totalorder %s36, 0
      %p247 = por %p245, %p246
      %s249 = sadd.s32 %s248, 1
      %p252 = scmp.eq.s32.totalorder %s30, 7
      %p253 = scmp.ne.s32.totalorder %s248, %s250
      %p254 = scmp.eq.s32.totalorder %s30, 0
      %p255 = por %p253, %p254
      %p256 = scmp.ne.s32.totalorder %s248, %s250
      %p257 = scmp.eq.s32.totalorder %s35, 7
      %p258 = por %p256, %p257
      %p259 = scmp.ne.s32.totalorder %s250, %s251
      %p260 = scmp.eq.s32.totalorder %s35, 0
      %p261 = por %p259, %p260
      %p262 = scmp.ne.s32.totalorder %s250, %s251
      %p263 = scmp.eq.s32.totalorder %s36, 7
      %p264 = por %p262, %p263
      %p266 = scmp.ne.s32.totalorder %s251, %s265
      %p267 = scmp.eq.s32.totalorder %s36, 0
      %p268 = por %p266, %p267
      %s270 = sadd.s32 %s269, 1
      %p273 = scmp.eq.s32.totalorder %s30, 7
      %p274 = scmp.ne.s32.totalorder %s269, %s271
      %p275 = scmp.eq.s32.totalorder %s30, 0
      %p276 = por %p274, %p275
      %p277 = scmp.ne.s32.totalorder %s269, %s271
      %p278 = scmp.eq.s32.totalorder %s35, 7
      %p279 = por %p277, %p278
      %p280 = scmp.ne.s32.totalorder %s271, %s272
      %p281 = scmp.eq.s32.totalorder %s35, 0
      %p282 = por %p280, %p281
      %p283 = scmp.ne.s32.totalorder %s271, %s272
      %p284 = scmp.eq.s32.totalorder %s36, 7
      %p285 = por %p283, %p284
      %p287 = scmp.ne.s32.totalorder %s272, %s286
      %p288 = scmp.eq.s32.totalorder %s36, 0
      %p289 = por %p287, %p288
      %s291 = sadd.s32 %s290, 1
      %p294 = scmp.eq.s32.totalorder %s30, 7
      %p295 = scmp.ne.s32.totalorder %s290, %s292
      %p296 = scmp.eq.s32.totalorder %s30, 0
      %p297 = por %p295, %p296
      %p298 = scmp.ne.s32.totalorder %s290, %s292
      %p299 = scmp.eq.s32.totalorder %s35, 7
      %p300 = por %p298, %p299
      %p301 = scmp.ne.s32.totalorder %s292, %s293
      %p302 = scmp.eq.s32.totalorder %s35, 0
      %p303 = por %p301, %p302
      %p304 = scmp.ne.s32.totalorder %s292, %s293
      %p305 = scmp.eq.s32.totalorder %s36, 7
      %p306 = por %p304, %p305
      %p308 = scmp.ne.s32.totalorder %s293, %s307
      %p309 = scmp.eq.s32.totalorder %s36, 0
      %p310 = por %p308, %p309
      %s312 = sadd.s32 %s311, 1
      %p315 = scmp.eq.s32.totalorder %s30, 7
      %p316 = scmp.ne.s32.totalorder %s311, %s313
      %p317 = scmp.eq.s32.totalorder %s30, 0
      %p318 = por %p316, %p317
      %p319 = scmp.ne.s32.totalorder %s311, %s313
      %p320 = scmp.eq.s32.totalorder %s35, 7
      %p321 = por %p319, %p320
      %p322 = scmp.ne.s32.totalorder %s313, %s314
      %p323 = scmp.eq.s32.totalorder %s35, 0
      %p324 = por %p322, %p323
      %p325 = scmp.ne.s32.totalorder %s313, %s314
      %p326 = scmp.eq.s32.totalorder %s36, 7
      %p327 = por %p325, %p326
      %p329 = scmp.ne.s32.totalorder %s314, %s328
      %p330 = scmp.eq.s32.totalorder %s36, 0
      %p331 = por %p329, %p330
      %s333 = sadd.s32 %s332, 1
      %p336 = scmp.eq.s32.totalorder %s30, 7
      %p337 = scmp.ne.s32.totalorder %s332, %s334
      %p338 = scmp.eq.s32.totalorder %s30, 0
      %p339 = por %p337, %p338
      %p340 = scmp.ne.s32.totalorder %s332, %s334
      %p341 = scmp.eq.s32.totalorder %s35, 7
      %p342 = por %p340, %p341
      %p343 = scmp.ne.s32.totalorder %s334, %s335
      %p344 = scmp.eq.s32.totalorder %s35, 0
      %p345 = por %p343, %p344
      %p346 = scmp.ne.s32.totalorder %s334, %s335
      %p347 = scmp.eq.s32.totalorder %s36, 7
      %p348 = por %p346, %p347
      %p350 = scmp.ne.s32.totalorder %s335, %s349
      %p351 = scmp.eq.s32.totalorder %s36, 0
      %p352 = por %p350, %p351
      %s353 = ssub.s32 %s30, %s37
      %p354 = scmp.eq.s32.totalorder %s353, 0
      %s356 = sadd.s32 %s355, 1
      %s357 = scalar_select %p354, %s355, %s356
      %p360 = pneg %p354
      %p361 = scmp.eq.s32.totalorder %s30, 7
      %p362 = por %p360, %p361
      %p363 = scmp.ne.s32.totalorder %s355, %s358
      %p364 = scmp.eq.s32.totalorder %s30, 0
      %p365 = por %p363, %p364
      %p366 = scmp.ne.s32.totalorder %s355, %s358
      %p367 = scmp.eq.s32.totalorder %s35, 7
      %p368 = por %p366, %p367
      %p369 = scmp.ne.s32.totalorder %s358, %s359
      %p370 = scmp.eq.s32.totalorder %s35, 0
      %p371 = por %p369, %p370
      %p372 = scmp.ne.s32.totalorder %s358, %s359
      %p373 = scmp.eq.s32.totalorder %s36, 7
      %p374 = por %p372, %p373
      %p376 = scmp.ne.s32.totalorder %s359, %s375
      %p377 = scmp.eq.s32.totalorder %s36, 0
      %p378 = por %p376, %p377
      %s379 = ssub.s32 %s30, %s37
      %p380 = scmp.eq.s32.totalorder %s379, 0
      %s382 = sadd.s32 %s381, 1
      %s383 = scalar_select %p380, %s381, %s382
      %p386 = pneg %p380
      %p387 = scmp.eq.s32.totalorder %s30, 7
      %p388 = por %p386, %p387
      %p389 = scmp.ne.s32.totalorder %s381, %s384
      %p390 = scmp.eq.s32.totalorder %s30, 0
      %p391 = por %p389, %p390
      %p392 = scmp.ne.s32.totalorder %s381, %s384
      %p393 = scmp.eq.s32.totalorder %s35, 7
      %p394 = por %p392, %p393
      %p395 = scmp.ne.s32.totalorder %s384, %s385
      %p396 = scmp.eq.s32.totalorder %s35, 0
      %p397 = por %p395, %p396
      %p398 = scmp.ne.s32.totalorder %s384, %s385
      %p399 = scmp.eq.s32.totalorder %s36, 7
      %p400 = por %p398, %p399
      %p402 = scmp.ne.s32.totalorder %s385, %s401
      %p403 = scmp.eq.s32.totalorder %s36, 0
      %p404 = por %p402, %p403
      %s406 = sadd.s32 %s405, 1
      %p409 = scmp.eq.s32.totalorder %s30, 7
      %p410 = scmp.ne.s32.totalorder %s405, %s407
      %p411 = scmp.eq.s32.totalorder %s30, 0
      %p412 = por %p410, %p411
      %p413 = scmp.ne.s32.totalorder %s405, %s407
      %p414 = scmp.eq.s32.totalorder %s35, 7
      %p415 = por %p413, %p414
      %p416 = scmp.ne.s32.totalorder %s407, %s408
      %p417 = scmp.eq.s32.totalorder %s35, 0
      %p418 = por %p416, %p417
      %p419 = scmp.ne.s32.totalorder %s407, %s408
      %p420 = scmp.eq.s32.totalorder %s36, 7
      %p421 = por %p419, %p420
      %p423 = scmp.ne.s32.totalorder %s408, %s422
      %p424 = scmp.eq.s32.totalorder %s36, 0
      %p425 = por %p423, %p424
      %p426 = scmp.le.s32.totalorder 1, %s30
      %p427 = scmp.lt.s32.totalorder %s30, 9
      %p428 = pnand %p426, %p427
      %p429 = pneg %p428
      // Predicated region
      $region9: #{tpu_custom_call.1} parent=5 // pred_check
        _
      $region10: #{tpu_custom_call.1} parent=5 // pred_check_branch
        %431 = sbr.rel (%p428) target = $region12
      $region11: #{tpu_custom_call.1} parent=5 // pred_region
        %s432 = ssub.s32 %s30, 1
        // Predicated region
        $region13: #{tpu_custom_call.1} parent=11 // pred_check
          %p433 = pneg %p51
        $region14: #{tpu_custom_call.1} parent=11 // pred_check_branch
          %435 = sbr.rel (%p433) target = $region16
        $region15: #{tpu_custom_call.1} parent=11 // pred_region
          _
        $region16: #{tpu_custom_call.1} parent=11 // pred_fallthru
          _
        // Predicated region
        $region17: #{tpu_custom_call.1} parent=11 // pred_check
          %p436 = pneg %p72
        $region18: #{tpu_custom_call.1} parent=11 // pred_check_branch
          %438 = sbr.rel (%p436) target = $region20
        $region19: #{tpu_custom_call.1} parent=11 // pred_region
          _
        $region20: #{tpu_custom_call.1} parent=11 // pred_fallthru
          _
        // Predicated region
        $region21: #{tpu_custom_call.1} parent=11 // pred_check
          %p439 = pneg %p93
        $region22: #{tpu_custom_call.1} parent=11 // pred_check_branch
          %441 = sbr.rel (%p439) target = $region24
        $region23: #{tpu_custom_call.1} parent=11 // pred_region
          _
        $region24: #{tpu_custom_call.1} parent=11 // pred_fallthru
          _
        // Predicated region
        $region25: #{tpu_custom_call.1} parent=11 // pred_check
          %p442 = pneg %p114
        $region26: #{tpu_custom_call.1} parent=11 // pred_check_branch
          %444 = sbr.rel (%p442) target = $region28
        $region27: #{tpu_custom_call.1} parent=11 // pred_region
          _
        $region28: #{tpu_custom_call.1} parent=11 // pred_fallthru
          _
        // Predicated region
        $region29: #{tpu_custom_call.1} parent=11 // pred_check
          %p445 = pneg %p135
        $region30: #{tpu_custom_call.1} parent=11 // pred_check_branch
          %447 = sbr.rel (%p445) target = $region32
        $region31: #{tpu_custom_call.1} parent=11 // pred_region
          _
        $region32: #{tpu_custom_call.1} parent=11 // pred_fallthru
          _
        // Predicated region
        $region33: #{tpu_custom_call.1} parent=11 // pred_check
          %p448 = pneg %p156
        $region34: #{tpu_custom_call.1} parent=11 // pred_check_branch
          %450 = sbr.rel (%p448) target = $region36
        $region35: #{tpu_custom_call.1} parent=11 // pred_region
          _
        $region36: #{tpu_custom_call.1} parent=11 // pred_fallthru
          _
        // Predicated region
        $region37: #{tpu_custom_call.1} parent=11 // pred_check
          %p451 = pneg %p177
        $region38: #{tpu_custom_call.1} parent=11 // pred_check_branch
          %453 = sbr.rel (%p451) target = $region40
        $region39: #{tpu_custom_call.1} parent=11 // pred_region
          _
        $region40: #{tpu_custom_call.1} parent=11 // pred_fallthru
          _
        // Predicated region
        $region41: #{tpu_custom_call.1} parent=11 // pred_check
          %p454 = pneg %p198
        $region42: #{tpu_custom_call.1} parent=11 // pred_check_branch
          %456 = sbr.rel (%p454) target = $region44
        $region43: #{tpu_custom_call.1} parent=11 // pred_region
          _
        $region44: #{tpu_custom_call.1} parent=11 // pred_fallthru
          _
        // Predicated region
        $region45: #{tpu_custom_call.1} parent=11 // pred_check
          %p457 = pneg %p219
        $region46: #{tpu_custom_call.1} parent=11 // pred_check_branch
          %459 = sbr.rel (%p457) target = $region48
        $region47: #{tpu_custom_call.1} parent=11 // pred_region
          _
        $region48: #{tpu_custom_call.1} parent=11 // pred_fallthru
          _
        // Predicated region
        $region49: #{tpu_custom_call.1} parent=11 // pred_check
          %p460 = pneg %p240
        $region50: #{tpu_custom_call.1} parent=11 // pred_check_branch
          %462 = sbr.rel (%p460) target = $region52
        $region51: #{tpu_custom_call.1} parent=11 // pred_region
          _
        $region52: #{tpu_custom_call.1} parent=11 // pred_fallthru
          _
        // Predicated region
        $region53: #{tpu_custom_call.1} parent=11 // pred_check
          %p463 = pneg %p261
        $region54: #{tpu_custom_call.1} parent=11 // pred_check_branch
          %465 = sbr.rel (%p463) target = $region56
        $region55: #{tpu_custom_call.1} parent=11 // pred_region
          _
        $region56: #{tpu_custom_call.1} parent=11 // pred_fallthru
          _
        // Predicated region
        $region57: #{tpu_custom_call.1} parent=11 // pred_check
          %p466 = pneg %p282
        $region58: #{tpu_custom_call.1} parent=11 // pred_check_branch
          %468 = sbr.rel (%p466) target = $region60
        $region59: #{tpu_custom_call.1} parent=11 // pred_region
          _
        $region60: #{tpu_custom_call.1} parent=11 // pred_fallthru
          _
        // Predicated region
        $region61: #{tpu_custom_call.1} parent=11 // pred_check
          %p469 = pneg %p303
        $region62: #{tpu_custom_call.1} parent=11 // pred_check_branch
          %471 = sbr.rel (%p469) target = $region64
        $region63: #{tpu_custom_call.1} parent=11 // pred_region
          _
        $region64: #{tpu_custom_call.1} parent=11 // pred_fallthru
          _
        // Predicated region
        $region65: #{tpu_custom_call.1} parent=11 // pred_check
          %p472 = pneg %p324
        $region66: #{tpu_custom_call.1} parent=11 // pred_check_branch
          %474 = sbr.rel (%p472) target = $region68
        $region67: #{tpu_custom_call.1} parent=11 // pred_region
          _
        $region68: #{tpu_custom_call.1} parent=11 // pred_fallthru
          _
        // Predicated region
        $region69: #{tpu_custom_call.1} parent=11 // pred_check
          %p475 = pneg %p345
        $region70: #{tpu_custom_call.1} parent=11 // pred_check_branch
          %477 = sbr.rel (%p475) target = $region72
        $region71: #{tpu_custom_call.1} parent=11 // pred_region
          _
        $region72: #{tpu_custom_call.1} parent=11 // pred_fallthru
          _
      $region12: #{tpu_custom_call.1} parent=5 // pred_fallthru
        _
      %p478 = scmp.lt.s32.totalorder %s30, 8
      // Predicated region
      $region73: #{tpu_custom_call.1} parent=5 // pred_check
        %p479 = pneg %p478
      $region74: #{tpu_custom_call.1} parent=5 // pred_check_branch
        %481 = sbr.rel (%p479) target = $region76
      $region75: #{tpu_custom_call.1} parent=5 // pred_region
        _
      $region76: #{tpu_custom_call.1} parent=5 // pred_fallthru
        _
      %p482 = scmp.le.s32.totalorder 1, %s30
      %p483 = scmp.lt.s32.totalorder %s30, 9
      %p484 = pnand %p482, %p483
      %p485 = pneg %p484
      // Predicated region
      $region77: #{tpu_custom_call.1} parent=5 // pred_check
        _
      $region78: #{tpu_custom_call.1} parent=5 // pred_check_branch
        %487 = sbr.rel (%p484) target = $region80
      $region79: #{tpu_custom_call.1} parent=5 // pred_region
        %s488 = ssub.s32 %s30, 1
        %p489 = pneg %p51
        %p490 = pneg %p48
        %p491 = pneg %p72
        %p492 = pneg %p69
        %p493 = pneg %p93
        %p494 = pneg %p90
        %p495 = pneg %p114
        %p496 = pneg %p111
        %p497 = pneg %p135
        %p498 = pneg %p132
        %p499 = pneg %p156
        %p500 = pneg %p153
        %p501 = pneg %p177
        %p502 = pneg %p174
        %p503 = pneg %p198
        %p504 = pneg %p195
        %p505 = pneg %p219
        %p506 = pneg %p216
        %p507 = pneg %p240
        %p508 = pneg %p237
        %p509 = pneg %p261
        %p510 = pneg %p258
        %p511 = pneg %p282
        %p512 = pneg %p279
        %p513 = pneg %p303
        %p514 = pneg %p300
        %p515 = pneg %p324
        %p516 = pneg %p321
        %p517 = pneg %p345
        %p518 = pneg %p342
        %p519 = pneg %p371
        %p520 = pneg %p368
        %s521 = sand.u32 %s358, 1
        %s522 = scalar_lea.sflag [#allocation6], %s521
        %s523 = sand.u32 %s358, 1
        %s524 = smul.addr %s523, 2
        %s525 = scalar_lea.vmem [#allocation5], %s524
        %p526 = pneg %p397
        %p527 = pneg %p394
        %s528 = sand.u32 %s35, 1
        %s529 = scalar_lea.sflag [#allocation8], %s528
        %s530 = sand.u32 %s384, 1
        %s531 = smul.addr %s530, 2
        %s532 = scalar_lea.vmem [#allocation7], %s531
        %p533 = pneg %p418
        %p534 = pneg %p415
        %p535 = scmp.eq.s32.totalorder %s35, 0
        // Predicated region
        $region81: #{tpu_custom_call.1} parent=79 // pred_check
          %p536 = pneg %p535
        $region82: #{tpu_custom_call.1} parent=79 // pred_check_branch
          %538 = sbr.rel (%p536) target = $region84
        $region83: #{tpu_custom_call.1} parent=79 // pred_region
          %v539 = vld [vmem:[%s0] sm:$0xff]
          %v540 = vld [vmem:[%s0 + $0x8] sm:$0xff]
          %v541 = vld [vmem:[%s0 + $0x10] sm:$0xff]
          %v542 = vld [vmem:[%s0 + $0x18] sm:$0xff]
          %v543 = vld [vmem:[%s0 + $0x20] sm:$0xff]
          %v544 = vld [vmem:[%s0 + $0x28] sm:$0xff]
          %v545 = vld [vmem:[%s0 + $0x30] sm:$0xff]
          %v546 = vld [vmem:[%s0 + $0x38] sm:$0xff]
          %v547 = vld [vmem:[%s0 + $0x40] sm:$0xff]
          %v548 = vld [vmem:[%s0 + $0x48] sm:$0xff]
          %v549 = vld [vmem:[%s0 + $0x50] sm:$0xff]
          %v550 = vld [vmem:[%s0 + $0x58] sm:$0xff]
          %v551 = vld [vmem:[%s0 + $0x60] sm:$0xff]
          %v552 = vld [vmem:[%s0 + $0x68] sm:$0xff]
          %v553 = vld [vmem:[%s0 + $0x70] sm:$0xff]
          %v554 = vld [vmem:[%s0 + $0x78] sm:$0xff]
          %v555 = vld [vmem:[%s0 + $0x80] sm:$0xff]
          %v556 = vld [vmem:[%s0 + $0x88] sm:$0xff]
          %v557 = vld [vmem:[%s0 + $0x90] sm:$0xff]
          %v558 = vld [vmem:[%s0 + $0x98] sm:$0xff]
          %v559 = vld [vmem:[%s0 + $0xa0] sm:$0xff]
          %v560 = vld [vmem:[%s0 + $0xa8] sm:$0xff]
          %v561 = vld [vmem:[%s0 + $0xb0] sm:$0xff]
          %v562 = vld [vmem:[%s0 + $0xb8] sm:$0xff]
          %v563 = vld [vmem:[%s0 + $0xc0] sm:$0xff]
          %v564 = vld [vmem:[%s0 + $0xc8] sm:$0xff]
          %v565 = vld [vmem:[%s0 + $0xd0] sm:$0xff]
          %v566 = vld [vmem:[%s0 + $0xd8] sm:$0xff]
          %v567 = vld [vmem:[%s0 + $0xe0] sm:$0xff]
          %v568 = vld [vmem:[%s0 + $0xe8] sm:$0xff]
          %v569 = vld [vmem:[%s0 + $0xf0] sm:$0xff]
          %v570 = vld [vmem:[%s0 + $0xf8] sm:$0xff]
          %v571 = vld [vmem:[%s6] sm:$0xf]
          %v572 = vld [vmem:[%s6 + $0x4] sm:$0xf]
          %v573 = vld [vmem:[%s6 + $0x8] sm:$0xf]
          %v574 = vld [vmem:[%s6 + $0xc] sm:$0xf]
          %v575 = vunpack.c.l.bf16 %v571
          %v576 = vunpack.c.l.bf16 %v572
          %v577 = vunpack.c.l.bf16 %v573
          %v578 = vunpack.c.l.bf16 %v574
          %vm579 = vcmask 261120
          %v581 = vsel %vm579, %v539, 0
          %v584 = vsel %vm579, %v540, 0
          %v587 = vsel %vm579, %v541, 0
          %v590 = vsel %vm579, %v542, 0
          %v593 = vsel %vm579, %v543, 0
          %v596 = vsel %vm579, %v544, 0
          %v599 = vsel %vm579, %v545, 0
          %v602 = vsel %vm579, %v546, 0
          %v605 = vsel %vm579, %v547, 0
          %v608 = vsel %vm579, %v548, 0
          %v611 = vsel %vm579, %v549, 0
          %v614 = vsel %vm579, %v550, 0
          %v617 = vsel %vm579, %v551, 0
          %v620 = vsel %vm579, %v552, 0
          %v623 = vsel %vm579, %v553, 0
          %v626 = vsel %vm579, %v554, 0
          %v629 = vsel %vm579, %v555, 0
          %v632 = vsel %vm579, %v556, 0
          %v635 = vsel %vm579, %v557, 0
          %v638 = vsel %vm579, %v558, 0
          %v641 = vsel %vm579, %v559, 0
          %v644 = vsel %vm579, %v560, 0
          %v647 = vsel %vm579, %v561, 0
          %v650 = vsel %vm579, %v562, 0
          %v653 = vsel %vm579, %v563, 0
          %v656 = vsel %vm579, %v564, 0
          %v659 = vsel %vm579, %v565, 0
          %v662 = vsel %vm579, %v566, 0
          %v665 = vsel %vm579, %v567, 0
          %v668 = vsel %vm579, %v568, 0
          %v671 = vsel %vm579, %v569, 0
          %v674 = vsel %vm579, %v570, 0
          %676 = vmatprep.subr.mxu0 0.0
          %677 = vmatpush1.msra.mxu0 %v575
          %678 = vmatprep.subr.mxu0 0.0
          %679 = vmatpush1.msra.mxu0 %v576
          %680 = vmatprep.subr.mxu0 0.0
          %681 = vmatpush1.msra.mxu0 %v577
          %682 = vmatprep.subr.mxu0 0.0
          %683 = vmatpush1.msra.mxu0 %v578
          %684 = vmatprep.subr.mxu0 0.0
          %685 = vmatpush1.msra.mxu0 0.0
          %686 = vmatprep.subr.mxu0 0.0
          %687 = vmatpush1.msra.mxu0 0.0
          %688 = vmatprep.subr.mxu0 0.0
          %689 = vmatpush1.msra.mxu0 0.0
          %690 = vmatprep.subr.mxu0 0.0
          %691 = vmatpush1.msra.mxu0 0.0
          %692 = vmatprep.subr.mxu0 0.0
          %693 = vmatpush1.msra.mxu0 0.0
          %694 = vmatprep.subr.mxu0 0.0
          %695 = vmatpush1.msra.mxu0 0.0
          %696 = vmatprep.subr.mxu0 0.0
          %697 = vmatpush1.msra.mxu0 0.0
          %698 = vmatprep.subr.mxu0 0.0
          %699 = vmatpush1.msra.mxu0 0.0
          %700 = vmatprep.subr.mxu0 0.0
          %701 = vmatpush1.msra.mxu0 0.0
          %702 = vmatprep.subr.mxu0 0.0
          %703 = vmatpush1.msra.mxu0 0.0
          %704 = vmatprep.subr.mxu0 0.0
          %705 = vmatpush1.msra.mxu0 0.0
          %706 = vmatprep.subr.mxu0 0.0
          %707 = vmatpush1.msra.mxu0 0.0
          %708 = vmatprep.subr.mxu0 0.0
          %709 = vmatpush1.msra.mxu0 0.0
          %710 = vmatprep.subr.mxu0 0.0
          %711 = vmatpush1.msra.mxu0 0.0
          %712 = vmatprep.subr.mxu0 0.0
          %713 = vmatpush1.msra.mxu0 0.0
          %714 = vmatprep.subr.mxu0 0.0
          %715 = vmatpush1.msra.mxu0 0.0
          %716 = vmatprep.subr.mxu0 0.0
          %717 = vmatpush1.msra.mxu0 0.0
          %718 = vmatprep.subr.mxu0 0.0
          %719 = vmatpush1.msra.mxu0 0.0
          %720 = vmatprep.subr.mxu0 0.0
          %721 = vmatpush1.msra.mxu0 0.0
          %722 = vmatprep.subr.mxu0 0.0
          %723 = vmatpush1.msra.mxu0 0.0
          %724 = vmatprep.subr.mxu0 0.0
          %725 = vmatpush1.msra.mxu0 0.0
          %726 = vmatprep.subr.mxu0 0.0
          %727 = vmatpush1.msra.mxu0 0.0
          %728 = vmatprep.subr.mxu0 0.0
          %729 = vmatpush1.msra.mxu0 0.0
          %730 = vmatprep.subr.mxu0 0.0
          %731 = vmatpush1.msra.mxu0 0.0
          %732 = vmatprep.subr.mxu0 0.0
          %733 = vmatpush1.msra.mxu0 0.0
          %734 = vmatprep.subr.mxu0 0.0
          %735 = vmatpush1.msra.mxu0 0.0
          %736 = vmatprep.subr.mxu0 0.0
          %737 = vmatpush1.msra.mxu0 0.0
          %738 = vmatprep.subr.mxu0 0.0
          %739 = vmatpush1.msra.mxu0 0.0
          %740 = vmatprep.mubr.f32.mxu0 0.0
          %741 = vmatmul.mubr.f32.gmra.mrb[0].mxu0 %v581
          %v742 = vpop.f32.mrb[0].mxu0
          %v743 = vadd.f32 0.0, %v742
          %v744 = vpop.f32.mrb[0].mxu0
          %745 = vmatprep.mubr.f32.mxu0 0.0
          %746 = vmatmul.mubr.f32.gmra.mrb[0].mxu0 %v584
          %v747 = vpop.f32.mrb[0].mxu0
          %v748 = vadd.f32 0.0, %v747
          %v749 = vpop.f32.mrb[0].mxu0
          %750 = vmatprep.mubr.f32.mxu0 0.0
          %751 = vmatmul.mubr.f32.gmra.mrb[0].mxu0 %v587
          %v752 = vpop.f32.mrb[0].mxu0
          %v753 = vadd.f32 0.0, %v752
          %v754 = vpop.f32.mrb[0].mxu0
          %755 = vmatprep.mubr.f32.mxu0 0.0
          %756 = vmatmul.mubr.f32.gmra.mrb[0].mxu0 %v590
          %v757 = vpop.f32.mrb[0].mxu0
          %v758 = vadd.f32 0.0, %v757
          %v759 = vpop.f32.mrb[0].mxu0
          %760 = vmatprep.mubr.f32.mxu0 0.0
          %761 = vmatmul.mubr.f32.gmra.mrb[0].mxu0 %v593
          %v762 = vpop.f32.mrb[0].mxu0
          %v763 = vadd.f32 0.0, %v762
          %v764 = vpop.f32.mrb[0].mxu0
          %765 = vmatprep.mubr.f32.mxu0 0.0
          %766 = vmatmul.mubr.f32.gmra.mrb[0].mxu0 %v596
          %v767 = vpop.f32.mrb[0].mxu0
          %v768 = vadd.f32 0.0, %v767
          %v769 = vpop.f32.mrb[0].mxu0
          %770 = vmatprep.mubr.f32.mxu0 0.0
          %771 = vmatmul.mubr.f32.gmra.mrb[0].mxu0 %v599
          %v772 = vpop.f32.mrb[0].mxu0
          %v773 = vadd.f32 0.0, %v772
          %v774 = vpop.f32.mrb[0].mxu0
          %775 = vmatprep.mubr.f32.mxu0 0.0
          %776 = vmatmul.mubr.f32.gmra.mrb[0].mxu0 %v602
          %v777 = vpop.f32.mrb[0].mxu0
          %v778 = vadd.f32 0.0, %v777
          %v779 = vpop.f32.mrb[0].mxu0
          %780 = vmatprep.mubr.f32.mxu0 0.0
          %781 = vmatmul.mubr.f32.gmra.mrb[0].mxu0 %v605
          %v782 = vpop.f32.mrb[0].mxu0
          %v783 = vadd.f32 0.0, %v782
          %v784 = vpop.f32.mrb[0].mxu0
          %785 = vmatprep.mubr.f32.mxu0 0.0
          %786 = vmatmul.mubr.f32.gmra.mrb[0].mxu0 %v608
          %v787 = vpop.f32.mrb[0].mxu0
          %v788 = vadd.f32 0.0, %v787
          %v789 = vpop.f32.mrb[0].mxu0
          %790 = vmatprep.mubr.f32.mxu0 0.0
          %791 = vmatmul.mubr.f32.gmra.mrb[0].mxu0 %v611
          %v792 = vpop.f32.mrb[0].mxu0
          %v793 = vadd.f32 0.0, %v792
          %v794 = vpop.f32.mrb[0].mxu0
          %795 = vmatprep.mubr.f32.mxu0 0.0
          %796 = vmatmul.mubr.f32.gmra.mrb[0].mxu0 %v614
          %v797 = vpop.f32.mrb[0].mxu0
          %v798 = vadd.f32 0.0, %v797
          %v799 = vpop.f32.mrb[0].mxu0
          %800 = vmatprep.mubr.f32.mxu0 0.0
          %801 = vmatmul.mubr.f32.gmra.mrb[0].mxu0 %v617
          %v802 = vpop.f32.mrb[0].mxu0
          %v803 = vadd.f32 0.0, %v802
          %v804 = vpop.f32.mrb[0].mxu0
          %805 = vmatprep.mubr.f32.mxu0 0.0
          %806 = vmatmul.mubr.f32.gmra.mrb[0].mxu0 %v620
          %v807 = vpop.f32.mrb[0].mxu0
          %v808 = vadd.f32 0.0, %v807
          %v809 = vpop.f32.mrb[0].mxu0
          %810 = vmatprep.mubr.f32.mxu0 0.0
          %811 = vmatmul.mubr.f32.gmra.mrb[0].mxu0 %v623
          %v812 = vpop.f32.mrb[0].mxu0
          %v813 = vadd.f32 0.0, %v812
          %v814 = vpop.f32.mrb[0].mxu0
          %815 = vmatprep.mubr.f32.mxu0 0.0
          %816 = vmatmul.mubr.f32.gmra.mrb[0].mxu0 %v626
          %v817 = vpop.f32.mrb[0].mxu0
          %v818 = vadd.f32 0.0, %v817
          %v819 = vpop.f32.mrb[0].mxu0
          %820 = vmatprep.mubr.f32.mxu0 0.0
          %821 = vmatmul.mubr.f32.gmra.mrb[0].mxu0 %v629
          %v822 = vpop.f32.mrb[0].mxu0
          %v823 = vadd.f32 0.0, %v822
          %v824 = vpop.f32.mrb[0].mxu0
          %825 = vmatprep.mubr.f32.mxu0 0.0
          %826 = vmatmul.mubr.f32.gmra.mrb[0].mxu0 %v632
          %v827 = vpop.f32.mrb[0].mxu0
          %v828 = vadd.f32 0.0, %v827
          %v829 = vpop.f32.mrb[0].mxu0
          %830 = vmatprep.mubr.f32.mxu0 0.0
          %831 = vmatmul.mubr.f32.gmra.mrb[0].mxu0 %v635
          %v832 = vpop.f32.mrb[0].mxu0
          %v833 = vadd.f32 0.0, %v832
          %v834 = vpop.f32.mrb[0].mxu0
          %835 = vmatprep.mubr.f32.mxu0 0.0
          %836 = vmatmul.mubr.f32.gmra.mrb[0].mxu0 %v638
          %v837 = vpop.f32.mrb[0].mxu0
          %v838 = vadd.f32 0.0, %v837
          %v839 = vpop.f32.mrb[0].mxu0
          %840 = vmatprep.mubr.f32.mxu0 0.0
          %841 = vmatmul.mubr.f32.gmra.mrb[0].mxu0 %v641
          %v842 = vpop.f32.mrb[0].mxu0
          %v843 = vadd.f32 0.0, %v842
          %v844 = vpop.f32.mrb[0].mxu0
          %845 = vmatprep.mubr.f32.mxu0 0.0
          %846 = vmatmul.mubr.f32.gmra.mrb[0].mxu0 %v644
          %v847 = vpop.f32.mrb[0].mxu0
          %v848 = vadd.f32 0.0, %v847
          %v849 = vpop.f32.mrb[0].mxu0
          %850 = vmatprep.mubr.f32.mxu0 0.0
          %851 = vmatmul.mubr.f32.gmra.mrb[0].mxu0 %v647
          %v852 = vpop.f32.mrb[0].mxu0
          %v853 = vadd.f32 0.0, %v852
          %v854 = vpop.f32.mrb[0].mxu0
          %855 = vmatprep.mubr.f32.mxu0 0.0
          %856 = vmatmul.mubr.f32.gmra.mrb[0].mxu0 %v650
          %v857 = vpop.f32.mrb[0].mxu0
          %v858 = vadd.f32 0.0, %v857
          %v859 = vpop.f32.mrb[0].mxu0
          %860 = vmatprep.mubr.f32.mxu0 0.0
          %861 = vmatmul.mubr.f32.gmra.mrb[0].mxu0 %v653
          %v862 = vpop.f32.mrb[0].mxu0
          %v863 = vadd.f32 0.0, %v862
          %v864 = vpop.f32.mrb[0].mxu0
          %865 = vmatprep.mubr.f32.mxu0 0.0
          %866 = vmatmul.mubr.f32.gmra.mrb[0].mxu0 %v656
          %v867 = vpop.f32.mrb[0].mxu0
          %v868 = vadd.f32 0.0, %v867
          %v869 = vpop.f32.mrb[0].mxu0
          %870 = vmatprep.mubr.f32.mxu0 0.0
          %871 = vmatmul.mubr.f32.gmra.mrb[0].mxu0 %v659
          %v872 = vpop.f32.mrb[0].mxu0
          %v873 = vadd.f32 0.0, %v872
          %v874 = vpop.f32.mrb[0].mxu0
          %875 = vmatprep.mubr.f32.mxu0 0.0
          %876 = vmatmul.mubr.f32.gmra.mrb[0].mxu0 %v662
          %v877 = vpop.f32.mrb[0].mxu0
          %v878 = vadd.f32 0.0, %v877
          %v879 = vpop.f32.mrb[0].mxu0
          %880 = vmatprep.mubr.f32.mxu0 0.0
          %881 = vmatmul.mubr.f32.gmra.mrb[0].mxu0 %v665
          %v882 = vpop.f32.mrb[0].mxu0
          %v883 = vadd.f32 0.0, %v882
          %v884 = vpop.f32.mrb[0].mxu0
          %885 = vmatprep.mubr.f32.mxu0 0.0
          %886 = vmatmul.mubr.f32.gmra.mrb[0].mxu0 %v668
          %v887 = vpop.f32.mrb[0].mxu0
          %v888 = vadd.f32 0.0, %v887
          %v889 = vpop.f32.mrb[0].mxu0
          %890 = vmatprep.mubr.f32.mxu0 0.0
          %891 = vmatmul.mubr.f32.gmra.mrb[0].mxu0 %v671
          %v892 = vpop.f32.mrb[0].mxu0
          %v893 = vadd.f32 0.0, %v892
          %v894 = vpop.f32.mrb[0].mxu0
          %895 = vmatprep.mubr.f32.mxu0 0.0
          %896 = vmatmul.mubr.f32.gmra.mrb[0].mxu0 %v674
          %v897 = vpop.f32.mrb[0].mxu0
          %v898 = vadd.f32 0.0, %v897
          %v899 = vpop.f32.mrb[0].mxu0
          %900 = vdwg.mxu0
          %v901 = vld [vmem:[%s7] sm:$0x1]
          %v903 = vlaneseq
          %v904 = vshrl.u32 %v903, 7
          %v905 = vsub.s32 0, %v904
          %v906 = vrot.slane %v901, %v905
          %v908 = vadd.f32 %v743, %v906
          %v909 = vadd.f32 %v748, %v906
          %v910 = vadd.f32 %v753, %v906
          %v911 = vadd.f32 %v758, %v906
          %v912 = vadd.f32 %v763, %v906
          %v913 = vadd.f32 %v768, %v906
          %v914 = vadd.f32 %v773, %v906
          %v915 = vadd.f32 %v778, %v906
          %v916 = vadd.f32 %v783, %v906
          %v917 = vadd.f32 %v788, %v906
          %v918 = vadd.f32 %v793, %v906
          %v919 = vadd.f32 %v798, %v906
          %v920 = vadd.f32 %v803, %v906
          %v921 = vadd.f32 %v808, %v906
          %v922 = vadd.f32 %v813, %v906
          %v923 = vadd.f32 %v818, %v906
          %v924 = vadd.f32 %v823, %v906
          %v925 = vadd.f32 %v828, %v906
          %v926 = vadd.f32 %v833, %v906
          %v927 = vadd.f32 %v838, %v906
          %v928 = vadd.f32 %v843, %v906
          %v929 = vadd.f32 %v848, %v906
          %v930 = vadd.f32 %v853, %v906
          %v931 = vadd.f32 %v858, %v906
          %v932 = vadd.f32 %v863, %v906
          %v933 = vadd.f32 %v868, %v906
          %v934 = vadd.f32 %v873, %v906
          %v935 = vadd.f32 %v878, %v906
          %v936 = vadd.f32 %v883, %v906
          %v937 = vadd.f32 %v888, %v906
          %v938 = vadd.f32 %v893, %v906
          %v939 = vadd.f32 %v898, %v906
          %940 = vst.msk [vmem:[#allocation2] sm:$0xff] %vm579, %v908
          %941 = vst.msk [vmem:[#allocation2 + $0x8] sm:$0xff] %vm579, %v909
          %942 = vst.msk [vmem:[#allocation2 + $0x10] sm:$0xff] %vm579, %v910
          %943 = vst.msk [vmem:[#allocation2 + $0x18] sm:$0xff] %vm579, %v911
          %944 = vst.msk [vmem:[#allocation2 + $0x20] sm:$0xff] %vm579, %v912
          %945 = vst.msk [vmem:[#allocation2 + $0x28] sm:$0xff] %vm579, %v913
          %946 = vst.msk [vmem:[#allocation2 + $0x30] sm:$0xff] %vm579, %v914
          %947 = vst.msk [vmem:[#allocation2 + $0x38] sm:$0xff] %vm579, %v915
          %948 = vst.msk [vmem:[#allocation2 + $0x40] sm:$0xff] %vm579, %v916
          %949 = vst.msk [vmem:[#allocation2 + $0x48] sm:$0xff] %vm579, %v917
          %950 = vst.msk [vmem:[#allocation2 + $0x50] sm:$0xff] %vm579, %v918
          %951 = vst.msk [vmem:[#allocation2 + $0x58] sm:$0xff] %vm579, %v919
          %952 = vst.msk [vmem:[#allocation2 + $0x60] sm:$0xff] %vm579, %v920
          %953 = vst.msk [vmem:[#allocation2 + $0x68] sm:$0xff] %vm579, %v921
          %954 = vst.msk [vmem:[#allocation2 + $0x70] sm:$0xff] %vm579, %v922
          %955 = vst.msk [vmem:[#allocation2 + $0x78] sm:$0xff] %vm579, %v923
          %956 = vst.msk [vmem:[#allocation2 + $0x80] sm:$0xff] %vm579, %v924
          %957 = vst.msk [vmem:[#allocation2 + $0x88] sm:$0xff] %vm579, %v925
          %958 = vst.msk [vmem:[#allocation2 + $0x90] sm:$0xff] %vm579, %v926
          %959 = vst.msk [vmem:[#allocation2 + $0x98] sm:$0xff] %vm579, %v927
          %960 = vst.msk [vmem:[#allocation2 + $0xa0] sm:$0xff] %vm579, %v928
          %961 = vst.msk [vmem:[#allocation2 + $0xa8] sm:$0xff] %vm579, %v929
          %962 = vst.msk [vmem:[#allocation2 + $0xb0] sm:$0xff] %vm579, %v930
          %963 = vst.msk [vmem:[#allocation2 + $0xb8] sm:$0xff] %vm579, %v931
          %964 = vst.msk [vmem:[#allocation2 + $0xc0] sm:$0xff] %vm579, %v932
          %965 = vst.msk [vmem:[#allocation2 + $0xc8] sm:$0xff] %vm579, %v933
          %966 = vst.msk [vmem:[#allocation2 + $0xd0] sm:$0xff] %vm579, %v934
          %967 = vst.msk [vmem:[#allocation2 + $0xd8] sm:$0xff] %vm579, %v935
          %968 = vst.msk [vmem:[#allocation2 + $0xe0] sm:$0xff] %vm579, %v936
          %969 = vst.msk [vmem:[#allocation2 + $0xe8] sm:$0xff] %vm579, %v937
          %970 = vst.msk [vmem:[#allocation2 + $0xf0] sm:$0xff] %vm579, %v938
          %971 = vst.msk [vmem:[#allocation2 + $0xf8] sm:$0xff] %vm579, %v939
          %v972 = vld [vmem:[%s2 + $0x1] sm:$0x1]
          %v973 = vlaneseq
          %v974 = vshrl.u32 %v973, 7
          %v975 = vsub.s32 0, %v974
          %v976 = vrot.slane %v972, %v975
          %vm977 = vcmask 254976
          %978 = vst.msk [vmem:[#allocation3] sm:$0x3] %vm977, %v976
          %v979 = vld [vmem:[%s1] sm:$0x3]
          %v980 = vld [vmem:[%s1 + $0x2] sm:$0x3]
          %981 = vst.msk [vmem:[#allocation9] sm:$0x3] %vm977, %v979
          %982 = vst.msk [vmem:[#allocation9 + $0x2] sm:$0x3] %vm977, %v980
        $region84: #{tpu_custom_call.1} parent=79 // pred_fallthru
          _
        %v983 = vld [vmem:[%s0] sm:$0xff]
        %v984 = vld [vmem:[%s0 + $0x8] sm:$0xff]
        %v985 = vld [vmem:[%s0 + $0x10] sm:$0xff]
        %v986 = vld [vmem:[%s0 + $0x18] sm:$0xff]
        %v987 = vld [vmem:[%s0 + $0x20] sm:$0xff]
        %v988 = vld [vmem:[%s0 + $0x28] sm:$0xff]
        %v989 = vld [vmem:[%s0 + $0x30] sm:$0xff]
        %v990 = vld [vmem:[%s0 + $0x38] sm:$0xff]
        %v991 = vld [vmem:[%s0 + $0x40] sm:$0xff]
        %v992 = vld [vmem:[%s0 + $0x48] sm:$0xff]
        %v993 = vld [vmem:[%s0 + $0x50] sm:$0xff]
        %v994 = vld [vmem:[%s0 + $0x58] sm:$0xff]
        %v995 = vld [vmem:[%s0 + $0x60] sm:$0xff]
        %v996 = vld [vmem:[%s0 + $0x68] sm:$0xff]
        %v997 = vld [vmem:[%s0 + $0x70] sm:$0xff]
        %v998 = vld [vmem:[%s0 + $0x78] sm:$0xff]
        %v999 = vld [vmem:[%s0 + $0x80] sm:$0xff]
        %v1000 = vld [vmem:[%s0 + $0x88] sm:$0xff]
        %v1001 = vld [vmem:[%s0 + $0x90] sm:$0xff]
        %v1002 = vld [vmem:[%s0 + $0x98] sm:$0xff]
        %v1003 = vld [vmem:[%s0 + $0xa0] sm:$0xff]
        %v1004 = vld [vmem:[%s0 + $0xa8] sm:$0xff]
        %v1005 = vld [vmem:[%s0 + $0xb0] sm:$0xff]
        %v1006 = vld [vmem:[%s0 + $0xb8] sm:$0xff]
        %v1007 = vld [vmem:[%s0 + $0xc0] sm:$0xff]
        %v1008 = vld [vmem:[%s0 + $0xc8] sm:$0xff]
        %v1009 = vld [vmem:[%s0 + $0xd0] sm:$0xff]
        %v1010 = vld [vmem:[%s0 + $0xd8] sm:$0xff]
        %v1011 = vld [vmem:[%s0 + $0xe0] sm:$0xff]
        %v1012 = vld [vmem:[%s0 + $0xe8] sm:$0xff]
        %v1013 = vld [vmem:[%s0 + $0xf0] sm:$0xff]
        %v1014 = vld [vmem:[%s0 + $0xf8] sm:$0xff]
        %v1015 = vld [vmem:[#allocation9] sm:$0x3]
        %s1016 = scalar_lea.vmem [#allocation9], 2
        %v1017 = vld [vmem:[%s1016] sm:$0x3]
        %v1018 = vld [vmem:[#allocation3] sm:$0x3]
        %v1019 = vld [vmem:[%s4] sm:$0xf]
        %v1020 = vld [vmem:[%s4 + $0x4] sm:$0xf]
        %v1021 = vld [vmem:[%s4 + $0x8] sm:$0xf]
        %v1022 = vld [vmem:[%s4 + $0xc] sm:$0xf]
        %v1023 = vunpack.c.l.bf16 %v1019
        %v1024 = vunpack.c.l.bf16 %v1020
        %v1025 = vunpack.c.l.bf16 %v1021
        %v1026 = vunpack.c.l.bf16 %v1022
        %v1027 = vld [vmem:[%s5] sm:$0x1]
        %v1029 = vlaneseq
        %v1030 = vshrl.u32 %v1029, 7
        %v1031 = vsub.s32 0, %v1030
        %v1032 = vrot.slane %v1027, %v1031
        %vm1034 = vcmask 261120
        %v1036 = vsel %vm1034, %v1017, 0
        %1038 = vmatprep.subr.mxu0 0.0
        %1039 = vmatpush1.msra.mxu0 %v1023
        %1040 = vmatprep.subr.mxu0 0.0
        %1041 = vmatpush1.msra.mxu0 %v1024
        %1042 = vmatprep.subr.mxu0 0.0
        %1043 = vmatpush1.msra.mxu0 %v1025
        %1044 = vmatprep.subr.mxu0 0.0
        %1045 = vmatpush1.msra.mxu0 %v1026
        %1046 = vmatprep.subr.mxu0 0.0
        %1047 = vmatpush1.msra.mxu0 0.0
        %1048 = vmatprep.subr.mxu0 0.0
        %1049 = vmatpush1.msra.mxu0 0.0
        %1050 = vmatprep.subr.mxu0 0.0
        %1051 = vmatpush1.msra.mxu0 0.0
        %1052 = vmatprep.subr.mxu0 0.0
        %1053 = vmatpush1.msra.mxu0 0.0
        %1054 = vmatprep.subr.mxu0 0.0
        %1055 = vmatpush1.msra.mxu0 0.0
        %1056 = vmatprep.subr.mxu0 0.0
        %1057 = vmatpush1.msra.mxu0 0.0
        %1058 = vmatprep.subr.mxu0 0.0
        %1059 = vmatpush1.msra.mxu0 0.0
        %1060 = vmatprep.subr.mxu0 0.0
        %1061 = vmatpush1.msra.mxu0 0.0
        %1062 = vmatprep.subr.mxu0 0.0
        %1063 = vmatpush1.msra.mxu0 0.0
        %1064 = vmatprep.subr.mxu0 0.0
        %1065 = vmatpush1.msra.mxu0 0.0
        %1066 = vmatprep.subr.mxu0 0.0
        %1067 = vmatpush1.msra.mxu0 0.0
        %1068 = vmatprep.subr.mxu0 0.0
        %1069 = vmatpush1.msra.mxu0 0.0
        %1070 = vmatprep.subr.mxu0 0.0
        %1071 = vmatpush1.msra.mxu0 0.0
        %1072 = vmatprep.subr.mxu0 0.0
        %1073 = vmatpush1.msra.mxu0 0.0
        %1074 = vmatprep.subr.mxu0 0.0
        %1075 = vmatpush1.msra.mxu0 0.0
        %1076 = vmatprep.subr.mxu0 0.0
        %1077 = vmatpush1.msra.mxu0 0.0
        %1078 = vmatprep.subr.mxu0 0.0
        %1079 = vmatpush1.msra.mxu0 0.0
        %1080 = vmatprep.subr.mxu0 0.0
        %1081 = vmatpush1.msra.mxu0 0.0
        %1082 = vmatprep.subr.mxu0 0.0
        %1083 = vmatpush1.msra.mxu0 0.0
        %1084 = vmatprep.subr.mxu0 0.0
        %1085 = vmatpush1.msra.mxu0 0.0
        %1086 = vmatprep.subr.mxu0 0.0
        %1087 = vmatpush1.msra.mxu0 0.0
        %1088 = vmatprep.subr.mxu0 0.0
        %1089 = vmatpush1.msra.mxu0 0.0
        %1090 = vmatprep.subr.mxu0 0.0
        %1091 = vmatpush1.msra.mxu0 0.0
        %1092 = vmatprep.subr.mxu0 0.0
        %1093 = vmatpush1.msra.mxu0 0.0
        %1094 = vmatprep.subr.mxu0 0.0
        %1095 = vmatpush1.msra.mxu0 0.0
        %1096 = vmatprep.subr.mxu0 0.0
        %1097 = vmatpush1.msra.mxu0 0.0
        %1098 = vmatprep.subr.mxu0 0.0
        %1099 = vmatpush1.msra.mxu0 0.0
        %1100 = vmatprep.subr.mxu0 0.0
        %1101 = vmatpush1.msra.mxu0 0.0
        %1102 = vmatprep.mubr.f32.mxu0 0.0
        %1103 = vmatmul.mubr.f32.gmra.mrb[0].mxu0 %v1036
        %v1104 = vpop.f32.mrb[0].mxu0
        %v1105 = vadd.f32 %v1032, %v1104
        %v1106 = vpop.f32.mrb[0].mxu0
        %1107 = vdwg.mxu0
        %v1110 = vunpack.c.l.s4 1966171168
        %v1111 = vunpack.c.0.s8 %v1110
        %v1112 = vlaneseq
        %v1113 = vshrl.u32 %v1112, 7
        %v1114 = vsub.s32 %v1111, %v1113
        %v1115 = vrot.slane %v1105, %v1114
        %v1116 = vcombine.high %v1115, %v1115
        %v1118 = vunpack.c.l.s4 1966171168
        %v1119 = vunpack.c.0.s8 %v1118
        %v1120 = vlaneseq
        %v1121 = vshrl.u32 %v1120, 7
        %v1122 = vsub.s32 %v1119, %v1121
        %v1123 = vrot.slane %v1115, %v1122
        %v1125 = vunpack.c.l.s4 1966171168
        %v1126 = vunpack.c.0.s8 %v1125
        %v1127 = vlaneseq
        %v1128 = vshrl.u32 %v1127, 7
        %v1129 = vsub.s32 %v1126, %v1128
        %v1130 = vrot.slane %v1116, %v1129
        %v1131 = vld [vmem:[#allocation2] sm:$0xff]
        %v1132 = vld [vmem:[#allocation2 + $0x8] sm:$0xff]
        %v1133 = vld [vmem:[#allocation2 + $0x10] sm:$0xff]
        %v1134 = vld [vmem:[#allocation2 + $0x18] sm:$0xff]
        %v1135 = vld [vmem:[#allocation2 + $0x20] sm:$0xff]
        %v1136 = vld [vmem:[#allocation2 + $0x28] sm:$0xff]
        %v1137 = vld [vmem:[#allocation2 + $0x30] sm:$0xff]
        %v1138 = vld [vmem:[#allocation2 + $0x38] sm:$0xff]
        %v1139 = vld [vmem:[#allocation2 + $0x40] sm:$0xff]
        %v1140 = vld [vmem:[#allocation2 + $0x48] sm:$0xff]
        %v1141 = vld [vmem:[#allocation2 + $0x50] sm:$0xff]
        %v1142 = vld [vmem:[#allocation2 + $0x58] sm:$0xff]
        %v1143 = vld [vmem:[#allocation2 + $0x60] sm:$0xff]
        %v1144 = vld [vmem:[#allocation2 + $0x68] sm:$0xff]
        %v1145 = vld [vmem:[#allocation2 + $0x70] sm:$0xff]
        %v1146 = vld [vmem:[#allocation2 + $0x78] sm:$0xff]
        %v1147 = vld [vmem:[#allocation2 + $0x80] sm:$0xff]
        %v1148 = vld [vmem:[#allocation2 + $0x88] sm:$0xff]
        %v1149 = vld [vmem:[#allocation2 + $0x90] sm:$0xff]
        %v1150 = vld [vmem:[#allocation2 + $0x98] sm:$0xff]
        %v1151 = vld [vmem:[#allocation2 + $0xa0] sm:$0xff]
        %v1152 = vld [vmem:[#allocation2 + $0xa8] sm:$0xff]
        %v1153 = vld [vmem:[#allocation2 + $0xb0] sm:$0xff]
        %v1154 = vld [vmem:[#allocation2 + $0xb8] sm:$0xff]
        %v1155 = vld [vmem:[#allocation2 + $0xc0] sm:$0xff]
        %v1156 = vld [vmem:[#allocation2 + $0xc8] sm:$0xff]
        %v1157 = vld [vmem:[#allocation2 + $0xd0] sm:$0xff]
        %v1158 = vld [vmem:[#allocation2 + $0xd8] sm:$0xff]
        %v1159 = vld [vmem:[#allocation2 + $0xe0] sm:$0xff]
        %v1160 = vld [vmem:[#allocation2 + $0xe8] sm:$0xff]
        %v1161 = vld [vmem:[#allocation2 + $0xf0] sm:$0xff]
        %v1162 = vld [vmem:[#allocation2 + $0xf8] sm:$0xff]
        %v1163 = vlaneseq
        %v1164 = vshrl.u32 %v1163, 7
        %v1165 = vsub.s32 0, %v1164
        %v1166 = vrot.slane %v1123, %v1165
        %v1167 = vlaneseq
        %v1168 = vshrl.u32 %v1167, 7
        %v1169 = vsub.s32 0, %v1168
        %v1170 = vrot.slane %v1130, %v1169
        %v1173 = vadd.f32 %v1166, %v1131
        %v1174 = vadd.f32 %v1166, %v1132
        %v1175 = vadd.f32 %v1166, %v1133
        %v1176 = vadd.f32 %v1166, %v1134
        %v1177 = vadd.f32 %v1166, %v1135
        %v1178 = vadd.f32 %v1166, %v1136
        %v1179 = vadd.f32 %v1166, %v1137
        %v1180 = vadd.f32 %v1166, %v1138
        %v1181 = vadd.f32 %v1166, %v1139
        %v1182 = vadd.f32 %v1166, %v1140
        %v1183 = vadd.f32 %v1166, %v1141
        %v1184 = vadd.f32 %v1166, %v1142
        %v1185 = vadd.f32 %v1166, %v1143
        %v1186 = vadd.f32 %v1166, %v1144
        %v1187 = vadd.f32 %v1166, %v1145
        %v1188 = vadd.f32 %v1166, %v1146
        %v1189 = vadd.f32 %v1170, %v1147
        %v1190 = vadd.f32 %v1170, %v1148
        %v1191 = vadd.f32 %v1170, %v1149
        %v1192 = vadd.f32 %v1170, %v1150
        %v1193 = vadd.f32 %v1170, %v1151
        %v1194 = vadd.f32 %v1170, %v1152
        %v1195 = vadd.f32 %v1170, %v1153
        %v1196 = vadd.f32 %v1170, %v1154
        %v1197 = vadd.f32 %v1170, %v1155
        %v1198 = vadd.f32 %v1170, %v1156
        %v1199 = vadd.f32 %v1170, %v1157
        %v1200 = vadd.f32 %v1170, %v1158
        %v1201 = vadd.f32 %v1170, %v1159
        %v1202 = vadd.f32 %v1170, %v1160
        %v1203 = vadd.f32 %v1170, %v1161
        %v1204 = vadd.f32 %v1170, %v1162
        %v1205 = vtanh.pop %v1173
        %v1206 = vtanh.pop %v1174
        %v1207 = vtanh.pop %v1175
        %v1208 = vtanh.pop %v1176
        %v1209 = vtanh.pop %v1177
        %v1210 = vtanh.pop %v1178
        %v1211 = vtanh.pop %v1179
        %v1212 = vtanh.pop %v1180
        %v1213 = vtanh.pop %v1181
        %v1214 = vtanh.pop %v1182
        %v1215 = vtanh.pop %v1183
        %v1216 = vtanh.pop %v1184
        %v1217 = vtanh.pop %v1185
        %v1218 = vtanh.pop %v1186
        %v1219 = vtanh.pop %v1187
        %v1220 = vtanh.pop %v1188
        %v1221 = vtanh.pop %v1189
        %v1222 = vtanh.pop %v1190
        %v1223 = vtanh.pop %v1191
        %v1224 = vtanh.pop %v1192
        %v1225 = vtanh.pop %v1193
        %v1226 = vtanh.pop %v1194
        %v1227 = vtanh.pop %v1195
        %v1228 = vtanh.pop %v1196
        %v1229 = vtanh.pop %v1197
        %v1230 = vtanh.pop %v1198
        %v1231 = vtanh.pop %v1199
        %v1232 = vtanh.pop %v1200
        %v1233 = vtanh.pop %v1201
        %v1234 = vtanh.pop %v1202
        %v1235 = vtanh.pop %v1203
        %v1236 = vtanh.pop %v1204
        %v1237 = vld [vmem:[%s8] sm:$0x1]
        %v1239 = vlaneseq
        %v1240 = vshrl.u32 %v1239, 7
        %v1241 = vsub.s32 0, %v1240
        %v1242 = vrot.slane %v1237, %v1241
        %v1244 = vmul.f32 %v1205, %v1242
        %v1245 = vmul.f32 %v1206, %v1242
        %v1246 = vmul.f32 %v1207, %v1242
        %v1247 = vmul.f32 %v1208, %v1242
        %v1248 = vmul.f32 %v1209, %v1242
        %v1249 = vmul.f32 %v1210, %v1242
        %v1250 = vmul.f32 %v1211, %v1242
        %v1251 = vmul.f32 %v1212, %v1242
        %v1252 = vmul.f32 %v1213, %v1242
        %v1253 = vmul.f32 %v1214, %v1242
        %v1254 = vmul.f32 %v1215, %v1242
        %v1255 = vmul.f32 %v1216, %v1242
        %v1256 = vmul.f32 %v1217, %v1242
        %v1257 = vmul.f32 %v1218, %v1242
        %v1258 = vmul.f32 %v1219, %v1242
        %v1259 = vmul.f32 %v1220, %v1242
        %v1260 = vmul.f32 %v1221, %v1242
        %v1261 = vmul.f32 %v1222, %v1242
        %v1262 = vmul.f32 %v1223, %v1242
        %v1263 = vmul.f32 %v1224, %v1242
        %v1264 = vmul.f32 %v1225, %v1242
        %v1265 = vmul.f32 %v1226, %v1242
        %v1266 = vmul.f32 %v1227, %v1242
        %v1267 = vmul.f32 %v1228, %v1242
        %v1268 = vmul.f32 %v1229, %v1242
        %v1269 = vmul.f32 %v1230, %v1242
        %v1270 = vmul.f32 %v1231, %v1242
        %v1271 = vmul.f32 %v1232, %v1242
        %v1272 = vmul.f32 %v1233, %v1242
        %v1273 = vmul.f32 %v1234, %v1242
        %v1274 = vmul.f32 %v1235, %v1242
        %v1275 = vmul.f32 %v1236, %v1242
        %v1276 = vsel %vm1034, %v1244, 0.0
        %1277 = vadd.xlane.f32.xlu0 %v1276
        %v1278 = vpop.xlane.xlu0 %1277
        %v1279 = vsel %vm1034, %v1245, 0.0
        %1280 = vadd.xlane.f32.xlu0 %v1279
        %v1281 = vpop.xlane.xlu0 %1280
        %v1282 = vsel %vm1034, %v1246, 0.0
        %1283 = vadd.xlane.f32.xlu0 %v1282
        %v1284 = vpop.xlane.xlu0 %1283
        %v1285 = vsel %vm1034, %v1247, 0.0
        %1286 = vadd.xlane.f32.xlu0 %v1285
        %v1287 = vpop.xlane.xlu0 %1286
        %v1288 = vsel %vm1034, %v1248, 0.0
        %1289 = vadd.xlane.f32.xlu0 %v1288
        %v1290 = vpop.xlane.xlu0 %1289
        %v1291 = vsel %vm1034, %v1249, 0.0
        %1292 = vadd.xlane.f32.xlu0 %v1291
        %v1293 = vpop.xlane.xlu0 %1292
        %v1294 = vsel %vm1034, %v1250, 0.0
        %1295 = vadd.xlane.f32.xlu0 %v1294
        %v1296 = vpop.xlane.xlu0 %1295
        %v1297 = vsel %vm1034, %v1251, 0.0
        %1298 = vadd.xlane.f32.xlu0 %v1297
        %v1299 = vpop.xlane.xlu0 %1298
        %v1300 = vsel %vm1034, %v1252, 0.0
        %1301 = vadd.xlane.f32.xlu0 %v1300
        %v1302 = vpop.xlane.xlu0 %1301
        %v1303 = vsel %vm1034, %v1253, 0.0
        %1304 = vadd.xlane.f32.xlu0 %v1303
        %v1305 = vpop.xlane.xlu0 %1304
        %v1306 = vsel %vm1034, %v1254, 0.0
        %1307 = vadd.xlane.f32.xlu0 %v1306
        %v1308 = vpop.xlane.xlu0 %1307
        %v1309 = vsel %vm1034, %v1255, 0.0
        %1310 = vadd.xlane.f32.xlu0 %v1309
        %v1311 = vpop.xlane.xlu0 %1310
        %v1312 = vsel %vm1034, %v1256, 0.0
        %1313 = vadd.xlane.f32.xlu0 %v1312
        %v1314 = vpop.xlane.xlu0 %1313
        %v1315 = vsel %vm1034, %v1257, 0.0
        %1316 = vadd.xlane.f32.xlu0 %v1315
        %v1317 = vpop.xlane.xlu0 %1316
        %v1318 = vsel %vm1034, %v1258, 0.0
        %1319 = vadd.xlane.f32.xlu0 %v1318
        %v1320 = vpop.xlane.xlu0 %1319
        %v1321 = vsel %vm1034, %v1259, 0.0
        %1322 = vadd.xlane.f32.xlu0 %v1321
        %v1323 = vpop.xlane.xlu0 %1322
        %v1324 = vsel %vm1034, %v1260, 0.0
        %1325 = vadd.xlane.f32.xlu0 %v1324
        %v1326 = vpop.xlane.xlu0 %1325
        %v1327 = vsel %vm1034, %v1261, 0.0
        %1328 = vadd.xlane.f32.xlu0 %v1327
        %v1329 = vpop.xlane.xlu0 %1328
        %v1330 = vsel %vm1034, %v1262, 0.0
        %1331 = vadd.xlane.f32.xlu0 %v1330
        %v1332 = vpop.xlane.xlu0 %1331
        %v1333 = vsel %vm1034, %v1263, 0.0
        %1334 = vadd.xlane.f32.xlu0 %v1333
        %v1335 = vpop.xlane.xlu0 %1334
        %v1336 = vsel %vm1034, %v1264, 0.0
        %1337 = vadd.xlane.f32.xlu0 %v1336
        %v1338 = vpop.xlane.xlu0 %1337
        %v1339 = vsel %vm1034, %v1265, 0.0
        %1340 = vadd.xlane.f32.xlu0 %v1339
        %v1341 = vpop.xlane.xlu0 %1340
        %v1342 = vsel %vm1034, %v1266, 0.0
        %1343 = vadd.xlane.f32.xlu0 %v1342
        %v1344 = vpop.xlane.xlu0 %1343
        %v1345 = vsel %vm1034, %v1267, 0.0
        %1346 = vadd.xlane.f32.xlu0 %v1345
        %v1347 = vpop.xlane.xlu0 %1346
        %v1348 = vsel %vm1034, %v1268, 0.0
        %1349 = vadd.xlane.f32.xlu0 %v1348
        %v1350 = vpop.xlane.xlu0 %1349
        %v1351 = vsel %vm1034, %v1269, 0.0
        %1352 = vadd.xlane.f32.xlu0 %v1351
        %v1353 = vpop.xlane.xlu0 %1352
        %v1354 = vsel %vm1034, %v1270, 0.0
        %1355 = vadd.xlane.f32.xlu0 %v1354
        %v1356 = vpop.xlane.xlu0 %1355
        %v1357 = vsel %vm1034, %v1271, 0.0
        %1358 = vadd.xlane.f32.xlu0 %v1357
        %v1359 = vpop.xlane.xlu0 %1358
        %v1360 = vsel %vm1034, %v1272, 0.0
        %1361 = vadd.xlane.f32.xlu0 %v1360
        %v1362 = vpop.xlane.xlu0 %1361
        %v1363 = vsel %vm1034, %v1273, 0.0
        %1364 = vadd.xlane.f32.xlu0 %v1363
        %v1365 = vpop.xlane.xlu0 %1364
        %v1366 = vsel %vm1034, %v1274, 0.0
        %1367 = vadd.xlane.f32.xlu0 %v1366
        %v1368 = vpop.xlane.xlu0 %1367
        %v1369 = vsel %vm1034, %v1275, 0.0
        %1370 = vadd.xlane.f32.xlu0 %v1369
        %v1371 = vpop.xlane.xlu0 %1370
        %v1372 = vld [vmem:[%s3] sm:$0x1]
        %v1374 = vlaneseq
        %v1375 = vshrl.u32 %v1374, 7
        %v1376 = vsub.s32 0, %v1375
        %v1377 = vrot.slane %v1372, %v1376
        %1379 = vbcast.lane.b32.xlu0 %v1377, 256
        %v1380 = vpop.permute.xlu0 %1379
        %s1382 = sor.u32 256, 8
        %1383 = vbcast.lane.b32.xlu0 %v1377, %s1382
        %v1384 = vpop.permute.xlu0 %1383
        %s1386 = sor.u32 256, 16
        %1387 = vbcast.lane.b32.xlu0 %v1377, %s1386
        %v1388 = vpop.permute.xlu0 %1387
        %s1390 = sor.u32 256, 24
        %1391 = vbcast.lane.b32.xlu0 %v1377, %s1390
        %v1392 = vpop.permute.xlu0 %1391
        %s1394 = sor.u32 256, 32
        %1395 = vbcast.lane.b32.xlu0 %v1377, %s1394
        %v1396 = vpop.permute.xlu0 %1395
        %s1398 = sor.u32 256, 40
        %1399 = vbcast.lane.b32.xlu0 %v1377, %s1398
        %v1400 = vpop.permute.xlu0 %1399
        %s1402 = sor.u32 256, 48
        %1403 = vbcast.lane.b32.xlu0 %v1377, %s1402
        %v1404 = vpop.permute.xlu0 %1403
        %s1406 = sor.u32 256, 56
        %1407 = vbcast.lane.b32.xlu0 %v1377, %s1406
        %v1408 = vpop.permute.xlu0 %1407
        %s1410 = sor.u32 256, 64
        %1411 = vbcast.lane.b32.xlu0 %v1377, %s1410
        %v1412 = vpop.permute.xlu0 %1411
        %s1414 = sor.u32 256, 72
        %1415 = vbcast.lane.b32.xlu0 %v1377, %s1414
        %v1416 = vpop.permute.xlu0 %1415
        %s1418 = sor.u32 256, 80
        %1419 = vbcast.lane.b32.xlu0 %v1377, %s1418
        %v1420 = vpop.permute.xlu0 %1419
        %s1422 = sor.u32 256, 88
        %1423 = vbcast.lane.b32.xlu0 %v1377, %s1422
        %v1424 = vpop.permute.xlu0 %1423
        %s1426 = sor.u32 256, 96
        %1427 = vbcast.lane.b32.xlu0 %v1377, %s1426
        %v1428 = vpop.permute.xlu0 %1427
        %s1430 = sor.u32 256, 104
        %1431 = vbcast.lane.b32.xlu0 %v1377, %s1430
        %v1432 = vpop.permute.xlu0 %1431
        %s1434 = sor.u32 256, 112
        %1435 = vbcast.lane.b32.xlu0 %v1377, %s1434
        %v1436 = vpop.permute.xlu0 %1435
        %s1438 = sor.u32 256, 120
        %1439 = vbcast.lane.b32.xlu0 %v1377, %s1438
        %v1440 = vpop.permute.xlu0 %1439
        %v1457 = vadd.f32 %v1278, %v1380
        %v1458 = vadd.f32 %v1281, %v1384
        %v1459 = vadd.f32 %v1284, %v1388
        %v1460 = vadd.f32 %v1287, %v1392
        %v1461 = vadd.f32 %v1290, %v1396
        %v1462 = vadd.f32 %v1293, %v1400
        %v1463 = vadd.f32 %v1296, %v1404
        %v1464 = vadd.f32 %v1299, %v1408
        %v1465 = vadd.f32 %v1302, %v1412
        %v1466 = vadd.f32 %v1305, %v1416
        %v1467 = vadd.f32 %v1308, %v1420
        %v1468 = vadd.f32 %v1311, %v1424
        %v1469 = vadd.f32 %v1314, %v1428
        %v1470 = vadd.f32 %v1317, %v1432
        %v1471 = vadd.f32 %v1320, %v1436
        %v1472 = vadd.f32 %v1323, %v1440
        %v1473 = vadd.f32 %v1326, %v1380
        %v1474 = vadd.f32 %v1329, %v1384
        %v1475 = vadd.f32 %v1332, %v1388
        %v1476 = vadd.f32 %v1335, %v1392
        %v1477 = vadd.f32 %v1338, %v1396
        %v1478 = vadd.f32 %v1341, %v1400
        %v1479 = vadd.f32 %v1344, %v1404
        %v1480 = vadd.f32 %v1347, %v1408
        %v1481 = vadd.f32 %v1350, %v1412
        %v1482 = vadd.f32 %v1353, %v1416
        %v1483 = vadd.f32 %v1356, %v1420
        %v1484 = vadd.f32 %v1359, %v1424
        %v1485 = vadd.f32 %v1362, %v1428
        %v1486 = vadd.f32 %v1365, %v1432
        %v1487 = vadd.f32 %v1368, %v1436
        %v1488 = vadd.f32 %v1371, %v1440
        %1521 = vset.pattern.permute.xlu0 0
        %1522 = vperm.xlu0 %1521, %v1457
        %v1523 = vpop.permute.xlu0 %1522
        %1524 = vset.pattern.permute.xlu0 0
        %1525 = vperm.xlu0 %1524, %v1458
        %v1526 = vpop.permute.xlu0 %1525
        %1527 = vset.pattern.permute.xlu0 0
        %1528 = vperm.xlu0 %1527, %v1459
        %v1529 = vpop.permute.xlu0 %1528
        %1530 = vset.pattern.permute.xlu0 0
        %1531 = vperm.xlu0 %1530, %v1460
        %v1532 = vpop.permute.xlu0 %1531
        %1533 = vset.pattern.permute.xlu0 0
        %1534 = vperm.xlu0 %1533, %v1461
        %v1535 = vpop.permute.xlu0 %1534
        %1536 = vset.pattern.permute.xlu0 0
        %1537 = vperm.xlu0 %1536, %v1462
        %v1538 = vpop.permute.xlu0 %1537
        %1539 = vset.pattern.permute.xlu0 0
        %1540 = vperm.xlu0 %1539, %v1463
        %v1541 = vpop.permute.xlu0 %1540
        %1542 = vset.pattern.permute.xlu0 0
        %1543 = vperm.xlu0 %1542, %v1464
        %v1544 = vpop.permute.xlu0 %1543
        %1545 = vset.pattern.permute.xlu0 0
        %1546 = vperm.xlu0 %1545, %v1465
        %v1547 = vpop.permute.xlu0 %1546
        %1548 = vset.pattern.permute.xlu0 0
        %1549 = vperm.xlu0 %1548, %v1466
        %v1550 = vpop.permute.xlu0 %1549
        %1551 = vset.pattern.permute.xlu0 0
        %1552 = vperm.xlu0 %1551, %v1467
        %v1553 = vpop.permute.xlu0 %1552
        %1554 = vset.pattern.permute.xlu0 0
        %1555 = vperm.xlu0 %1554, %v1468
        %v1556 = vpop.permute.xlu0 %1555
        %1557 = vset.pattern.permute.xlu0 0
        %1558 = vperm.xlu0 %1557, %v1469
        %v1559 = vpop.permute.xlu0 %1558
        %1560 = vset.pattern.permute.xlu0 0
        %1561 = vperm.xlu0 %1560, %v1470
        %v1562 = vpop.permute.xlu0 %1561
        %1563 = vset.pattern.permute.xlu0 0
        %1564 = vperm.xlu0 %1563, %v1471
        %v1565 = vpop.permute.xlu0 %1564
        %1566 = vset.pattern.permute.xlu0 0
        %1567 = vperm.xlu0 %1566, %v1472
        %v1568 = vpop.permute.xlu0 %1567
        %1569 = vset.pattern.permute.xlu0 0
        %1570 = vperm.xlu0 %1569, %v1473
        %v1571 = vpop.permute.xlu0 %1570
        %1572 = vset.pattern.permute.xlu0 0
        %1573 = vperm.xlu0 %1572, %v1474
        %v1574 = vpop.permute.xlu0 %1573
        %1575 = vset.pattern.permute.xlu0 0
        %1576 = vperm.xlu0 %1575, %v1475
        %v1577 = vpop.permute.xlu0 %1576
        %1578 = vset.pattern.permute.xlu0 0
        %1579 = vperm.xlu0 %1578, %v1476
        %v1580 = vpop.permute.xlu0 %1579
        %1581 = vset.pattern.permute.xlu0 0
        %1582 = vperm.xlu0 %1581, %v1477
        %v1583 = vpop.permute.xlu0 %1582
        %1584 = vset.pattern.permute.xlu0 0
        %1585 = vperm.xlu0 %1584, %v1478
        %v1586 = vpop.permute.xlu0 %1585
        %1587 = vset.pattern.permute.xlu0 0
        %1588 = vperm.xlu0 %1587, %v1479
        %v1589 = vpop.permute.xlu0 %1588
        %1590 = vset.pattern.permute.xlu0 0
        %1591 = vperm.xlu0 %1590, %v1480
        %v1592 = vpop.permute.xlu0 %1591
        %1593 = vset.pattern.permute.xlu0 0
        %1594 = vperm.xlu0 %1593, %v1481
        %v1595 = vpop.permute.xlu0 %1594
        %1596 = vset.pattern.permute.xlu0 0
        %1597 = vperm.xlu0 %1596, %v1482
        %v1598 = vpop.permute.xlu0 %1597
        %1599 = vset.pattern.permute.xlu0 0
        %1600 = vperm.xlu0 %1599, %v1483
        %v1601 = vpop.permute.xlu0 %1600
        %1602 = vset.pattern.permute.xlu0 0
        %1603 = vperm.xlu0 %1602, %v1484
        %v1604 = vpop.permute.xlu0 %1603
        %1605 = vset.pattern.permute.xlu0 0
        %1606 = vperm.xlu0 %1605, %v1485
        %v1607 = vpop.permute.xlu0 %1606
        %1608 = vset.pattern.permute.xlu0 0
        %1609 = vperm.xlu0 %1608, %v1486
        %v1610 = vpop.permute.xlu0 %1609
        %1611 = vset.pattern.permute.xlu0 0
        %1612 = vperm.xlu0 %1611, %v1487
        %v1613 = vpop.permute.xlu0 %1612
        %1614 = vset.pattern.permute.xlu0 0
        %1615 = vperm.xlu0 %1614, %v1488
        %v1616 = vpop.permute.xlu0 %1615
        %v1617 = vlaneseq
        %v1618 = vand.u32 %v1617, 127
        %v1619 = vlaneseq
        %v1620 = vshrl.u32 %v1619, 7
        %v1621 = vsub.s32 %v1618, %v1620
        %v1622 = vrot.slane %v1523, %v1621
        %v1623 = vadd.s32 %v1618, 4294967288
        %v1624 = vlaneseq
        %v1625 = vshrl.u32 %v1624, 7
        %v1626 = vsub.s32 %v1623, %v1625
        %v1627 = vrot.slane %v1526, %v1626
        %vm1628 = vcmask 130112
        %v1629 = vsel %vm1628, %v1627, %v1622
        %v1630 = vadd.s32 %v1618, 4294967280
        %v1631 = vlaneseq
        %v1632 = vshrl.u32 %v1631, 7
        %v1633 = vsub.s32 %v1630, %v1632
        %v1634 = vrot.slane %v1529, %v1633
        %vm1635 = vcmask 195712
        %v1636 = vsel %vm1635, %v1634, %v1629
        %v1637 = vadd.s32 %v1618, 4294967272
        %v1638 = vlaneseq
        %v1639 = vshrl.u32 %v1638, 7
        %v1640 = vsub.s32 %v1637, %v1639
        %v1641 = vrot.slane %v1532, %v1640
        %vm1642 = vcmask 261312
        %v1643 = vsel %vm1642, %v1641, %v1636
        %v1644 = vadd.s32 %v1618, 4294967264
        %v1645 = vlaneseq
        %v1646 = vshrl.u32 %v1645, 7
        %v1647 = vsub.s32 %v1644, %v1646
        %v1648 = vrot.slane %v1535, %v1647
        %vm1649 = vcmask 326912
        %v1650 = vsel %vm1649, %v1648, %v1643
        %v1651 = vadd.s32 %v1618, 4294967256
        %v1652 = vlaneseq
        %v1653 = vshrl.u32 %v1652, 7
        %v1654 = vsub.s32 %v1651, %v1653
        %v1655 = vrot.slane %v1538, %v1654
        %vm1656 = vcmask 392512
        %v1657 = vsel %vm1656, %v1655, %v1650
        %v1658 = vadd.s32 %v1618, 4294967248
        %v1659 = vlaneseq
        %v1660 = vshrl.u32 %v1659, 7
        %v1661 = vsub.s32 %v1658, %v1660
        %v1662 = vrot.slane %v1541, %v1661
        %vm1663 = vcmask 458112
        %v1664 = vsel %vm1663, %v1662, %v1657
        %v1665 = vadd.s32 %v1618, 4294967240
        %v1666 = vlaneseq
        %v1667 = vshrl.u32 %v1666, 7
        %v1668 = vsub.s32 %v1665, %v1667
        %v1669 = vrot.slane %v1544, %v1668
        %vm1670 = vcmask 523712
        %v1671 = vsel %vm1670, %v1669, %v1664
        %v1672 = vadd.s32 %v1618, 4294967232
        %v1673 = vlaneseq
        %v1674 = vshrl.u32 %v1673, 7
        %v1675 = vsub.s32 %v1672, %v1674
        %v1676 = vrot.slane %v1547, %v1675
        %vm1677 = vcmask 589312
        %v1678 = vsel %vm1677, %v1676, %v1671
        %v1679 = vadd.s32 %v1618, 4294967224
        %v1680 = vlaneseq
        %v1681 = vshrl.u32 %v1680, 7
        %v1682 = vsub.s32 %v1679, %v1681
        %v1683 = vrot.slane %v1550, %v1682
        %vm1684 = vcmask 654912
        %v1685 = vsel %vm1684, %v1683, %v1678
        %v1686 = vadd.s32 %v1618, 4294967216
        %v1687 = vlaneseq
        %v1688 = vshrl.u32 %v1687, 7
        %v1689 = vsub.s32 %v1686, %v1688
        %v1690 = vrot.slane %v1553, %v1689
        %vm1691 = vcmask 720512
        %v1692 = vsel %vm1691, %v1690, %v1685
        %v1693 = vadd.s32 %v1618, 4294967208
        %v1694 = vlaneseq
        %v1695 = vshrl.u32 %v1694, 7
        %v1696 = vsub.s32 %v1693, %v1695
        %v1697 = vrot.slane %v1556, %v1696
        %vm1698 = vcmask 786112
        %v1699 = vsel %vm1698, %v1697, %v1692
        %v1700 = vadd.s32 %v1618, 4294967200
        %v1701 = vlaneseq
        %v1702 = vshrl.u32 %v1701, 7
        %v1703 = vsub.s32 %v1700, %v1702
        %v1704 = vrot.slane %v1559, %v1703
        %vm1705 = vcmask 851712
        %v1706 = vsel %vm1705, %v1704, %v1699
        %v1707 = vadd.s32 %v1618, 4294967192
        %v1708 = vlaneseq
        %v1709 = vshrl.u32 %v1708, 7
        %v1710 = vsub.s32 %v1707, %v1709
        %v1711 = vrot.slane %v1562, %v1710
        %vm1712 = vcmask 917312
        %v1713 = vsel %vm1712, %v1711, %v1706
        %v1714 = vadd.s32 %v1618, 4294967184
        %v1715 = vlaneseq
        %v1716 = vshrl.u32 %v1715, 7
        %v1717 = vsub.s32 %v1714, %v1716
        %v1718 = vrot.slane %v1565, %v1717
        %vm1719 = vcmask 982912
        %v1720 = vsel %vm1719, %v1718, %v1713
        %v1721 = vadd.s32 %v1618, 4294967176
        %v1722 = vlaneseq
        %v1723 = vshrl.u32 %v1722, 7
        %v1724 = vsub.s32 %v1721, %v1723
        %v1725 = vrot.slane %v1568, %v1724
        %vm1726 = vcmask 1048512
        %v1727 = vsel %vm1726, %v1725, %v1720
        %v1728 = vlaneseq
        %v1729 = vshrl.u32 %v1728, 7
        %v1730 = vsub.s32 %v1618, %v1729
        %v1731 = vrot.slane %v1571, %v1730
        %v1732 = vlaneseq
        %v1733 = vshrl.u32 %v1732, 7
        %v1734 = vsub.s32 %v1623, %v1733
        %v1735 = vrot.slane %v1574, %v1734
        %v1736 = vsel %vm1628, %v1735, %v1731
        %v1737 = vlaneseq
        %v1738 = vshrl.u32 %v1737, 7
        %v1739 = vsub.s32 %v1630, %v1738
        %v1740 = vrot.slane %v1577, %v1739
        %v1741 = vsel %vm1635, %v1740, %v1736
        %v1742 = vlaneseq
        %v1743 = vshrl.u32 %v1742, 7
        %v1744 = vsub.s32 %v1637, %v1743
        %v1745 = vrot.slane %v1580, %v1744
        %v1746 = vsel %vm1642, %v1745, %v1741
        %v1747 = vlaneseq
        %v1748 = vshrl.u32 %v1747, 7
        %v1749 = vsub.s32 %v1644, %v1748
        %v1750 = vrot.slane %v1583, %v1749
        %v1751 = vsel %vm1649, %v1750, %v1746
        %v1752 = vlaneseq
        %v1753 = vshrl.u32 %v1752, 7
        %v1754 = vsub.s32 %v1651, %v1753
        %v1755 = vrot.slane %v1586, %v1754
        %v1756 = vsel %vm1656, %v1755, %v1751
        %v1757 = vlaneseq
        %v1758 = vshrl.u32 %v1757, 7
        %v1759 = vsub.s32 %v1658, %v1758
        %v1760 = vrot.slane %v1589, %v1759
        %v1761 = vsel %vm1663, %v1760, %v1756
        %v1762 = vlaneseq
        %v1763 = vshrl.u32 %v1762, 7
        %v1764 = vsub.s32 %v1665, %v1763
        %v1765 = vrot.slane %v1592, %v1764
        %v1766 = vsel %vm1670, %v1765, %v1761
        %v1767 = vlaneseq
        %v1768 = vshrl.u32 %v1767, 7
        %v1769 = vsub.s32 %v1672, %v1768
        %v1770 = vrot.slane %v1595, %v1769
        %v1771 = vsel %vm1677, %v1770, %v1766
        %v1772 = vlaneseq
        %v1773 = vshrl.u32 %v1772, 7
        %v1774 = vsub.s32 %v1679, %v1773
        %v1775 = vrot.slane %v1598, %v1774
        %v1776 = vsel %vm1684, %v1775, %v1771
        %v1777 = vlaneseq
        %v1778 = vshrl.u32 %v1777, 7
        %v1779 = vsub.s32 %v1686, %v1778
        %v1780 = vrot.slane %v1601, %v1779
        %v1781 = vsel %vm1691, %v1780, %v1776
        %v1782 = vlaneseq
        %v1783 = vshrl.u32 %v1782, 7
        %v1784 = vsub.s32 %v1693, %v1783
        %v1785 = vrot.slane %v1604, %v1784
        %v1786 = vsel %vm1698, %v1785, %v1781
        %v1787 = vlaneseq
        %v1788 = vshrl.u32 %v1787, 7
        %v1789 = vsub.s32 %v1700, %v1788
        %v1790 = vrot.slane %v1607, %v1789
        %v1791 = vsel %vm1705, %v1790, %v1786
        %v1792 = vlaneseq
        %v1793 = vshrl.u32 %v1792, 7
        %v1794 = vsub.s32 %v1707, %v1793
        %v1795 = vrot.slane %v1610, %v1794
        %v1796 = vsel %vm1712, %v1795, %v1791
        %v1797 = vlaneseq
        %v1798 = vshrl.u32 %v1797, 7
        %v1799 = vsub.s32 %v1714, %v1798
        %v1800 = vrot.slane %v1613, %v1799
        %v1801 = vsel %vm1719, %v1800, %v1796
        %v1802 = vlaneseq
        %v1803 = vshrl.u32 %v1802, 7
        %v1804 = vsub.s32 %v1721, %v1803
        %v1805 = vrot.slane %v1616, %v1804
        %v1806 = vsel %vm1726, %v1805, %v1801
        %vm1807 = vcmask 1041409
        %v1808 = vsel %vm1807, %v1806, %v1727
        %vm1810 = vcmask 1041408
        %v1811 = vsel %vm1810, %v1808, -inf
        %1812 = vmax.xlane.f32.xlu0 %v1811
        %v1813 = vpop.xlane.xlu0 %1812
        %v1815 = vlaneseq
        %v1816 = vshrl.u32 %v1815, 7
        %v1817 = vsub.s32 0, %v1816
        %v1818 = vrot.slane %v1813, %v1817
        %v1819 = vlaneseq
        %v1820 = vshrl.u32 %v1819, 7
        %v1821 = vsub.s32 1, %v1820
        %v1822 = vrot.slane %v1813, %v1821
        %v1825 = vsub.f32 %v1457, %v1818
        %v1826 = vsub.f32 %v1458, %v1818
        %v1827 = vsub.f32 %v1459, %v1818
        %v1828 = vsub.f32 %v1460, %v1818
        %v1829 = vsub.f32 %v1461, %v1818
        %v1830 = vsub.f32 %v1462, %v1818
        %v1831 = vsub.f32 %v1463, %v1818
        %v1832 = vsub.f32 %v1464, %v1818
        %v1833 = vsub.f32 %v1465, %v1818
        %v1834 = vsub.f32 %v1466, %v1818
        %v1835 = vsub.f32 %v1467, %v1818
        %v1836 = vsub.f32 %v1468, %v1818
        %v1837 = vsub.f32 %v1469, %v1818
        %v1838 = vsub.f32 %v1470, %v1818
        %v1839 = vsub.f32 %v1471, %v1818
        %v1840 = vsub.f32 %v1472, %v1818
        %v1841 = vsub.f32 %v1473, %v1822
        %v1842 = vsub.f32 %v1474, %v1822
        %v1843 = vsub.f32 %v1475, %v1822
        %v1844 = vsub.f32 %v1476, %v1822
        %v1845 = vsub.f32 %v1477, %v1822
        %v1846 = vsub.f32 %v1478, %v1822
        %v1847 = vsub.f32 %v1479, %v1822
        %v1848 = vsub.f32 %v1480, %v1822
        %v1849 = vsub.f32 %v1481, %v1822
        %v1850 = vsub.f32 %v1482, %v1822
        %v1851 = vsub.f32 %v1483, %v1822
        %v1852 = vsub.f32 %v1484, %v1822
        %v1853 = vsub.f32 %v1485, %v1822
        %v1854 = vsub.f32 %v1486, %v1822
        %v1855 = vsub.f32 %v1487, %v1822
        %v1856 = vsub.f32 %v1488, %v1822
        %v1857 = vmul.f32 %v1825, 1.442695
        %v1858 = vpow.pop %v1857
        %v1859 = vmul.f32 %v1826, 1.442695
        %v1860 = vpow.pop %v1859
        %v1861 = vmul.f32 %v1827, 1.442695
        %v1862 = vpow.pop %v1861
        %v1863 = vmul.f32 %v1828, 1.442695
        %v1864 = vpow.pop %v1863
        %v1865 = vmul.f32 %v1829, 1.442695
        %v1866 = vpow.pop %v1865
        %v1867 = vmul.f32 %v1830, 1.442695
        %v1868 = vpow.pop %v1867
        %v1869 = vmul.f32 %v1831, 1.442695
        %v1870 = vpow.pop %v1869
        %v1871 = vmul.f32 %v1832, 1.442695
        %v1872 = vpow.pop %v1871
        %v1873 = vmul.f32 %v1833, 1.442695
        %v1874 = vpow.pop %v1873
        %v1875 = vmul.f32 %v1834, 1.442695
        %v1876 = vpow.pop %v1875
        %v1877 = vmul.f32 %v1835, 1.442695
        %v1878 = vpow.pop %v1877
        %v1879 = vmul.f32 %v1836, 1.442695
        %v1880 = vpow.pop %v1879
        %v1881 = vmul.f32 %v1837, 1.442695
        %v1882 = vpow.pop %v1881
        %v1883 = vmul.f32 %v1838, 1.442695
        %v1884 = vpow.pop %v1883
        %v1885 = vmul.f32 %v1839, 1.442695
        %v1886 = vpow.pop %v1885
        %v1887 = vmul.f32 %v1840, 1.442695
        %v1888 = vpow.pop %v1887
        %v1889 = vmul.f32 %v1841, 1.442695
        %v1890 = vpow.pop %v1889
        %v1891 = vmul.f32 %v1842, 1.442695
        %v1892 = vpow.pop %v1891
        %v1893 = vmul.f32 %v1843, 1.442695
        %v1894 = vpow.pop %v1893
        %v1895 = vmul.f32 %v1844, 1.442695
        %v1896 = vpow.pop %v1895
        %v1897 = vmul.f32 %v1845, 1.442695
        %v1898 = vpow.pop %v1897
        %v1899 = vmul.f32 %v1846, 1.442695
        %v1900 = vpow.pop %v1899
        %v1901 = vmul.f32 %v1847, 1.442695
        %v1902 = vpow.pop %v1901
        %v1903 = vmul.f32 %v1848, 1.442695
        %v1904 = vpow.pop %v1903
        %v1905 = vmul.f32 %v1849, 1.442695
        %v1906 = vpow.pop %v1905
        %v1907 = vmul.f32 %v1850, 1.442695
        %v1908 = vpow.pop %v1907
        %v1909 = vmul.f32 %v1851, 1.442695
        %v1910 = vpow.pop %v1909
        %v1911 = vmul.f32 %v1852, 1.442695
        %v1912 = vpow.pop %v1911
        %v1913 = vmul.f32 %v1853, 1.442695
        %v1914 = vpow.pop %v1913
        %v1915 = vmul.f32 %v1854, 1.442695
        %v1916 = vpow.pop %v1915
        %v1917 = vmul.f32 %v1855, 1.442695
        %v1918 = vpow.pop %v1917
        %v1919 = vmul.f32 %v1856, 1.442695
        %v1920 = vpow.pop %v1919
        %1953 = vset.pattern.permute.xlu0 0
        %1954 = vperm.xlu0 %1953, %v1858
        %v1955 = vpop.permute.xlu0 %1954
        %1956 = vset.pattern.permute.xlu0 0
        %1957 = vperm.xlu0 %1956, %v1860
        %v1958 = vpop.permute.xlu0 %1957
        %1959 = vset.pattern.permute.xlu0 0
        %1960 = vperm.xlu0 %1959, %v1862
        %v1961 = vpop.permute.xlu0 %1960
        %1962 = vset.pattern.permute.xlu0 0
        %1963 = vperm.xlu0 %1962, %v1864
        %v1964 = vpop.permute.xlu0 %1963
        %1965 = vset.pattern.permute.xlu0 0
        %1966 = vperm.xlu0 %1965, %v1866
        %v1967 = vpop.permute.xlu0 %1966
        %1968 = vset.pattern.permute.xlu0 0
        %1969 = vperm.xlu0 %1968, %v1868
        %v1970 = vpop.permute.xlu0 %1969
        %1971 = vset.pattern.permute.xlu0 0
        %1972 = vperm.xlu0 %1971, %v1870
        %v1973 = vpop.permute.xlu0 %1972
        %1974 = vset.pattern.permute.xlu0 0
        %1975 = vperm.xlu0 %1974, %v1872
        %v1976 = vpop.permute.xlu0 %1975
        %1977 = vset.pattern.permute.xlu0 0
        %1978 = vperm.xlu0 %1977, %v1874
        %v1979 = vpop.permute.xlu0 %1978
        %1980 = vset.pattern.permute.xlu0 0
        %1981 = vperm.xlu0 %1980, %v1876
        %v1982 = vpop.permute.xlu0 %1981
        %1983 = vset.pattern.permute.xlu0 0
        %1984 = vperm.xlu0 %1983, %v1878
        %v1985 = vpop.permute.xlu0 %1984
        %1986 = vset.pattern.permute.xlu0 0
        %1987 = vperm.xlu0 %1986, %v1880
        %v1988 = vpop.permute.xlu0 %1987
        %1989 = vset.pattern.permute.xlu0 0
        %1990 = vperm.xlu0 %1989, %v1882
        %v1991 = vpop.permute.xlu0 %1990
        %1992 = vset.pattern.permute.xlu0 0
        %1993 = vperm.xlu0 %1992, %v1884
        %v1994 = vpop.permute.xlu0 %1993
        %1995 = vset.pattern.permute.xlu0 0
        %1996 = vperm.xlu0 %1995, %v1886
        %v1997 = vpop.permute.xlu0 %1996
        %1998 = vset.pattern.permute.xlu0 0
        %1999 = vperm.xlu0 %1998, %v1888
        %v2000 = vpop.permute.xlu0 %1999
        %2001 = vset.pattern.permute.xlu0 0
        %2002 = vperm.xlu0 %2001, %v1890
        %v2003 = vpop.permute.xlu0 %2002
        %2004 = vset.pattern.permute.xlu0 0
        %2005 = vperm.xlu0 %2004, %v1892
        %v2006 = vpop.permute.xlu0 %2005
        %2007 = vset.pattern.permute.xlu0 0
        %2008 = vperm.xlu0 %2007, %v1894
        %v2009 = vpop.permute.xlu0 %2008
        %2010 = vset.pattern.permute.xlu0 0
        %2011 = vperm.xlu0 %2010, %v1896
        %v2012 = vpop.permute.xlu0 %2011
        %2013 = vset.pattern.permute.xlu0 0
        %2014 = vperm.xlu0 %2013, %v1898
        %v2015 = vpop.permute.xlu0 %2014
        %2016 = vset.pattern.permute.xlu0 0
        %2017 = vperm.xlu0 %2016, %v1900
        %v2018 = vpop.permute.xlu0 %2017
        %2019 = vset.pattern.permute.xlu0 0
        %2020 = vperm.xlu0 %2019, %v1902
        %v2021 = vpop.permute.xlu0 %2020
        %2022 = vset.pattern.permute.xlu0 0
        %2023 = vperm.xlu0 %2022, %v1904
        %v2024 = vpop.permute.xlu0 %2023
        %2025 = vset.pattern.permute.xlu0 0
        %2026 = vperm.xlu0 %2025, %v1906
        %v2027 = vpop.permute.xlu0 %2026
        %2028 = vset.pattern.permute.xlu0 0
        %2029 = vperm.xlu0 %2028, %v1908
        %v2030 = vpop.permute.xlu0 %2029
        %2031 = vset.pattern.permute.xlu0 0
        %2032 = vperm.xlu0 %2031, %v1910
        %v2033 = vpop.permute.xlu0 %2032
        %2034 = vset.pattern.permute.xlu0 0
        %2035 = vperm.xlu0 %2034, %v1912
        %v2036 = vpop.permute.xlu0 %2035
        %2037 = vset.pattern.permute.xlu0 0
        %2038 = vperm.xlu0 %2037, %v1914
        %v2039 = vpop.permute.xlu0 %2038
        %2040 = vset.pattern.permute.xlu0 0
        %2041 = vperm.xlu0 %2040, %v1916
        %v2042 = vpop.permute.xlu0 %2041
        %2043 = vset.pattern.permute.xlu0 0
        %2044 = vperm.xlu0 %2043, %v1918
        %v2045 = vpop.permute.xlu0 %2044
        %2046 = vset.pattern.permute.xlu0 0
        %2047 = vperm.xlu0 %2046, %v1920
        %v2048 = vpop.permute.xlu0 %2047
        %v2049 = vlaneseq
        %v2050 = vshrl.u32 %v2049, 7
        %v2051 = vsub.s32 %v1618, %v2050
        %v2052 = vrot.slane %v1955, %v2051
        %v2053 = vlaneseq
        %v2054 = vshrl.u32 %v2053, 7
        %v2055 = vsub.s32 %v1623, %v2054
        %v2056 = vrot.slane %v1958, %v2055
        %v2057 = vsel %vm1628, %v2056, %v2052
        %v2058 = vlaneseq
        %v2059 = vshrl.u32 %v2058, 7
        %v2060 = vsub.s32 %v1630, %v2059
        %v2061 = vrot.slane %v1961, %v2060
        %v2062 = vsel %vm1635, %v2061, %v2057
        %v2063 = vlaneseq
        %v2064 = vshrl.u32 %v2063, 7
        %v2065 = vsub.s32 %v1637, %v2064
        %v2066 = vrot.slane %v1964, %v2065
        %v2067 = vsel %vm1642, %v2066, %v2062
        %v2068 = vlaneseq
        %v2069 = vshrl.u32 %v2068, 7
        %v2070 = vsub.s32 %v1644, %v2069
        %v2071 = vrot.slane %v1967, %v2070
        %v2072 = vsel %vm1649, %v2071, %v2067
        %v2073 = vlaneseq
        %v2074 = vshrl.u32 %v2073, 7
        %v2075 = vsub.s32 %v1651, %v2074
        %v2076 = vrot.slane %v1970, %v2075
        %v2077 = vsel %vm1656, %v2076, %v2072
        %v2078 = vlaneseq
        %v2079 = vshrl.u32 %v2078, 7
        %v2080 = vsub.s32 %v1658, %v2079
        %v2081 = vrot.slane %v1973, %v2080
        %v2082 = vsel %vm1663, %v2081, %v2077
        %v2083 = vlaneseq
        %v2084 = vshrl.u32 %v2083, 7
        %v2085 = vsub.s32 %v1665, %v2084
        %v2086 = vrot.slane %v1976, %v2085
        %v2087 = vsel %vm1670, %v2086, %v2082
        %v2088 = vlaneseq
        %v2089 = vshrl.u32 %v2088, 7
        %v2090 = vsub.s32 %v1672, %v2089
        %v2091 = vrot.slane %v1979, %v2090
        %v2092 = vsel %vm1677, %v2091, %v2087
        %v2093 = vlaneseq
        %v2094 = vshrl.u32 %v2093, 7
        %v2095 = vsub.s32 %v1679, %v2094
        %v2096 = vrot.slane %v1982, %v2095
        %v2097 = vsel %vm1684, %v2096, %v2092
        %v2098 = vlaneseq
        %v2099 = vshrl.u32 %v2098, 7
        %v2100 = vsub.s32 %v1686, %v2099
        %v2101 = vrot.slane %v1985, %v2100
        %v2102 = vsel %vm1691, %v2101, %v2097
        %v2103 = vlaneseq
        %v2104 = vshrl.u32 %v2103, 7
        %v2105 = vsub.s32 %v1693, %v2104
        %v2106 = vrot.slane %v1988, %v2105
        %v2107 = vsel %vm1698, %v2106, %v2102
        %v2108 = vlaneseq
        %v2109 = vshrl.u32 %v2108, 7
        %v2110 = vsub.s32 %v1700, %v2109
        %v2111 = vrot.slane %v1991, %v2110
        %v2112 = vsel %vm1705, %v2111, %v2107
        %v2113 = vlaneseq
        %v2114 = vshrl.u32 %v2113, 7
        %v2115 = vsub.s32 %v1707, %v2114
        %v2116 = vrot.slane %v1994, %v2115
        %v2117 = vsel %vm1712, %v2116, %v2112
        %v2118 = vlaneseq
        %v2119 = vshrl.u32 %v2118, 7
        %v2120 = vsub.s32 %v1714, %v2119
        %v2121 = vrot.slane %v1997, %v2120
        %v2122 = vsel %vm1719, %v2121, %v2117
        %v2123 = vlaneseq
        %v2124 = vshrl.u32 %v2123, 7
        %v2125 = vsub.s32 %v1721, %v2124
        %v2126 = vrot.slane %v2000, %v2125
        %v2127 = vsel %vm1726, %v2126, %v2122
        %v2128 = vlaneseq
        %v2129 = vshrl.u32 %v2128, 7
        %v2130 = vsub.s32 %v1618, %v2129
        %v2131 = vrot.slane %v2003, %v2130
        %v2132 = vlaneseq
        %v2133 = vshrl.u32 %v2132, 7
        %v2134 = vsub.s32 %v1623, %v2133
        %v2135 = vrot.slane %v2006, %v2134
        %v2136 = vsel %vm1628, %v2135, %v2131
        %v2137 = vlaneseq
        %v2138 = vshrl.u32 %v2137, 7
        %v2139 = vsub.s32 %v1630, %v2138
        %v2140 = vrot.slane %v2009, %v2139
        %v2141 = vsel %vm1635, %v2140, %v2136
        %v2142 = vlaneseq
        %v2143 = vshrl.u32 %v2142, 7
        %v2144 = vsub.s32 %v1637, %v2143
        %v2145 = vrot.slane %v2012, %v2144
        %v2146 = vsel %vm1642, %v2145, %v2141
        %v2147 = vlaneseq
        %v2148 = vshrl.u32 %v2147, 7
        %v2149 = vsub.s32 %v1644, %v2148
        %v2150 = vrot.slane %v2015, %v2149
        %v2151 = vsel %vm1649, %v2150, %v2146
        %v2152 = vlaneseq
        %v2153 = vshrl.u32 %v2152, 7
        %v2154 = vsub.s32 %v1651, %v2153
        %v2155 = vrot.slane %v2018, %v2154
        %v2156 = vsel %vm1656, %v2155, %v2151
        %v2157 = vlaneseq
        %v2158 = vshrl.u32 %v2157, 7
        %v2159 = vsub.s32 %v1658, %v2158
        %v2160 = vrot.slane %v2021, %v2159
        %v2161 = vsel %vm1663, %v2160, %v2156
        %v2162 = vlaneseq
        %v2163 = vshrl.u32 %v2162, 7
        %v2164 = vsub.s32 %v1665, %v2163
        %v2165 = vrot.slane %v2024, %v2164
        %v2166 = vsel %vm1670, %v2165, %v2161
        %v2167 = vlaneseq
        %v2168 = vshrl.u32 %v2167, 7
        %v2169 = vsub.s32 %v1672, %v2168
        %v2170 = vrot.slane %v2027, %v2169
        %v2171 = vsel %vm1677, %v2170, %v2166
        %v2172 = vlaneseq
        %v2173 = vshrl.u32 %v2172, 7
        %v2174 = vsub.s32 %v1679, %v2173
        %v2175 = vrot.slane %v2030, %v2174
        %v2176 = vsel %vm1684, %v2175, %v2171
        %v2177 = vlaneseq
        %v2178 = vshrl.u32 %v2177, 7
        %v2179 = vsub.s32 %v1686, %v2178
        %v2180 = vrot.slane %v2033, %v2179
        %v2181 = vsel %vm1691, %v2180, %v2176
        %v2182 = vlaneseq
        %v2183 = vshrl.u32 %v2182, 7
        %v2184 = vsub.s32 %v1693, %v2183
        %v2185 = vrot.slane %v2036, %v2184
        %v2186 = vsel %vm1698, %v2185, %v2181
        %v2187 = vlaneseq
        %v2188 = vshrl.u32 %v2187, 7
        %v2189 = vsub.s32 %v1700, %v2188
        %v2190 = vrot.slane %v2039, %v2189
        %v2191 = vsel %vm1705, %v2190, %v2186
        %v2192 = vlaneseq
        %v2193 = vshrl.u32 %v2192, 7
        %v2194 = vsub.s32 %v1707, %v2193
        %v2195 = vrot.slane %v2042, %v2194
        %v2196 = vsel %vm1712, %v2195, %v2191
        %v2197 = vlaneseq
        %v2198 = vshrl.u32 %v2197, 7
        %v2199 = vsub.s32 %v1714, %v2198
        %v2200 = vrot.slane %v2045, %v2199
        %v2201 = vsel %vm1719, %v2200, %v2196
        %v2202 = vlaneseq
        %v2203 = vshrl.u32 %v2202, 7
        %v2204 = vsub.s32 %v1721, %v2203
        %v2205 = vrot.slane %v2048, %v2204
        %v2206 = vsel %vm1726, %v2205, %v2201
        %v2207 = vsel %vm1807, %v2206, %v2127
        %v2209 = vsel %vm1810, %v2207, 0.0
        %2210 = vadd.xlane.f32.xlu0 %v2209
        %v2211 = vpop.xlane.xlu0 %2210
        %v2213 = vlaneseq
        %v2214 = vshrl.u32 %v2213, 7
        %v2215 = vsub.s32 0, %v2214
        %v2216 = vrot.slane %v2211, %v2215
        %v2217 = vlaneseq
        %v2218 = vshrl.u32 %v2217, 7
        %v2219 = vsub.s32 1, %v2218
        %v2220 = vrot.slane %v2211, %v2219
        %v2223 = vrcp.pop %v2216
        %v2224 = vmul.f32 %v1858, %v2223
        %v2225 = vmul.f32 %v1860, %v2223
        %v2226 = vmul.f32 %v1862, %v2223
        %v2227 = vmul.f32 %v1864, %v2223
        %v2228 = vmul.f32 %v1866, %v2223
        %v2229 = vmul.f32 %v1868, %v2223
        %v2230 = vmul.f32 %v1870, %v2223
        %v2231 = vmul.f32 %v1872, %v2223
        %v2232 = vmul.f32 %v1874, %v2223
        %v2233 = vmul.f32 %v1876, %v2223
        %v2234 = vmul.f32 %v1878, %v2223
        %v2235 = vmul.f32 %v1880, %v2223
        %v2236 = vmul.f32 %v1882, %v2223
        %v2237 = vmul.f32 %v1884, %v2223
        %v2238 = vmul.f32 %v1886, %v2223
        %v2239 = vmul.f32 %v1888, %v2223
        %v2240 = vrcp.pop %v2220
        %v2241 = vmul.f32 %v1890, %v2240
        %v2242 = vmul.f32 %v1892, %v2240
        %v2243 = vmul.f32 %v1894, %v2240
        %v2244 = vmul.f32 %v1896, %v2240
        %v2245 = vmul.f32 %v1898, %v2240
        %v2246 = vmul.f32 %v1900, %v2240
        %v2247 = vmul.f32 %v1902, %v2240
        %v2248 = vmul.f32 %v1904, %v2240
        %v2249 = vmul.f32 %v1906, %v2240
        %v2250 = vmul.f32 %v1908, %v2240
        %v2251 = vmul.f32 %v1910, %v2240
        %v2252 = vmul.f32 %v1912, %v2240
        %v2253 = vmul.f32 %v1914, %v2240
        %v2254 = vmul.f32 %v1916, %v2240
        %v2255 = vmul.f32 %v1918, %v2240
        %v2256 = vmul.f32 %v1920, %v2240
        %2258 = vset.pattern.permute.xlu0 0
        %2259 = vperm.xlu0 %2258, %v2224
        %v2260 = vpop.permute.xlu0 %2259
        %2263 = vset.pattern.permute.xlu0 0
        %2264 = vperm.xlu0 %2263, %v2225
        %v2265 = vpop.permute.xlu0 %2264
        %2268 = vset.pattern.permute.xlu0 0
        %2269 = vperm.xlu0 %2268, %v2226
        %v2270 = vpop.permute.xlu0 %2269
        %2273 = vset.pattern.permute.xlu0 0
        %2274 = vperm.xlu0 %2273, %v2227
        %v2275 = vpop.permute.xlu0 %2274
        %2278 = vset.pattern.permute.xlu0 0
        %2279 = vperm.xlu0 %2278, %v2228
        %v2280 = vpop.permute.xlu0 %2279
        %2283 = vset.pattern.permute.xlu0 0
        %2284 = vperm.xlu0 %2283, %v2229
        %v2285 = vpop.permute.xlu0 %2284
        %2288 = vset.pattern.permute.xlu0 0
        %2289 = vperm.xlu0 %2288, %v2230
        %v2290 = vpop.permute.xlu0 %2289
        %2293 = vset.pattern.permute.xlu0 0
        %2294 = vperm.xlu0 %2293, %v2231
        %v2295 = vpop.permute.xlu0 %2294
        %2298 = vset.pattern.permute.xlu0 0
        %2299 = vperm.xlu0 %2298, %v2232
        %v2300 = vpop.permute.xlu0 %2299
        %2303 = vset.pattern.permute.xlu0 0
        %2304 = vperm.xlu0 %2303, %v2233
        %v2305 = vpop.permute.xlu0 %2304
        %2308 = vset.pattern.permute.xlu0 0
        %2309 = vperm.xlu0 %2308, %v2234
        %v2310 = vpop.permute.xlu0 %2309
        %2313 = vset.pattern.permute.xlu0 0
        %2314 = vperm.xlu0 %2313, %v2235
        %v2315 = vpop.permute.xlu0 %2314
        %2318 = vset.pattern.permute.xlu0 0
        %2319 = vperm.xlu0 %2318, %v2236
        %v2320 = vpop.permute.xlu0 %2319
        %2323 = vset.pattern.permute.xlu0 0
        %2324 = vperm.xlu0 %2323, %v2237
        %v2325 = vpop.permute.xlu0 %2324
        %2328 = vset.pattern.permute.xlu0 0
        %2329 = vperm.xlu0 %2328, %v2238
        %v2330 = vpop.permute.xlu0 %2329
        %2333 = vset.pattern.permute.xlu0 0
        %2334 = vperm.xlu0 %2333, %v2239
        %v2335 = vpop.permute.xlu0 %2334
        %2338 = vset.pattern.permute.xlu0 0
        %2339 = vperm.xlu0 %2338, %v2241
        %v2340 = vpop.permute.xlu0 %2339
        %2343 = vset.pattern.permute.xlu0 0
        %2344 = vperm.xlu0 %2343, %v2242
        %v2345 = vpop.permute.xlu0 %2344
        %2348 = vset.pattern.permute.xlu0 0
        %2349 = vperm.xlu0 %2348, %v2243
        %v2350 = vpop.permute.xlu0 %2349
        %2353 = vset.pattern.permute.xlu0 0
        %2354 = vperm.xlu0 %2353, %v2244
        %v2355 = vpop.permute.xlu0 %2354
        %2358 = vset.pattern.permute.xlu0 0
        %2359 = vperm.xlu0 %2358, %v2245
        %v2360 = vpop.permute.xlu0 %2359
        %2363 = vset.pattern.permute.xlu0 0
        %2364 = vperm.xlu0 %2363, %v2246
        %v2365 = vpop.permute.xlu0 %2364
        %2368 = vset.pattern.permute.xlu0 0
        %2369 = vperm.xlu0 %2368, %v2247
        %v2370 = vpop.permute.xlu0 %2369
        %2373 = vset.pattern.permute.xlu0 0
        %2374 = vperm.xlu0 %2373, %v2248
        %v2375 = vpop.permute.xlu0 %2374
        %2378 = vset.pattern.permute.xlu0 0
        %2379 = vperm.xlu0 %2378, %v2249
        %v2380 = vpop.permute.xlu0 %2379
        %2383 = vset.pattern.permute.xlu0 0
        %2384 = vperm.xlu0 %2383, %v2250
        %v2385 = vpop.permute.xlu0 %2384
        %2388 = vset.pattern.permute.xlu0 0
        %2389 = vperm.xlu0 %2388, %v2251
        %v2390 = vpop.permute.xlu0 %2389
        %2393 = vset.pattern.permute.xlu0 0
        %2394 = vperm.xlu0 %2393, %v2252
        %v2395 = vpop.permute.xlu0 %2394
        %2398 = vset.pattern.permute.xlu0 0
        %2399 = vperm.xlu0 %2398, %v2253
        %v2400 = vpop.permute.xlu0 %2399
        %2403 = vset.pattern.permute.xlu0 0
        %2404 = vperm.xlu0 %2403, %v2254
        %v2405 = vpop.permute.xlu0 %2404
        %2408 = vset.pattern.permute.xlu0 0
        %2409 = vperm.xlu0 %2408, %v2255
        %v2410 = vpop.permute.xlu0 %2409
        %2413 = vset.pattern.permute.xlu0 0
        %2414 = vperm.xlu0 %2413, %v2256
        %v2415 = vpop.permute.xlu0 %2414
        %v2417 = vmul.f32 %v2260, %v983
        %v2418 = vmul.f32 %v2265, %v984
        %v2419 = vmul.f32 %v2270, %v985
        %v2420 = vmul.f32 %v2275, %v986
        %v2421 = vmul.f32 %v2280, %v987
        %v2422 = vmul.f32 %v2285, %v988
        %v2423 = vmul.f32 %v2290, %v989
        %v2424 = vmul.f32 %v2295, %v990
        %v2425 = vmul.f32 %v2300, %v991
        %v2426 = vmul.f32 %v2305, %v992
        %v2427 = vmul.f32 %v2310, %v993
        %v2428 = vmul.f32 %v2315, %v994
        %v2429 = vmul.f32 %v2320, %v995
        %v2430 = vmul.f32 %v2325, %v996
        %v2431 = vmul.f32 %v2330, %v997
        %v2432 = vmul.f32 %v2335, %v998
        %v2433 = vmul.f32 %v2340, %v999
        %v2434 = vmul.f32 %v2345, %v1000
        %v2435 = vmul.f32 %v2350, %v1001
        %v2436 = vmul.f32 %v2355, %v1002
        %v2437 = vmul.f32 %v2360, %v1003
        %v2438 = vmul.f32 %v2365, %v1004
        %v2439 = vmul.f32 %v2370, %v1005
        %v2440 = vmul.f32 %v2375, %v1006
        %v2441 = vmul.f32 %v2380, %v1007
        %v2442 = vmul.f32 %v2385, %v1008
        %v2443 = vmul.f32 %v2390, %v1009
        %v2444 = vmul.f32 %v2395, %v1010
        %v2445 = vmul.f32 %v2400, %v1011
        %v2446 = vmul.f32 %v2405, %v1012
        %v2447 = vmul.f32 %v2410, %v1013
        %v2448 = vmul.f32 %v2415, %v1014
        %v2449 = vsel %vm1034, %v2417, 0.0
        %v2450 = vsel %vm1034, %v2418, 0.0
        %v2451 = vadd.f32 %v2449, %v2450
        %v2452 = vsel %vm1034, %v2419, 0.0
        %v2453 = vadd.f32 %v2451, %v2452
        %v2454 = vsel %vm1034, %v2420, 0.0
        %v2455 = vadd.f32 %v2453, %v2454
        %v2456 = vsel %vm1034, %v2421, 0.0
        %v2457 = vadd.f32 %v2455, %v2456
        %v2458 = vsel %vm1034, %v2422, 0.0
        %v2459 = vadd.f32 %v2457, %v2458
        %v2460 = vsel %vm1034, %v2423, 0.0
        %v2461 = vadd.f32 %v2459, %v2460
        %v2462 = vsel %vm1034, %v2424, 0.0
        %v2463 = vadd.f32 %v2461, %v2462
        %v2464 = vsel %vm1034, %v2425, 0.0
        %v2465 = vadd.f32 %v2463, %v2464
        %v2466 = vsel %vm1034, %v2426, 0.0
        %v2467 = vadd.f32 %v2465, %v2466
        %v2468 = vsel %vm1034, %v2427, 0.0
        %v2469 = vadd.f32 %v2467, %v2468
        %v2470 = vsel %vm1034, %v2428, 0.0
        %v2471 = vadd.f32 %v2469, %v2470
        %v2472 = vsel %vm1034, %v2429, 0.0
        %v2473 = vadd.f32 %v2471, %v2472
        %v2474 = vsel %vm1034, %v2430, 0.0
        %v2475 = vadd.f32 %v2473, %v2474
        %v2476 = vsel %vm1034, %v2431, 0.0
        %v2477 = vadd.f32 %v2475, %v2476
        %v2478 = vsel %vm1034, %v2432, 0.0
        %v2479 = vadd.f32 %v2477, %v2478
        %v2480 = vrot.slane %v2479, 4
        %v2481 = vadd.f32 %v2479, %v2480
        %v2482 = vrot.slane %v2481, 2
        %v2483 = vadd.f32 %v2481, %v2482
        %v2484 = vrot.slane %v2483, 1
        %v2485 = vadd.f32 %v2483, %v2484
        %v2486 = vsel %vm1034, %v2433, 0.0
        %v2487 = vsel %vm1034, %v2434, 0.0
        %v2488 = vadd.f32 %v2486, %v2487
        %v2489 = vsel %vm1034, %v2435, 0.0
        %v2490 = vadd.f32 %v2488, %v2489
        %v2491 = vsel %vm1034, %v2436, 0.0
        %v2492 = vadd.f32 %v2490, %v2491
        %v2493 = vsel %vm1034, %v2437, 0.0
        %v2494 = vadd.f32 %v2492, %v2493
        %v2495 = vsel %vm1034, %v2438, 0.0
        %v2496 = vadd.f32 %v2494, %v2495
        %v2497 = vsel %vm1034, %v2439, 0.0
        %v2498 = vadd.f32 %v2496, %v2497
        %v2499 = vsel %vm1034, %v2440, 0.0
        %v2500 = vadd.f32 %v2498, %v2499
        %v2501 = vsel %vm1034, %v2441, 0.0
        %v2502 = vadd.f32 %v2500, %v2501
        %v2503 = vsel %vm1034, %v2442, 0.0
        %v2504 = vadd.f32 %v2502, %v2503
        %v2505 = vsel %vm1034, %v2443, 0.0
        %v2506 = vadd.f32 %v2504, %v2505
        %v2507 = vsel %vm1034, %v2444, 0.0
        %v2508 = vadd.f32 %v2506, %v2507
        %v2509 = vsel %vm1034, %v2445, 0.0
        %v2510 = vadd.f32 %v2508, %v2509
        %v2511 = vsel %vm1034, %v2446, 0.0
        %v2512 = vadd.f32 %v2510, %v2511
        %v2513 = vsel %vm1034, %v2447, 0.0
        %v2514 = vadd.f32 %v2512, %v2513
        %v2515 = vsel %vm1034, %v2448, 0.0
        %v2516 = vadd.f32 %v2514, %v2515
        %v2517 = vrot.slane %v2516, 4
        %v2518 = vadd.f32 %v2516, %v2517
        %v2519 = vrot.slane %v2518, 2
        %v2520 = vadd.f32 %v2518, %v2519
        %v2521 = vrot.slane %v2520, 1
        %v2522 = vadd.f32 %v2520, %v2521
        %v2525 = vsel %vm1807, %v2522, %v2485
        %2526 = vrot.lane.b32.xlu0 %v2525, 32
        %v2527 = vpop.permute.xlu0 %2526
        %2530 = vrot.lane.b32.xlu0 %v1015, 64
        %v2531 = vpop.permute.xlu0 %2530
        %v2533 = vsel %vm1034, %v1018, %v2527
        %vm2534 = vcmask 523264
        %v2535 = vsel %vm2534, %v2533, %v2531
        %v2536 = vld [vmem:[%s9] sm:$0xf]
        %v2537 = vld [vmem:[%s9 + $0x4] sm:$0xf]
        %v2538 = vld [vmem:[%s9 + $0x8] sm:$0xf]
        %v2539 = vld [vmem:[%s9 + $0xc] sm:$0xf]
        %v2540 = vld [vmem:[%s9 + $0x10] sm:$0xf]
        %v2541 = vld [vmem:[%s9 + $0x14] sm:$0xf]
        %v2542 = vld [vmem:[%s9 + $0x18] sm:$0xf]
        %v2543 = vld [vmem:[%s9 + $0x1c] sm:$0xf]
        %v2544 = vld [vmem:[%s9 + $0x20] sm:$0xf]
        %v2545 = vld [vmem:[%s9 + $0x24] sm:$0xf]
        %v2546 = vld [vmem:[%s9 + $0x28] sm:$0xf]
        %v2547 = vld [vmem:[%s9 + $0x2c] sm:$0xf]
        %v2548 = vunpack.c.l.bf16 %v2536
        %v2549 = vunpack.c.l.bf16 %v2537
        %v2550 = vunpack.c.l.bf16 %v2538
        %v2551 = vunpack.c.l.bf16 %v2539
        %v2552 = vunpack.c.l.bf16 %v2540
        %v2553 = vunpack.c.l.bf16 %v2541
        %v2554 = vunpack.c.l.bf16 %v2542
        %v2555 = vunpack.c.l.bf16 %v2543
        %v2556 = vunpack.c.l.bf16 %v2544
        %v2557 = vunpack.c.l.bf16 %v2545
        %v2558 = vunpack.c.l.bf16 %v2546
        %v2559 = vunpack.c.l.bf16 %v2547
        %v2560 = vld [vmem:[%s10] sm:$0x1]
        %v2562 = vlaneseq
        %v2563 = vshrl.u32 %v2562, 7
        %v2564 = vsub.s32 0, %v2563
        %v2565 = vrot.slane %v2560, %v2564
        %vm2567 = vcmask 785408
        %v2569 = vsel %vm2567, %v2535, 0
        %2571 = vmatprep.subr.mxu0 0.0
        %2572 = vmatpush1.msra.mxu0 %v2548
        %2573 = vmatprep.subr.mxu0 0.0
        %2574 = vmatpush1.msra.mxu0 %v2549
        %2575 = vmatprep.subr.mxu0 0.0
        %2576 = vmatpush1.msra.mxu0 %v2550
        %2577 = vmatprep.subr.mxu0 0.0
        %2578 = vmatpush1.msra.mxu0 %v2551
        %2579 = vmatprep.subr.mxu0 0.0
        %2580 = vmatpush1.msra.mxu0 %v2552
        %2581 = vmatprep.subr.mxu0 0.0
        %2582 = vmatpush1.msra.mxu0 %v2553
        %2583 = vmatprep.subr.mxu0 0.0
        %2584 = vmatpush1.msra.mxu0 %v2554
        %2585 = vmatprep.subr.mxu0 0.0
        %2586 = vmatpush1.msra.mxu0 %v2555
        %2587 = vmatprep.subr.mxu0 0.0
        %2588 = vmatpush1.msra.mxu0 %v2556
        %2589 = vmatprep.subr.mxu0 0.0
        %2590 = vmatpush1.msra.mxu0 %v2557
        %2591 = vmatprep.subr.mxu0 0.0
        %2592 = vmatpush1.msra.mxu0 %v2558
        %2593 = vmatprep.subr.mxu0 0.0
        %2594 = vmatpush1.msra.mxu0 %v2559
        %2595 = vmatprep.subr.mxu0 0.0
        %2596 = vmatpush1.msra.mxu0 0.0
        %2597 = vmatprep.subr.mxu0 0.0
        %2598 = vmatpush1.msra.mxu0 0.0
        %2599 = vmatprep.subr.mxu0 0.0
        %2600 = vmatpush1.msra.mxu0 0.0
        %2601 = vmatprep.subr.mxu0 0.0
        %2602 = vmatpush1.msra.mxu0 0.0
        %2603 = vmatprep.subr.mxu0 0.0
        %2604 = vmatpush1.msra.mxu0 0.0
        %2605 = vmatprep.subr.mxu0 0.0
        %2606 = vmatpush1.msra.mxu0 0.0
        %2607 = vmatprep.subr.mxu0 0.0
        %2608 = vmatpush1.msra.mxu0 0.0
        %2609 = vmatprep.subr.mxu0 0.0
        %2610 = vmatpush1.msra.mxu0 0.0
        %2611 = vmatprep.subr.mxu0 0.0
        %2612 = vmatpush1.msra.mxu0 0.0
        %2613 = vmatprep.subr.mxu0 0.0
        %2614 = vmatpush1.msra.mxu0 0.0
        %2615 = vmatprep.subr.mxu0 0.0
        %2616 = vmatpush1.msra.mxu0 0.0
        %2617 = vmatprep.subr.mxu0 0.0
        %2618 = vmatpush1.msra.mxu0 0.0
        %2619 = vmatprep.subr.mxu0 0.0
        %2620 = vmatpush1.msra.mxu0 0.0
        %2621 = vmatprep.subr.mxu0 0.0
        %2622 = vmatpush1.msra.mxu0 0.0
        %2623 = vmatprep.subr.mxu0 0.0
        %2624 = vmatpush1.msra.mxu0 0.0
        %2625 = vmatprep.subr.mxu0 0.0
        %2626 = vmatpush1.msra.mxu0 0.0
        %2627 = vmatprep.subr.mxu0 0.0
        %2628 = vmatpush1.msra.mxu0 0.0
        %2629 = vmatprep.subr.mxu0 0.0
        %2630 = vmatpush1.msra.mxu0 0.0
        %2631 = vmatprep.subr.mxu0 0.0
        %2632 = vmatpush1.msra.mxu0 0.0
        %2633 = vmatprep.subr.mxu0 0.0
        %2634 = vmatpush1.msra.mxu0 0.0
        %2635 = vmatprep.mubr.f32.mxu0 0.0
        %2636 = vmatmul.mubr.f32.gmra.mrb[0].mxu0 %v2569
        %v2637 = vpop.f32.mrb[0].mxu0
        %v2638 = vadd.f32 %v2565, %v2637
        %v2639 = vpop.f32.mrb[0].mxu0
        %2640 = vdwg.mxu0
        %v2641 = vxor.u32 %v2638, 2147483648
        %v2642 = vmul.f32 %v2641, 1.442695
        %v2643 = vpow.pop %v2642
        %v2644 = vadd.f32 %v2643, 1.0
        %v2645 = vrcp.pop %v2644
        %v2646 = vmul.f32 1.0, %v2645
        %v2647 = vtanh.pop %v2638
        %2649 = vrot.lane.b32.xlu0 %v2647, 96
        %v2650 = vpop.permute.xlu0 %2649
        %v2652 = vmul.f32 %v2646, %v2650
        %v2653 = vtanh.pop %v2652
        %2655 = vrot.lane.b32.xlu0 %v2653, 64
        %v2656 = vpop.permute.xlu0 %2655
        %v2658 = vmul.f32 %v2646, %v2656
        %2660 = vrot.lane.b32.xlu0 %v2658, 64
        %v2661 = vpop.permute.xlu0 %2660
        %2663 = vrot.lane.b32.xlu0 %v1017, 32
        %v2664 = vpop.permute.xlu0 %2663
        %v2666 = vsel %vm1034, %v2661, %v2664
        %v2667 = vld [vmem:[%s11] sm:$0xf]
        %v2668 = vld [vmem:[%s11 + $0x4] sm:$0xf]
        %v2669 = vld [vmem:[%s11 + $0x8] sm:$0xf]
        %v2670 = vld [vmem:[%s11 + $0xc] sm:$0xf]
        %v2671 = vld [vmem:[%s11 + $0x10] sm:$0xf]
        %v2672 = vld [vmem:[%s11 + $0x14] sm:$0xf]
        %v2673 = vld [vmem:[%s11 + $0x18] sm:$0xf]
        %v2674 = vld [vmem:[%s11 + $0x1c] sm:$0xf]
        %v2675 = vunpack.c.l.bf16 %v2667
        %v2676 = vunpack.c.l.bf16 %v2668
        %v2677 = vunpack.c.l.bf16 %v2669
        %v2678 = vunpack.c.l.bf16 %v2670
        %v2679 = vunpack.c.l.bf16 %v2671
        %v2680 = vunpack.c.l.bf16 %v2672
        %v2681 = vunpack.c.l.bf16 %v2673
        %v2682 = vunpack.c.l.bf16 %v2674
        %v2683 = vld [vmem:[%s12] sm:$0x1]
        %v2685 = vlaneseq
        %v2686 = vshrl.u32 %v2685, 7
        %v2687 = vsub.s32 0, %v2686
        %v2688 = vrot.slane %v2683, %v2687
        %v2691 = vsel %vm2534, %v2666, 0
        %2693 = vmatprep.subr.mxu0 0.0
        %2694 = vmatpush1.msra.mxu0 %v2675
        %2695 = vmatprep.subr.mxu0 0.0
        %2696 = vmatpush1.msra.mxu0 %v2676
        %2697 = vmatprep.subr.mxu0 0.0
        %2698 = vmatpush1.msra.mxu0 %v2677
        %2699 = vmatprep.subr.mxu0 0.0
        %2700 = vmatpush1.msra.mxu0 %v2678
        %2701 = vmatprep.subr.mxu0 0.0
        %2702 = vmatpush1.msra.mxu0 %v2679
        %2703 = vmatprep.subr.mxu0 0.0
        %2704 = vmatpush1.msra.mxu0 %v2680
        %2705 = vmatprep.subr.mxu0 0.0
        %2706 = vmatpush1.msra.mxu0 %v2681
        %2707 = vmatprep.subr.mxu0 0.0
        %2708 = vmatpush1.msra.mxu0 %v2682
        %2709 = vmatprep.subr.mxu0 0.0
        %2710 = vmatpush1.msra.mxu0 0.0
        %2711 = vmatprep.subr.mxu0 0.0
        %2712 = vmatpush1.msra.mxu0 0.0
        %2713 = vmatprep.subr.mxu0 0.0
        %2714 = vmatpush1.msra.mxu0 0.0
        %2715 = vmatprep.subr.mxu0 0.0
        %2716 = vmatpush1.msra.mxu0 0.0
        %2717 = vmatprep.subr.mxu0 0.0
        %2718 = vmatpush1.msra.mxu0 0.0
        %2719 = vmatprep.subr.mxu0 0.0
        %2720 = vmatpush1.msra.mxu0 0.0
        %2721 = vmatprep.subr.mxu0 0.0
        %2722 = vmatpush1.msra.mxu0 0.0
        %2723 = vmatprep.subr.mxu0 0.0
        %2724 = vmatpush1.msra.mxu0 0.0
        %2725 = vmatprep.subr.mxu0 0.0
        %2726 = vmatpush1.msra.mxu0 0.0
        %2727 = vmatprep.subr.mxu0 0.0
        %2728 = vmatpush1.msra.mxu0 0.0
        %2729 = vmatprep.subr.mxu0 0.0
        %2730 = vmatpush1.msra.mxu0 0.0
        %2731 = vmatprep.subr.mxu0 0.0
        %2732 = vmatpush1.msra.mxu0 0.0
        %2733 = vmatprep.subr.mxu0 0.0
        %2734 = vmatpush1.msra.mxu0 0.0
        %2735 = vmatprep.subr.mxu0 0.0
        %2736 = vmatpush1.msra.mxu0 0.0
        %2737 = vmatprep.subr.mxu0 0.0
        %2738 = vmatpush1.msra.mxu0 0.0
        %2739 = vmatprep.subr.mxu0 0.0
        %2740 = vmatpush1.msra.mxu0 0.0
        %2741 = vmatprep.subr.mxu0 0.0
        %2742 = vmatpush1.msra.mxu0 0.0
        %2743 = vmatprep.subr.mxu0 0.0
        %2744 = vmatpush1.msra.mxu0 0.0
        %2745 = vmatprep.subr.mxu0 0.0
        %2746 = vmatpush1.msra.mxu0 0.0
        %2747 = vmatprep.subr.mxu0 0.0
        %2748 = vmatpush1.msra.mxu0 0.0
        %2749 = vmatprep.subr.mxu0 0.0
        %2750 = vmatpush1.msra.mxu0 0.0
        %2751 = vmatprep.subr.mxu0 0.0
        %2752 = vmatpush1.msra.mxu0 0.0
        %2753 = vmatprep.subr.mxu0 0.0
        %2754 = vmatpush1.msra.mxu0 0.0
        %2755 = vmatprep.subr.mxu0 0.0
        %2756 = vmatpush1.msra.mxu0 0.0
        %2757 = vmatprep.mubr.f32.mxu0 0.0
        %2758 = vmatmul.mubr.f32.gmra.mrb[0].mxu0 %v2691
        %v2759 = vpop.f32.mrb[0].mxu0
        %v2760 = vadd.f32 %v2688, %v2759
        %v2761 = vpop.f32.mrb[0].mxu0
        %2762 = vdwg.mxu0
        %v2763 = vxor.u32 %v2760, 2147483648
        %v2764 = vmul.f32 %v2763, 1.442695
        %v2765 = vpow.pop %v2764
        %v2766 = vadd.f32 %v2765, 1.0
        %v2767 = vrcp.pop %v2766
        %v2768 = vmul.f32 1.0, %v2767
        %v2769 = vtanh.pop %v2760
        %2771 = vrot.lane.b32.xlu0 %v2769, 96
        %v2772 = vpop.permute.xlu0 %2771
        %v2774 = vmul.f32 %v2768, %v2772
        %v2775 = vtanh.pop %v2774
        %2777 = vrot.lane.b32.xlu0 %v2775, 64
        %v2778 = vpop.permute.xlu0 %2777
        %v2780 = vmul.f32 %v2768, %v2778
        %v2781 = vld [vmem:[%s13] sm:$0xf]
        %v2782 = vld [vmem:[%s13 + $0x4] sm:$0xf]
        %v2783 = vld [vmem:[%s13 + $0x8] sm:$0xf]
        %v2784 = vld [vmem:[%s13 + $0xc] sm:$0xf]
        %v2785 = vunpack.c.l.bf16 %v2781
        %v2786 = vunpack.c.l.bf16 %v2782
        %v2787 = vunpack.c.l.bf16 %v2783
        %v2788 = vunpack.c.l.bf16 %v2784
        %v2789 = vld [vmem:[%s14] sm:$0x1]
        %v2791 = vlaneseq
        %v2792 = vshrl.u32 %v2791, 7
        %v2793 = vsub.s32 0, %v2792
        %v2794 = vrot.slane %v2789, %v2793
        %2797 = vrot.lane.b32.xlu0 %v2780, 64
        %v2798 = vpop.permute.xlu0 %2797
        %v2799 = vsel %vm1034, %v2798, 0
        %2801 = vmatprep.subr.mxu0 0.0
        %2802 = vmatpush1.msra.mxu0 %v2785
        %2803 = vmatprep.subr.mxu0 0.0
        %2804 = vmatpush1.msra.mxu0 %v2786
        %2805 = vmatprep.subr.mxu0 0.0
        %2806 = vmatpush1.msra.mxu0 %v2787
        %2807 = vmatprep.subr.mxu0 0.0
        %2808 = vmatpush1.msra.mxu0 %v2788
        %2809 = vmatprep.subr.mxu0 0.0
        %2810 = vmatpush1.msra.mxu0 0.0
        %2811 = vmatprep.subr.mxu0 0.0
        %2812 = vmatpush1.msra.mxu0 0.0
        %2813 = vmatprep.subr.mxu0 0.0
        %2814 = vmatpush1.msra.mxu0 0.0
        %2815 = vmatprep.subr.mxu0 0.0
        %2816 = vmatpush1.msra.mxu0 0.0
        %2817 = vmatprep.subr.mxu0 0.0
        %2818 = vmatpush1.msra.mxu0 0.0
        %2819 = vmatprep.subr.mxu0 0.0
        %2820 = vmatpush1.msra.mxu0 0.0
        %2821 = vmatprep.subr.mxu0 0.0
        %2822 = vmatpush1.msra.mxu0 0.0
        %2823 = vmatprep.subr.mxu0 0.0
        %2824 = vmatpush1.msra.mxu0 0.0
        %2825 = vmatprep.subr.mxu0 0.0
        %2826 = vmatpush1.msra.mxu0 0.0
        %2827 = vmatprep.subr.mxu0 0.0
        %2828 = vmatpush1.msra.mxu0 0.0
        %2829 = vmatprep.subr.mxu0 0.0
        %2830 = vmatpush1.msra.mxu0 0.0
        %2831 = vmatprep.subr.mxu0 0.0
        %2832 = vmatpush1.msra.mxu0 0.0
        %2833 = vmatprep.subr.mxu0 0.0
        %2834 = vmatpush1.msra.mxu0 0.0
        %2835 = vmatprep.subr.mxu0 0.0
        %2836 = vmatpush1.msra.mxu0 0.0
        %2837 = vmatprep.subr.mxu0 0.0
        %2838 = vmatpush1.msra.mxu0 0.0
        %2839 = vmatprep.subr.mxu0 0.0
        %2840 = vmatpush1.msra.mxu0 0.0
        %2841 = vmatprep.subr.mxu0 0.0
        %2842 = vmatpush1.msra.mxu0 0.0
        %2843 = vmatprep.subr.mxu0 0.0
        %2844 = vmatpush1.msra.mxu0 0.0
        %2845 = vmatprep.subr.mxu0 0.0
        %2846 = vmatpush1.msra.mxu0 0.0
        %2847 = vmatprep.subr.mxu0 0.0
        %2848 = vmatpush1.msra.mxu0 0.0
        %2849 = vmatprep.subr.mxu0 0.0
        %2850 = vmatpush1.msra.mxu0 0.0
        %2851 = vmatprep.subr.mxu0 0.0
        %2852 = vmatpush1.msra.mxu0 0.0
        %2853 = vmatprep.subr.mxu0 0.0
        %2854 = vmatpush1.msra.mxu0 0.0
        %2855 = vmatprep.subr.mxu0 0.0
        %2856 = vmatpush1.msra.mxu0 0.0
        %2857 = vmatprep.subr.mxu0 0.0
        %2858 = vmatpush1.msra.mxu0 0.0
        %2859 = vmatprep.subr.mxu0 0.0
        %2860 = vmatpush1.msra.mxu0 0.0
        %2861 = vmatprep.subr.mxu0 0.0
        %2862 = vmatpush1.msra.mxu0 0.0
        %2863 = vmatprep.subr.mxu0 0.0
        %2864 = vmatpush1.msra.mxu0 0.0
        %2865 = vmatprep.mubr.f32.mxu0 0.0
        %2866 = vmatmul.mubr.f32.gmra.mrb[0].mxu0 %v2799
        %v2867 = vpop.f32.mrb[0].mxu0
        %v2868 = vadd.f32 %v2794, %v2867
        %v2869 = vpop.f32.mrb[0].mxu0
        %2870 = vdwg.mxu0
        %v2871 = vsel %vm1810, %v2868, -inf
        %2872 = vmax.xlane.f32.xlu0 %v2871
        %v2873 = vpop.xlane.xlu0 %2872
        %v2874 = vsub.f32 %v2868, %v2873
        %v2875 = vmul.f32 %v2874, 1.442695
        %v2876 = vpow.pop %v2875
        %v2877 = vsel %vm1810, %v2876, 0.0
        %2878 = vadd.xlane.f32.xlu0 %v2877
        %v2879 = vpop.xlane.xlu0 %2878
        %v2880 = vlog2.pop %v2879
        %v2881 = vmul.f32 %v2880, 0.6931472
        %v2882 = vadd.f32 %v2873, %v2881
        %v2883 = vsub.f32 %v2868, %v2882
        %2884 = vst [vmem:[%s525] sm:$0x3] %v2883
        %v2885 = vlaneseq
        %v2886 = vshrl.u32 %v2885, 7
        %v2887 = vsub.s32 %v1618, %v2886
        %v2888 = vrot.slane %v2260, %v2887
        %v2889 = vlaneseq
        %v2890 = vshrl.u32 %v2889, 7
        %v2891 = vsub.s32 %v1623, %v2890
        %v2892 = vrot.slane %v2265, %v2891
        %v2893 = vsel %vm1628, %v2892, %v2888
        %v2894 = vlaneseq
        %v2895 = vshrl.u32 %v2894, 7
        %v2896 = vsub.s32 %v1630, %v2895
        %v2897 = vrot.slane %v2270, %v2896
        %v2898 = vsel %vm1635, %v2897, %v2893
        %v2899 = vlaneseq
        %v2900 = vshrl.u32 %v2899, 7
        %v2901 = vsub.s32 %v1637, %v2900
        %v2902 = vrot.slane %v2275, %v2901
        %v2903 = vsel %vm1642, %v2902, %v2898
        %v2904 = vlaneseq
        %v2905 = vshrl.u32 %v2904, 7
        %v2906 = vsub.s32 %v1644, %v2905
        %v2907 = vrot.slane %v2280, %v2906
        %v2908 = vsel %vm1649, %v2907, %v2903
        %v2909 = vlaneseq
        %v2910 = vshrl.u32 %v2909, 7
        %v2911 = vsub.s32 %v1651, %v2910
        %v2912 = vrot.slane %v2285, %v2911
        %v2913 = vsel %vm1656, %v2912, %v2908
        %v2914 = vlaneseq
        %v2915 = vshrl.u32 %v2914, 7
        %v2916 = vsub.s32 %v1658, %v2915
        %v2917 = vrot.slane %v2290, %v2916
        %v2918 = vsel %vm1663, %v2917, %v2913
        %v2919 = vlaneseq
        %v2920 = vshrl.u32 %v2919, 7
        %v2921 = vsub.s32 %v1665, %v2920
        %v2922 = vrot.slane %v2295, %v2921
        %v2923 = vsel %vm1670, %v2922, %v2918
        %v2924 = vlaneseq
        %v2925 = vshrl.u32 %v2924, 7
        %v2926 = vsub.s32 %v1672, %v2925
        %v2927 = vrot.slane %v2300, %v2926
        %v2928 = vsel %vm1677, %v2927, %v2923
        %v2929 = vlaneseq
        %v2930 = vshrl.u32 %v2929, 7
        %v2931 = vsub.s32 %v1679, %v2930
        %v2932 = vrot.slane %v2305, %v2931
        %v2933 = vsel %vm1684, %v2932, %v2928
        %v2934 = vlaneseq
        %v2935 = vshrl.u32 %v2934, 7
        %v2936 = vsub.s32 %v1686, %v2935
        %v2937 = vrot.slane %v2310, %v2936
        %v2938 = vsel %vm1691, %v2937, %v2933
        %v2939 = vlaneseq
        %v2940 = vshrl.u32 %v2939, 7
        %v2941 = vsub.s32 %v1693, %v2940
        %v2942 = vrot.slane %v2315, %v2941
        %v2943 = vsel %vm1698, %v2942, %v2938
        %v2944 = vlaneseq
        %v2945 = vshrl.u32 %v2944, 7
        %v2946 = vsub.s32 %v1700, %v2945
        %v2947 = vrot.slane %v2320, %v2946
        %v2948 = vsel %vm1705, %v2947, %v2943
        %v2949 = vlaneseq
        %v2950 = vshrl.u32 %v2949, 7
        %v2951 = vsub.s32 %v1707, %v2950
        %v2952 = vrot.slane %v2325, %v2951
        %v2953 = vsel %vm1712, %v2952, %v2948
        %v2954 = vlaneseq
        %v2955 = vshrl.u32 %v2954, 7
        %v2956 = vsub.s32 %v1714, %v2955
        %v2957 = vrot.slane %v2330, %v2956
        %v2958 = vsel %vm1719, %v2957, %v2953
        %v2959 = vlaneseq
        %v2960 = vshrl.u32 %v2959, 7
        %v2961 = vsub.s32 %v1721, %v2960
        %v2962 = vrot.slane %v2335, %v2961
        %v2963 = vsel %vm1726, %v2962, %v2958
        %v2964 = vlaneseq
        %v2965 = vshrl.u32 %v2964, 7
        %v2966 = vsub.s32 %v1618, %v2965
        %v2967 = vrot.slane %v2340, %v2966
        %v2968 = vlaneseq
        %v2969 = vshrl.u32 %v2968, 7
        %v2970 = vsub.s32 %v1623, %v2969
        %v2971 = vrot.slane %v2345, %v2970
        %v2972 = vsel %vm1628, %v2971, %v2967
        %v2973 = vlaneseq
        %v2974 = vshrl.u32 %v2973, 7
        %v2975 = vsub.s32 %v1630, %v2974
        %v2976 = vrot.slane %v2350, %v2975
        %v2977 = vsel %vm1635, %v2976, %v2972
        %v2978 = vlaneseq
        %v2979 = vshrl.u32 %v2978, 7
        %v2980 = vsub.s32 %v1637, %v2979
        %v2981 = vrot.slane %v2355, %v2980
        %v2982 = vsel %vm1642, %v2981, %v2977
        %v2983 = vlaneseq
        %v2984 = vshrl.u32 %v2983, 7
        %v2985 = vsub.s32 %v1644, %v2984
        %v2986 = vrot.slane %v2360, %v2985
        %v2987 = vsel %vm1649, %v2986, %v2982
        %v2988 = vlaneseq
        %v2989 = vshrl.u32 %v2988, 7
        %v2990 = vsub.s32 %v1651, %v2989
        %v2991 = vrot.slane %v2365, %v2990
        %v2992 = vsel %vm1656, %v2991, %v2987
        %v2993 = vlaneseq
        %v2994 = vshrl.u32 %v2993, 7
        %v2995 = vsub.s32 %v1658, %v2994
        %v2996 = vrot.slane %v2370, %v2995
        %v2997 = vsel %vm1663, %v2996, %v2992
        %v2998 = vlaneseq
        %v2999 = vshrl.u32 %v2998, 7
        %v3000 = vsub.s32 %v1665, %v2999
        %v3001 = vrot.slane %v2375, %v3000
        %v3002 = vsel %vm1670, %v3001, %v2997
        %v3003 = vlaneseq
        %v3004 = vshrl.u32 %v3003, 7
        %v3005 = vsub.s32 %v1672, %v3004
        %v3006 = vrot.slane %v2380, %v3005
        %v3007 = vsel %vm1677, %v3006, %v3002
        %v3008 = vlaneseq
        %v3009 = vshrl.u32 %v3008, 7
        %v3010 = vsub.s32 %v1679, %v3009
        %v3011 = vrot.slane %v2385, %v3010
        %v3012 = vsel %vm1684, %v3011, %v3007
        %v3013 = vlaneseq
        %v3014 = vshrl.u32 %v3013, 7
        %v3015 = vsub.s32 %v1686, %v3014
        %v3016 = vrot.slane %v2390, %v3015
        %v3017 = vsel %vm1691, %v3016, %v3012
        %v3018 = vlaneseq
        %v3019 = vshrl.u32 %v3018, 7
        %v3020 = vsub.s32 %v1693, %v3019
        %v3021 = vrot.slane %v2395, %v3020
        %v3022 = vsel %vm1698, %v3021, %v3017
        %v3023 = vlaneseq
        %v3024 = vshrl.u32 %v3023, 7
        %v3025 = vsub.s32 %v1700, %v3024
        %v3026 = vrot.slane %v2400, %v3025
        %v3027 = vsel %vm1705, %v3026, %v3022
        %v3028 = vlaneseq
        %v3029 = vshrl.u32 %v3028, 7
        %v3030 = vsub.s32 %v1707, %v3029
        %v3031 = vrot.slane %v2405, %v3030
        %v3032 = vsel %vm1712, %v3031, %v3027
        %v3033 = vlaneseq
        %v3034 = vshrl.u32 %v3033, 7
        %v3035 = vsub.s32 %v1714, %v3034
        %v3036 = vrot.slane %v2410, %v3035
        %v3037 = vsel %vm1719, %v3036, %v3032
        %v3038 = vlaneseq
        %v3039 = vshrl.u32 %v3038, 7
        %v3040 = vsub.s32 %v1721, %v3039
        %v3041 = vrot.slane %v2415, %v3040
        %v3042 = vsel %vm1726, %v3041, %v3037
        %v3043 = vsel %vm1807, %v3042, %v2963
        %3045 = vst [vmem:[%s532] sm:$0x3] %v3043
        %vm3046 = vcmask 254976
        %3047 = vst.msk [vmem:[#allocation9] sm:$0x3] %vm3046, %v2661
        %3049 = vst.msk [vmem:[%s1016] sm:$0x3] %vm3046, %v2798
        %3050 = vmax.index.xlane.f32.xlu0 %v2871
        %v3051 = vpop.xlane.xlu0 %3050
        %v3052 = vlaneseq
        %v3053 = vshrl.u32 %v3052, 7
        %v3054 = vsub.s32 %v1618, %v3053
        %v3055 = vrot.slane %v3051, %v3054
        %vm3056 = vcmask 8192
        %3057 = vst.msk [vmem:[#allocation4] sm:$0x1] %vm3056, %v3055
        %v3058 = vld [vmem:[#allocation4] sm:$0x1]
        %s3059 = vtos %v3058
        %s3060 = scalar_lea.vmem %s2, %s3059
        %v3061 = vld [vmem:[%s3060] sm:$0x1]
        %3062 = vrot.lane.b32.xlu0 %v3058, 127
        %v3063 = vpop.permute.xlu0 %3062
        %s3064 = vtos %v3063
        %s3065 = scalar_lea.vmem %s2, %s3064
        %v3066 = vld [vmem:[%s3065] sm:$0x1]
        %v3068 = vrot.slane %v3066, 7
        %vm3070 = vcmask 1040384
        %v3071 = vsel %vm3070, %v3061, %v3068
        %3072 = vst.msk [vmem:[#allocation3] sm:$0x3] %vm3046, %v3071
        %s3073 = sand.u32 %s358, 1
        %s3074 = scalar_lea.sflag [#allocation6], %s3073
        %s3075 = sand.u32 %s358, 1
        %s3076 = smul.addr %s3075, 2
        %s3077 = scalar_lea.vmem [#allocation5], %s3076
        %s3078 = sand.u32 %s35, 1
        %s3079 = scalar_lea.sflag [#allocation8], %s3078
        %s3080 = sand.u32 %s384, 1
        %s3081 = smul.addr %s3080, 2
        %s3082 = scalar_lea.vmem [#allocation7], %s3081
        // Predicated region
        $region85: #{tpu_custom_call.1} parent=79 // pred_check
          %p3083 = pneg %p368
        $region86: #{tpu_custom_call.1} parent=79 // pred_check_branch
          %3085 = sbr.rel (%p3083) target = $region88
        $region87: #{tpu_custom_call.1} parent=79 // pred_region
          %s3087 = ssub.s32 32, 32
          %3088 = vsyncadd %s3074, %s3087
          %s3089 = smul.addr %s35, 32
          %s3090 = scalar_lea.hbm %s15, %s3089
          %s3092 = sshll.u32 %s3077, 4
          %s3093 = int_to_ptr.vmem [resolvable:$true] %s3092
          %3095 = dma.vmem_to_hbm [thread:$0]  %s3093, 32, %s3090, %s3074
        $region88: #{tpu_custom_call.1} parent=79 // pred_fallthru
          _
        // Predicated region
        $region89: #{tpu_custom_call.1} parent=79 // pred_check
          %p3096 = pneg %p394
        $region90: #{tpu_custom_call.1} parent=79 // pred_check_branch
          %3098 = sbr.rel (%p3096) target = $region92
        $region91: #{tpu_custom_call.1} parent=79 // pred_region
          %s3100 = ssub.s32 32, 32
          %3101 = vsyncadd %s3079, %s3100
          %s3102 = smul.addr %s35, 32
          %s3103 = scalar_lea.hbm %s16, %s3102
          %s3105 = sshll.u32 %s3082, 4
          %s3106 = int_to_ptr.vmem [resolvable:$true] %s3105
          %3108 = dma.vmem_to_hbm [thread:$0]  %s3106, 32, %s3103, %s3079
        $region92: #{tpu_custom_call.1} parent=79 // pred_fallthru
          _
        // Predicated region
        $region93: #{tpu_custom_call.1} parent=79 // pred_check
          %p3109 = pneg %p415
        $region94: #{tpu_custom_call.1} parent=79 // pred_check_branch
          %3111 = sbr.rel (%p3109) target = $region96
        $region95: #{tpu_custom_call.1} parent=79 // pred_region
          %s3113 = ssub.s32 64, 64
          %3114 = vsyncadd [#allocation8], %s3113
          %s3115 = sshll.u32 [#allocation9], 4
          %s3116 = int_to_ptr.vmem [resolvable:$true] %s3115
          %3121 = dma.vmem_to_hbm [thread:$0]  %s3116, 64, %s17, [#allocation8], 32, 32, 2
        $region96: #{tpu_custom_call.1} parent=79 // pred_fallthru
          _
        // Predicated region
        $region97: #{tpu_custom_call.1} parent=79 // pred_check
          %p3122 = pneg %p415
        $region98: #{tpu_custom_call.1} parent=79 // pred_check_branch
          %3124 = sbr.rel (%p3122) target = $region100
        $region99: #{tpu_custom_call.1} parent=79 // pred_region
          %3125 = dma.done [#allocation8], 64
        $region100: #{tpu_custom_call.1} parent=79 // pred_fallthru
          _
      $region80: #{tpu_custom_call.1} parent=5 // pred_fallthru
        _
      %p3126 = scmp.le.s32.totalorder 2, %s30
      // Predicated region
      $region101: #{tpu_custom_call.1} parent=5 // pred_check
        %p3127 = pneg %p3126
      $region102: #{tpu_custom_call.1} parent=5 // pred_check_branch
        %3129 = sbr.rel (%p3127) target = $region104
      $region103: #{tpu_custom_call.1} parent=5 // pred_region
        %s3130 = ssub.s32 %s30, 2
        // Predicated region
        $region105: #{tpu_custom_call.1} parent=103 // pred_check
          %p3131 = pneg %p374
        $region106: #{tpu_custom_call.1} parent=103 // pred_check_branch
          %3133 = sbr.rel (%p3131) target = $region108
        $region107: #{tpu_custom_call.1} parent=103 // pred_region
          %s3134 = sand.u32 %s359, 1
          %s3135 = scalar_lea.sflag [#allocation6], %s3134
          %s3136 = sand.u32 %s359, 1
          %s3137 = smul.addr %s3136, 2
          %s3138 = scalar_lea.vmem [#allocation5], %s3137
          %3139 = dma.done %s3135, 32
        $region108: #{tpu_custom_call.1} parent=103 // pred_fallthru
          _
        // Predicated region
        $region109: #{tpu_custom_call.1} parent=103 // pred_check
          %p3140 = pneg %p400
        $region110: #{tpu_custom_call.1} parent=103 // pred_check_branch
          %3142 = sbr.rel (%p3140) target = $region112
        $region111: #{tpu_custom_call.1} parent=103 // pred_region
          %s3143 = sand.u32 %s36, 1
          %s3144 = scalar_lea.sflag [#allocation8], %s3143
          %s3145 = sand.u32 %s385, 1
          %s3146 = smul.addr %s3145, 2
          %s3147 = scalar_lea.vmem [#allocation7], %s3146
          %3148 = dma.done %s3144, 32
        $region112: #{tpu_custom_call.1} parent=103 // pred_fallthru
          _
      $region104: #{tpu_custom_call.1} parent=5 // pred_fallthru
        _
    $region6: #{tpu_custom_call.1} parent=1 // loop_footer
      %s34 = sadd.s32 1, %s30
    $region7: #{tpu_custom_call.1} parent=1 // loop_footer_branch
      %29 = sbr.rel target = $region3
    $region8: #{tpu_custom_call.1} parent=1 // loop_exit
      _
    %3149 = vsyncpa [#allocation6], 1
    %s3150 = scalar_lea.sflag [#allocation6], 1
    %3151 = vsyncpa %s3150, 1
    %3152 = vsyncpa [#allocation8], 1
    %s3153 = scalar_lea.sflag [#allocation8], 1
    %3154 = vsyncpa %s3153, 1

</llo_original>
